<compile_context>
chip_gen: v7x
topology: tpu7x:2x2x1
jax: 0.10.0
libtpu: 0.0.40
codegen_flags: <defaults>
</compile_context>

<pallas_src>
import jax
import jax.numpy as jnp
from jax.experimental import pallas as pl
from jax.experimental.pallas import tpu as pltpu

INPUT_SIZE = 978          # logical feature size (PyTorch module)
F_PAD = 1024              # padded feature size (lane-dense, MXU-friendly)
HIDDEN = 1024             # hidden width k
NEG_SLOPE = 0.01          # F.leaky_relu default negative_slope


def _round_up(n, m):
    return ((n + m - 1) // m) * m


def _mlp_kernel(x_ref, w1_ref, w2_ref, o_ref):
    """One batch-tile grid step.

    x_ref:  (TM, F_PAD)       bf16
    w1_ref: (F_PAD, HIDDEN)   bf16   -- VMEM-resident (constant block index)
    w2_ref: (HIDDEN, F_PAD)   bf16   -- VMEM-resident (constant block index)
    o_ref:  (TM, F_PAD)       f32
    """
    # First linear: (TM, F_PAD) @ (F_PAD, HIDDEN) -> (TM, HIDDEN), f32 accumulation.
    h = jnp.dot(x_ref[...], w1_ref[...], preferred_element_type=jnp.float32)
    # LeakyReLU(0.01): max(h, 0.01*h) is exact for all h.
    h = jnp.maximum(h, NEG_SLOPE * h)
    # Second linear: (TM, HIDDEN) @ (HIDDEN, F_PAD) -> (TM, F_PAD), f32 accumulation.
    o_ref[...] = jnp.dot(h.astype(jnp.bfloat16), w2_ref[...],
                         preferred_element_type=jnp.float32)


def prepare_weights(w1_f32, w2_f32):
    """Pad 978 -> 1024 with zeros (exact for bias-free matmuls) and cast to bf16.

    w1_f32: (978, 1024)  (already transposed vs PyTorch's (out, in) layout)
    w2_f32: (1024, 978)
    """
    w1p = jnp.zeros((F_PAD, HIDDEN), jnp.bfloat16)
    w1p = w1p.at[:INPUT_SIZE, :].set(w1_f32.astype(jnp.bfloat16))
    w2p = jnp.zeros((HIDDEN, F_PAD), jnp.bfloat16)
    w2p = w2p.at[:, :INPUT_SIZE].set(w2_f32.astype(jnp.bfloat16))
    return w1p, w2p


def net_forward(x, w1p, w2p, *, block_m=256):
    """x: (B, 978); w1p: (1024, 1024) bf16; w2p: (1024, 1024) bf16 -> (B, 978) f32."""
    B = x.shape[0]
    assert x.shape[1] == INPUT_SIZE

    # Batch tile: multiple of 8 sublanes, capped at block_m; pad B up to a multiple.
    tm = min(block_m, _round_up(B, 8))
    bp = _round_up(B, tm)

    # Zero-pad input to (Bp, 1024) and cast to bf16 for the MXU.  allow_input_fusion
    # lets XLA fuse this producer into the pallas_call where possible.
    xp = jnp.zeros((bp, F_PAD), jnp.bfloat16)
    xp = xp.at[:B, :INPUT_SIZE].set(x.astype(jnp.bfloat16))

    grid = (bp // tm,)

    flops = 2 * bp * F_PAD * HIDDEN * 2              # two (Bp,1024)x(1024,1024) matmuls
    bytes_accessed = (w1p.size * 2 + w2p.size * 2    # bf16 weights, streamed once
                      + xp.size * 2                  # bf16 activations in
                      + bp * F_PAD * 4)              # f32 output
    cost = pl.CostEstimate(flops=flops, transcendentals=0,
                           bytes_accessed=bytes_accessed)

    out_padded = pl.pallas_call(
        _mlp_kernel,
        out_shape=jax.ShapeDtypeStruct((bp, F_PAD), jnp.float32),
        grid=grid,
        in_specs=[
            pl.BlockSpec((tm, F_PAD), lambda m: (m, 0)),        # x tile per grid step
            pl.BlockSpec((F_PAD, HIDDEN), lambda m: (0, 0)),    # W1, resident
            pl.BlockSpec((HIDDEN, F_PAD), lambda m: (0, 0)),    # W2, resident
        ],
        out_specs=pl.BlockSpec((tm, F_PAD), lambda m: (m, 0)),
        compiler_params=pltpu.CompilerParams(
            dimension_semantics=("parallel",),
            vmem_limit_bytes=32 << 20,
            allow_input_fusion=[True, False, False],
        ),
        cost_estimate=cost,
    )(xp, w1p, w2p)

    return out_padded[:B, :INPUT_SIZE]


def init_params(key):
    """Deterministic synthetic init mirroring nn.Linear fan-in scaling (f32 masters)."""
    k1, k2 = jax.random.split(key)
    bound1 = 1.0 / jnp.sqrt(INPUT_SIZE)
    bound2 = 1.0 / jnp.sqrt(HIDDEN)
    # Stored already transposed relative to PyTorch's (out, in) layout.
    w1 = jax.random.uniform(k1, (INPUT_SIZE, HIDDEN), jnp.float32,
                            minval=-bound1, maxval=bound1)
    w2 = jax.random.uniform(k2, (HIDDEN, INPUT_SIZE), jnp.float32,
                            minval=-bound2, maxval=bound2)
    return w1, w2


if __name__ == "__main__":
    key = jax.random.PRNGKey(0)
    kx, kp = jax.random.split(key)

    batch = 8
    x = jax.random.normal(kx, (batch, INPUT_SIZE), dtype=jnp.float32)
    w1, w2 = init_params(kp)
    w1p, w2p = prepare_weights(w1, w2)

    out = net_forward(x, w1p, w2p)
    out = jax.block_until_ready(out)

    # Reference in plain JAX using the same bf16 weights/inputs (f32 accumulation);
    # tolerance reflects the bf16 weight/activation cast.
    xb = x.astype(jnp.bfloat16)
    h_ref = jnp.dot(xb, w1.astype(jnp.bfloat16), preferred_element_type=jnp.float32)
    h_ref = jnp.where(h_ref > 0, h_ref, NEG_SLOPE * h_ref)
    ref = jnp.dot(h_ref.astype(jnp.bfloat16), w2.astype(jnp.bfloat16),
                  preferred_element_type=jnp.float32)

    assert out.shape == (batch, INPUT_SIZE)
    assert jnp.allclose(out, ref, atol=2e-2, rtol=2e-2), (
        float(jnp.max(jnp.abs(out - ref))))

    print("KERNEL_OK")
</pallas_src>

<mosaic_0001>
module attributes {stable_mosaic.version = 11 : i64} {
  func.func @_mlp_kernel(%arg0: i32, %arg1: memref<8x1024xbf16, #tpu.memory_space<vmem>>, %arg2: memref<1024x1024xbf16, #tpu.memory_space<vmem>>, %arg3: memref<1024x1024xbf16, #tpu.memory_space<vmem>>, %arg4: memref<8x1024xf32, #tpu.memory_space<vmem>>) attributes {dimension_semantics = [#tpu.dimension_semantics<parallel>], iteration_bounds = array<i64: 1>, scalar_prefetch = 0 : i64, scratch_operands = 0 : i64, tpu.core_type = #tpu.core_type<tc>, window_params = [{transform_indices = @transform_0, window_bounds = array<i64: 8, 1024>}, {pipeline_mode = #tpu.pipeline_mode<synchronous>, transform_indices = @transform_1, window_bounds = array<i64: 1024, 1024>}, {pipeline_mode = #tpu.pipeline_mode<synchronous>, transform_indices = @transform_2, window_bounds = array<i64: 1024, 1024>}, {transform_indices = @transform_3, window_bounds = array<i64: 8, 1024>}]} {
    %c0 = arith.constant 0 : index
    %c0_0 = arith.constant 0 : index
    %0 = vector.load %arg1[%c0, %c0_0] : memref<8x1024xbf16, #tpu.memory_space<vmem>>, vector<8x1024xbf16>
    %c0_1 = arith.constant 0 : index
    %c0_2 = arith.constant 0 : index
    %1 = vector.load %arg2[%c0_1, %c0_2] : memref<1024x1024xbf16, #tpu.memory_space<vmem>>, vector<1024x1024xbf16>
    %cst = arith.constant dense<0.000000e+00> : vector<8x1024xf32>
    %2 = tpu.matmul %0, %1, %cst {dimension_numbers = #tpu.dot_dimension_numbers<[1], [0], [0], [1], [0, 0, 1, 1], [], []>} : vector<8x1024xbf16>, vector<1024x1024xbf16>, vector<8x1024xf32> -> vector<8x1024xf32>
    %cst_3 = arith.constant 0.00999999977 : f32
    %3 = vector.broadcast %cst_3 : f32 to vector<8x1024xf32>
    %4 = arith.mulf %3, %2 : vector<8x1024xf32>
    %5 = arith.maximumf %2, %4 : vector<8x1024xf32>
    %6 = arith.truncf %5 : vector<8x1024xf32> to vector<8x1024xbf16>
    %c0_4 = arith.constant 0 : index
    %c0_5 = arith.constant 0 : index
    %7 = vector.load %arg3[%c0_4, %c0_5] : memref<1024x1024xbf16, #tpu.memory_space<vmem>>, vector<1024x1024xbf16>
    %cst_6 = arith.constant dense<0.000000e+00> : vector<8x1024xf32>
    %8 = tpu.matmul %6, %7, %cst_6 {dimension_numbers = #tpu.dot_dimension_numbers<[1], [0], [0], [1], [0, 0, 1, 1], [], []>} : vector<8x1024xbf16>, vector<1024x1024xbf16>, vector<8x1024xf32> -> vector<8x1024xf32>
    %c0_7 = arith.constant 0 : index
    %c0_8 = arith.constant 0 : index
    %9 = vector.load %arg4[%c0_7, %c0_8] : memref<8x1024xf32, #tpu.memory_space<vmem>>, vector<8x1024xf32>
    tpu.vector_store %arg4[%c0_7, %c0_8], %8 {strides = array<i32>} : memref<8x1024xf32, #tpu.memory_space<vmem>>, vector<8x1024xf32>,
    return
  }
  func.func @transform_0(%arg0: i32) -> (i32, i32) {
    %c0_i32 = arith.constant 0 : i32
    %c0_i32_0 = arith.constant 0 : i32
    return %arg0, %c0_i32 : i32, i32
  }
  func.func @transform_1(%arg0: i32) -> (i32, i32) {
    %c0_i32 = arith.constant 0 : i32
    %c0_i32_0 = arith.constant 0 : i32
    %c0_i32_1 = arith.constant 0 : i32
    return %c0_i32, %c0_i32_0 : i32, i32
  }
  func.func @transform_2(%arg0: i32) -> (i32, i32) {
    %c0_i32 = arith.constant 0 : i32
    %c0_i32_0 = arith.constant 0 : i32
    %c0_i32_1 = arith.constant 0 : i32
    return %c0_i32, %c0_i32_0 : i32, i32
  }
  func.func @transform_3(%arg0: i32) -> (i32, i32) {
    %c0_i32 = arith.constant 0 : i32
    %c0_i32_0 = arith.constant 0 : i32
    return %arg0, %c0_i32 : i32, i32
  }
}

</mosaic_0001>

<llo_original>
// kernel: tpu_custom_call.1
$region0: #{tpu_custom_call.1}
  #allocation0 [shape = 'u32[]', space=smem, size = 0x4, offset = 0x4, fixed_abs, tag = 'smem constant byte address 0x4 - core index']
  #allocation1 [shape = 'u32[144,128]{1,0:T(1,128)}', space=vmem, size = 0x12000, scoped, tag = 'internal scratch']
  %s0 = inlined_call_operand.hbm [shape: bf16[8,1024], index: 0, kind: input, shape index: {}]
  %s1 = inlined_call_operand.hbm [shape: bf16[1024,1024], index: 1, kind: input, shape index: {}]
  %s2 = inlined_call_operand.hbm [shape: bf16[1024,1024], index: 2, kind: input, shape index: {}]
  %s3 = inlined_call_operand.hbm [shape: f32[8,1024], index: 3, kind: output, shape index: {}]
  %s4 = sld [smem:[#allocation0]]
  $region34: #{tpu_custom_call.1} parent=0
    _
  %s6 = ssub.s32 1, %s4
  %s7 = scalar_select 0, %s6, %s4
  $region1: #{tpu_custom_call.1} parent=0
    #allocation2 [shape = 'u8[16384]{0}', space=vmem, size = 0x4000, scoped, tag = 'input window, operand 0, single buffered']
    #allocation3 [shape = 's32[1]{0}', space=sflag, size = 0x4, scoped, tag = 'scoped memory for tpu_custom_call.1']
    #allocation4 [shape = 's32[1]{0}', space=sflag, size = 0x4, scoped, tag = 'scoped memory for tpu_custom_call.1']
    #allocation5 [shape = 'u8[2097152]{0}', space=vmem, size = 0x200000, scoped, tag = 'input window, operand 1, single buffered']
    #allocation6 [shape = 's32[1]{0}', space=sflag, size = 0x4, scoped, tag = 'scoped memory for tpu_custom_call.1']
    #allocation7 [shape = 'u8[2097152]{0}', space=vmem, size = 0x200000, scoped, tag = 'input window, operand 2, single buffered']
    #allocation8 [shape = 'u8[32768]{0}', space=vmem, size = 0x8000, scoped, tag = 'output window, operand 0, single buffered']
    %8 = vsyncpa [#allocation3], 0
    %9 = vsyncpa [#allocation6], 0
    %10 = vsyncpa [#allocation4], 0
    // Predicated region
    $region2: #{tpu_custom_call.1} parent=1 // pred_check
      _
    $region3: #{tpu_custom_call.1} parent=1 // pred_check_branch
      %12 = sbr.rel (0) target = $region5
    $region4: #{tpu_custom_call.1} parent=1 // pred_region
      %s14 = ssub.s32 512, 512
      %15 = vsyncadd [#allocation3], %s14
      %s17 = sshll.u32 [#allocation2], 4
      %s18 = int_to_ptr.vmem [resolvable:$true] %s17
      %20 = dma.hbm_to_vmem [thread:$0]  %s0, 512, %s18, [#allocation3]
    $region5: #{tpu_custom_call.1} parent=1 // pred_fallthru
      _
    // Predicated region
    $region6: #{tpu_custom_call.1} parent=1 // pred_check
      _
    $region7: #{tpu_custom_call.1} parent=1 // pred_check_branch
      %22 = sbr.rel (0) target = $region9
    $region8: #{tpu_custom_call.1} parent=1 // pred_region
      %s24 = ssub.s32 65536, 65536
      %25 = vsyncadd [#allocation6], %s24
      %s26 = sshll.u32 [#allocation5], 4
      %s27 = int_to_ptr.vmem [resolvable:$true] %s26
      %32 = dma.hbm_to_vmem [thread:$0]  %s1, 65536, %s27, [#allocation6], 512, 512, 32
    $region9: #{tpu_custom_call.1} parent=1 // pred_fallthru
      _
    // Predicated region
    $region10: #{tpu_custom_call.1} parent=1 // pred_check
      _
    $region11: #{tpu_custom_call.1} parent=1 // pred_check_branch
      %34 = sbr.rel (0) target = $region13
    $region12: #{tpu_custom_call.1} parent=1 // pred_region
      %s36 = ssub.s32 65536, 65536
      %37 = vsyncadd [#allocation6], %s36
      %s38 = sshll.u32 [#allocation7], 4
      %s39 = int_to_ptr.vmem [resolvable:$true] %s38
      %44 = dma.hbm_to_vmem [thread:$0]  %s2, 65536, %s39, [#allocation6], 512, 512, 32
    $region13: #{tpu_custom_call.1} parent=1 // pred_fallthru
      _
    // Predicated region
    $region14: #{tpu_custom_call.1} parent=1 // pred_check
      _
    $region15: #{tpu_custom_call.1} parent=1 // pred_check_branch
      %46 = sbr.rel (0) target = $region17
    $region16: #{tpu_custom_call.1} parent=1 // pred_region
      %47 = dma.done [#allocation3], 512
    $region17: #{tpu_custom_call.1} parent=1 // pred_fallthru
      _
    // Predicated region
    $region18: #{tpu_custom_call.1} parent=1 // pred_check
      _
    $region19: #{tpu_custom_call.1} parent=1 // pred_check_branch
      %49 = sbr.rel (0) target = $region21
    $region20: #{tpu_custom_call.1} parent=1 // pred_region
      %50 = dma.done [#allocation6], 65536
    $region21: #{tpu_custom_call.1} parent=1 // pred_fallthru
      _
    // Predicated region
    $region22: #{tpu_custom_call.1} parent=1 // pred_check
      _
    $region23: #{tpu_custom_call.1} parent=1 // pred_check_branch
      %52 = sbr.rel (0) target = $region25
    $region24: #{tpu_custom_call.1} parent=1 // pred_region
      %53 = dma.done [#allocation6], 65536
    $region25: #{tpu_custom_call.1} parent=1 // pred_fallthru
      _
    %v54 = vld [vmem:[#allocation2] sm:$0xff]
    %v55 = vld [vmem:[#allocation2 + $0x8] sm:$0xff]
    %v56 = vld [vmem:[#allocation2 + $0x10] sm:$0xff]
    %v57 = vld [vmem:[#allocation2 + $0x18] sm:$0xff]
    %v58 = vld [vmem:[#allocation5] sm:$0xff]
    %v59 = vld [vmem:[#allocation5 + $0x8] sm:$0xff]
    %v60 = vld [vmem:[#allocation5 + $0x10] sm:$0xff]
    %v61 = vld [vmem:[#allocation5 + $0x18] sm:$0xff]
    %v62 = vld [vmem:[#allocation5 + $0x20] sm:$0xff]
    %v63 = vld [vmem:[#allocation5 + $0x28] sm:$0xff]
    %v64 = vld [vmem:[#allocation5 + $0x30] sm:$0xff]
    %v65 = vld [vmem:[#allocation5 + $0x38] sm:$0xff]
    %v66 = vld [vmem:[#allocation5 + $0x40] sm:$0xff]
    %v67 = vld [vmem:[#allocation5 + $0x48] sm:$0xff]
    %v68 = vld [vmem:[#allocation5 + $0x50] sm:$0xff]
    %v69 = vld [vmem:[#allocation5 + $0x58] sm:$0xff]
    %v70 = vld [vmem:[#allocation5 + $0x60] sm:$0xff]
    %v71 = vld [vmem:[#allocation5 + $0x68] sm:$0xff]
    %v72 = vld [vmem:[#allocation5 + $0x70] sm:$0xff]
    %v73 = vld [vmem:[#allocation5 + $0x78] sm:$0xff]
    %v74 = vld [vmem:[#allocation5 + $0x80] sm:$0xff]
    %v75 = vld [vmem:[#allocation5 + $0x88] sm:$0xff]
    %v76 = vld [vmem:[#allocation5 + $0x90] sm:$0xff]
    %v77 = vld [vmem:[#allocation5 + $0x98] sm:$0xff]
    %v78 = vld [vmem:[#allocation5 + $0xa0] sm:$0xff]
    %v79 = vld [vmem:[#allocation5 + $0xa8] sm:$0xff]
    %v80 = vld [vmem:[#allocation5 + $0xb0] sm:$0xff]
    %v81 = vld [vmem:[#allocation5 + $0xb8] sm:$0xff]
    %v82 = vld [vmem:[#allocation5 + $0xc0] sm:$0xff]
    %v83 = vld [vmem:[#allocation5 + $0xc8] sm:$0xff]
    %v84 = vld [vmem:[#allocation5 + $0xd0] sm:$0xff]
    %v85 = vld [vmem:[#allocation5 + $0xd8] sm:$0xff]
    %v86 = vld [vmem:[#allocation5 + $0xe0] sm:$0xff]
    %v87 = vld [vmem:[#allocation5 + $0xe8] sm:$0xff]
    %v88 = vld [vmem:[#allocation5 + $0xf0] sm:$0xff]
    %v89 = vld [vmem:[#allocation5 + $0xf8] sm:$0xff]
    %v90 = vld [vmem:[#allocation5 + $0x100] sm:$0xff]
    %v91 = vld [vmem:[#allocation5 + $0x108] sm:$0xff]
    %v92 = vld [vmem:[#allocation5 + $0x110] sm:$0xff]
    %v93 = vld [vmem:[#allocation5 + $0x118] sm:$0xff]
    %v94 = vld [vmem:[#allocation5 + $0x120] sm:$0xff]
    %v95 = vld [vmem:[#allocation5 + $0x128] sm:$0xff]
    %v96 = vld [vmem:[#allocation5 + $0x130] sm:$0xff]
    %v97 = vld [vmem:[#allocation5 + $0x138] sm:$0xff]
    %v98 = vld [vmem:[#allocation5 + $0x140] sm:$0xff]
    %v99 = vld [vmem:[#allocation5 + $0x148] sm:$0xff]
    %v100 = vld [vmem:[#allocation5 + $0x150] sm:$0xff]
    %v101 = vld [vmem:[#allocation5 + $0x158] sm:$0xff]
    %v102 = vld [vmem:[#allocation5 + $0x160] sm:$0xff]
    %v103 = vld [vmem:[#allocation5 + $0x168] sm:$0xff]
    %v104 = vld [vmem:[#allocation5 + $0x170] sm:$0xff]
    %v105 = vld [vmem:[#allocation5 + $0x178] sm:$0xff]
    %v106 = vld [vmem:[#allocation5 + $0x180] sm:$0xff]
    %v107 = vld [vmem:[#allocation5 + $0x188] sm:$0xff]
    %v108 = vld [vmem:[#allocation5 + $0x190] sm:$0xff]
    %v109 = vld [vmem:[#allocation5 + $0x198] sm:$0xff]
    %v110 = vld [vmem:[#allocation5 + $0x1a0] sm:$0xff]
    %v111 = vld [vmem:[#allocation5 + $0x1a8] sm:$0xff]
    %v112 = vld [vmem:[#allocation5 + $0x1b0] sm:$0xff]
    %v113 = vld [vmem:[#allocation5 + $0x1b8] sm:$0xff]
    %v114 = vld [vmem:[#allocation5 + $0x1c0] sm:$0xff]
    %v115 = vld [vmem:[#allocation5 + $0x1c8] sm:$0xff]
    %v116 = vld [vmem:[#allocation5 + $0x1d0] sm:$0xff]
    %v117 = vld [vmem:[#allocation5 + $0x1d8] sm:$0xff]
    %v118 = vld [vmem:[#allocation5 + $0x1e0] sm:$0xff]
    %v119 = vld [vmem:[#allocation5 + $0x1e8] sm:$0xff]
    %v120 = vld [vmem:[#allocation5 + $0x1f0] sm:$0xff]
    %v121 = vld [vmem:[#allocation5 + $0x1f8] sm:$0xff]
    %v122 = vld [vmem:[#allocation5 + $0x200] sm:$0xff]
    %v123 = vld [vmem:[#allocation5 + $0x208] sm:$0xff]
    %v124 = vld [vmem:[#allocation5 + $0x210] sm:$0xff]
    %v125 = vld [vmem:[#allocation5 + $0x218] sm:$0xff]
    %v126 = vld [vmem:[#allocation5 + $0x220] sm:$0xff]
    %v127 = vld [vmem:[#allocation5 + $0x228] sm:$0xff]
    %v128 = vld [vmem:[#allocation5 + $0x230] sm:$0xff]
    %v129 = vld [vmem:[#allocation5 + $0x238] sm:$0xff]
    %v130 = vld [vmem:[#allocation5 + $0x240] sm:$0xff]
    %v131 = vld [vmem:[#allocation5 + $0x248] sm:$0xff]
    %v132 = vld [vmem:[#allocation5 + $0x250] sm:$0xff]
    %v133 = vld [vmem:[#allocation5 + $0x258] sm:$0xff]
    %v134 = vld [vmem:[#allocation5 + $0x260] sm:$0xff]
    %v135 = vld [vmem:[#allocation5 + $0x268] sm:$0xff]
    %v136 = vld [vmem:[#allocation5 + $0x270] sm:$0xff]
    %v137 = vld [vmem:[#allocation5 + $0x278] sm:$0xff]
    %v138 = vld [vmem:[#allocation5 + $0x280] sm:$0xff]
    %v139 = vld [vmem:[#allocation5 + $0x288] sm:$0xff]
    %v140 = vld [vmem:[#allocation5 + $0x290] sm:$0xff]
    %v141 = vld [vmem:[#allocation5 + $0x298] sm:$0xff]
    %v142 = vld [vmem:[#allocation5 + $0x2a0] sm:$0xff]
    %v143 = vld [vmem:[#allocation5 + $0x2a8] sm:$0xff]
    %v144 = vld [vmem:[#allocation5 + $0x2b0] sm:$0xff]
    %v145 = vld [vmem:[#allocation5 + $0x2b8] sm:$0xff]
    %v146 = vld [vmem:[#allocation5 + $0x2c0] sm:$0xff]
    %v147 = vld [vmem:[#allocation5 + $0x2c8] sm:$0xff]
    %v148 = vld [vmem:[#allocation5 + $0x2d0] sm:$0xff]
    %v149 = vld [vmem:[#allocation5 + $0x2d8] sm:$0xff]
    %v150 = vld [vmem:[#allocation5 + $0x2e0] sm:$0xff]
    %v151 = vld [vmem:[#allocation5 + $0x2e8] sm:$0xff]
    %v152 = vld [vmem:[#allocation5 + $0x2f0] sm:$0xff]
    %v153 = vld [vmem:[#allocation5 + $0x2f8] sm:$0xff]
    %v154 = vld [vmem:[#allocation5 + $0x300] sm:$0xff]
    %v155 = vld [vmem:[#allocation5 + $0x308] sm:$0xff]
    %v156 = vld [vmem:[#allocation5 + $0x310] sm:$0xff]
    %v157 = vld [vmem:[#allocation5 + $0x318] sm:$0xff]
    %v158 = vld [vmem:[#allocation5 + $0x320] sm:$0xff]
    %v159 = vld [vmem:[#allocation5 + $0x328] sm:$0xff]
    %v160 = vld [vmem:[#allocation5 + $0x330] sm:$0xff]
    %v161 = vld [vmem:[#allocation5 + $0x338] sm:$0xff]
    %v162 = vld [vmem:[#allocation5 + $0x340] sm:$0xff]
    %v163 = vld [vmem:[#allocation5 + $0x348] sm:$0xff]
    %v164 = vld [vmem:[#allocation5 + $0x350] sm:$0xff]
    %v165 = vld [vmem:[#allocation5 + $0x358] sm:$0xff]
    %v166 = vld [vmem:[#allocation5 + $0x360] sm:$0xff]
    %v167 = vld [vmem:[#allocation5 + $0x368] sm:$0xff]
    %v168 = vld [vmem:[#allocation5 + $0x370] sm:$0xff]
    %v169 = vld [vmem:[#allocation5 + $0x378] sm:$0xff]
    %v170 = vld [vmem:[#allocation5 + $0x380] sm:$0xff]
    %v171 = vld [vmem:[#allocation5 + $0x388] sm:$0xff]
    %v172 = vld [vmem:[#allocation5 + $0x390] sm:$0xff]
    %v173 = vld [vmem:[#allocation5 + $0x398] sm:$0xff]
    %v174 = vld [vmem:[#allocation5 + $0x3a0] sm:$0xff]
    %v175 = vld [vmem:[#allocation5 + $0x3a8] sm:$0xff]
    %v176 = vld [vmem:[#allocation5 + $0x3b0] sm:$0xff]
    %v177 = vld [vmem:[#allocation5 + $0x3b8] sm:$0xff]
    %v178 = vld [vmem:[#allocation5 + $0x3c0] sm:$0xff]
    %v179 = vld [vmem:[#allocation5 + $0x3c8] sm:$0xff]
    %v180 = vld [vmem:[#allocation5 + $0x3d0] sm:$0xff]
    %v181 = vld [vmem:[#allocation5 + $0x3d8] sm:$0xff]
    %v182 = vld [vmem:[#allocation5 + $0x3e0] sm:$0xff]
    %v183 = vld [vmem:[#allocation5 + $0x3e8] sm:$0xff]
    %v184 = vld [vmem:[#allocation5 + $0x3f0] sm:$0xff]
    %v185 = vld [vmem:[#allocation5 + $0x3f8] sm:$0xff]
    %v186 = vld [vmem:[#allocation5 + $0x400] sm:$0xff]
    %v187 = vld [vmem:[#allocation5 + $0x408] sm:$0xff]
    %v188 = vld [vmem:[#allocation5 + $0x410] sm:$0xff]
    %v189 = vld [vmem:[#allocation5 + $0x418] sm:$0xff]
    %v190 = vld [vmem:[#allocation5 + $0x420] sm:$0xff]
    %v191 = vld [vmem:[#allocation5 + $0x428] sm:$0xff]
    %v192 = vld [vmem:[#allocation5 + $0x430] sm:$0xff]
    %v193 = vld [vmem:[#allocation5 + $0x438] sm:$0xff]
    %v194 = vld [vmem:[#allocation5 + $0x440] sm:$0xff]
    %v195 = vld [vmem:[#allocation5 + $0x448] sm:$0xff]
    %v196 = vld [vmem:[#allocation5 + $0x450] sm:$0xff]
    %v197 = vld [vmem:[#allocation5 + $0x458] sm:$0xff]
    %v198 = vld [vmem:[#allocation5 + $0x460] sm:$0xff]
    %v199 = vld [vmem:[#allocation5 + $0x468] sm:$0xff]
    %v200 = vld [vmem:[#allocation5 + $0x470] sm:$0xff]
    %v201 = vld [vmem:[#allocation5 + $0x478] sm:$0xff]
    %v202 = vld [vmem:[#allocation5 + $0x480] sm:$0xff]
    %v203 = vld [vmem:[#allocation5 + $0x488] sm:$0xff]
    %v204 = vld [vmem:[#allocation5 + $0x490] sm:$0xff]
    %v205 = vld [vmem:[#allocation5 + $0x498] sm:$0xff]
    %v206 = vld [vmem:[#allocation5 + $0x4a0] sm:$0xff]
    %v207 = vld [vmem:[#allocation5 + $0x4a8] sm:$0xff]
    %v208 = vld [vmem:[#allocation5 + $0x4b0] sm:$0xff]
    %v209 = vld [vmem:[#allocation5 + $0x4b8] sm:$0xff]
    %v210 = vld [vmem:[#allocation5 + $0x4c0] sm:$0xff]
    %v211 = vld [vmem:[#allocation5 + $0x4c8] sm:$0xff]
    %v212 = vld [vmem:[#allocation5 + $0x4d0] sm:$0xff]
    %v213 = vld [vmem:[#allocation5 + $0x4d8] sm:$0xff]
    %v214 = vld [vmem:[#allocation5 + $0x4e0] sm:$0xff]
    %v215 = vld [vmem:[#allocation5 + $0x4e8] sm:$0xff]
    %v216 = vld [vmem:[#allocation5 + $0x4f0] sm:$0xff]
    %v217 = vld [vmem:[#allocation5 + $0x4f8] sm:$0xff]
    %v218 = vld [vmem:[#allocation5 + $0x500] sm:$0xff]
    %v219 = vld [vmem:[#allocation5 + $0x508] sm:$0xff]
    %v220 = vld [vmem:[#allocation5 + $0x510] sm:$0xff]
    %v221 = vld [vmem:[#allocation5 + $0x518] sm:$0xff]
    %v222 = vld [vmem:[#allocation5 + $0x520] sm:$0xff]
    %v223 = vld [vmem:[#allocation5 + $0x528] sm:$0xff]
    %v224 = vld [vmem:[#allocation5 + $0x530] sm:$0xff]
    %v225 = vld [vmem:[#allocation5 + $0x538] sm:$0xff]
    %v226 = vld [vmem:[#allocation5 + $0x540] sm:$0xff]
    %v227 = vld [vmem:[#allocation5 + $0x548] sm:$0xff]
    %v228 = vld [vmem:[#allocation5 + $0x550] sm:$0xff]
    %v229 = vld [vmem:[#allocation5 + $0x558] sm:$0xff]
    %v230 = vld [vmem:[#allocation5 + $0x560] sm:$0xff]
    %v231 = vld [vmem:[#allocation5 + $0x568] sm:$0xff]
    %v232 = vld [vmem:[#allocation5 + $0x570] sm:$0xff]
    %v233 = vld [vmem:[#allocation5 + $0x578] sm:$0xff]
    %v234 = vld [vmem:[#allocation5 + $0x580] sm:$0xff]
    %v235 = vld [vmem:[#allocation5 + $0x588] sm:$0xff]
    %v236 = vld [vmem:[#allocation5 + $0x590] sm:$0xff]
    %v237 = vld [vmem:[#allocation5 + $0x598] sm:$0xff]
    %v238 = vld [vmem:[#allocation5 + $0x5a0] sm:$0xff]
    %v239 = vld [vmem:[#allocation5 + $0x5a8] sm:$0xff]
    %v240 = vld [vmem:[#allocation5 + $0x5b0] sm:$0xff]
    %v241 = vld [vmem:[#allocation5 + $0x5b8] sm:$0xff]
    %v242 = vld [vmem:[#allocation5 + $0x5c0] sm:$0xff]
    %v243 = vld [vmem:[#allocation5 + $0x5c8] sm:$0xff]
    %v244 = vld [vmem:[#allocation5 + $0x5d0] sm:$0xff]
    %v245 = vld [vmem:[#allocation5 + $0x5d8] sm:$0xff]
    %v246 = vld [vmem:[#allocation5 + $0x5e0] sm:$0xff]
    %v247 = vld [vmem:[#allocation5 + $0x5e8] sm:$0xff]
    %v248 = vld [vmem:[#allocation5 + $0x5f0] sm:$0xff]
    %v249 = vld [vmem:[#allocation5 + $0x5f8] sm:$0xff]
    %v250 = vld [vmem:[#allocation5 + $0x600] sm:$0xff]
    %v251 = vld [vmem:[#allocation5 + $0x608] sm:$0xff]
    %v252 = vld [vmem:[#allocation5 + $0x610] sm:$0xff]
    %v253 = vld [vmem:[#allocation5 + $0x618] sm:$0xff]
    %v254 = vld [vmem:[#allocation5 + $0x620] sm:$0xff]
    %v255 = vld [vmem:[#allocation5 + $0x628] sm:$0xff]
    %v256 = vld [vmem:[#allocation5 + $0x630] sm:$0xff]
    %v257 = vld [vmem:[#allocation5 + $0x638] sm:$0xff]
    %v258 = vld [vmem:[#allocation5 + $0x640] sm:$0xff]
    %v259 = vld [vmem:[#allocation5 + $0x648] sm:$0xff]
    %v260 = vld [vmem:[#allocation5 + $0x650] sm:$0xff]
    %v261 = vld [vmem:[#allocation5 + $0x658] sm:$0xff]
    %v262 = vld [vmem:[#allocation5 + $0x660] sm:$0xff]
    %v263 = vld [vmem:[#allocation5 + $0x668] sm:$0xff]
    %v264 = vld [vmem:[#allocation5 + $0x670] sm:$0xff]
    %v265 = vld [vmem:[#allocation5 + $0x678] sm:$0xff]
    %v266 = vld [vmem:[#allocation5 + $0x680] sm:$0xff]
    %v267 = vld [vmem:[#allocation5 + $0x688] sm:$0xff]
    %v268 = vld [vmem:[#allocation5 + $0x690] sm:$0xff]
    %v269 = vld [vmem:[#allocation5 + $0x698] sm:$0xff]
    %v270 = vld [vmem:[#allocation5 + $0x6a0] sm:$0xff]
    %v271 = vld [vmem:[#allocation5 + $0x6a8] sm:$0xff]
    %v272 = vld [vmem:[#allocation5 + $0x6b0] sm:$0xff]
    %v273 = vld [vmem:[#allocation5 + $0x6b8] sm:$0xff]
    %v274 = vld [vmem:[#allocation5 + $0x6c0] sm:$0xff]
    %v275 = vld [vmem:[#allocation5 + $0x6c8] sm:$0xff]
    %v276 = vld [vmem:[#allocation5 + $0x6d0] sm:$0xff]
    %v277 = vld [vmem:[#allocation5 + $0x6d8] sm:$0xff]
    %v278 = vld [vmem:[#allocation5 + $0x6e0] sm:$0xff]
    %v279 = vld [vmem:[#allocation5 + $0x6e8] sm:$0xff]
    %v280 = vld [vmem:[#allocation5 + $0x6f0] sm:$0xff]
    %v281 = vld [vmem:[#allocation5 + $0x6f8] sm:$0xff]
    %v282 = vld [vmem:[#allocation5 + $0x700] sm:$0xff]
    %v283 = vld [vmem:[#allocation5 + $0x708] sm:$0xff]
    %v284 = vld [vmem:[#allocation5 + $0x710] sm:$0xff]
    %v285 = vld [vmem:[#allocation5 + $0x718] sm:$0xff]
    %v286 = vld [vmem:[#allocation5 + $0x720] sm:$0xff]
    %v287 = vld [vmem:[#allocation5 + $0x728] sm:$0xff]
    %v288 = vld [vmem:[#allocation5 + $0x730] sm:$0xff]
    %v289 = vld [vmem:[#allocation5 + $0x738] sm:$0xff]
    %v290 = vld [vmem:[#allocation5 + $0x740] sm:$0xff]
    %v291 = vld [vmem:[#allocation5 + $0x748] sm:$0xff]
    %v292 = vld [vmem:[#allocation5 + $0x750] sm:$0xff]
    %v293 = vld [vmem:[#allocation5 + $0x758] sm:$0xff]
    %v294 = vld [vmem:[#allocation5 + $0x760] sm:$0xff]
    %v295 = vld [vmem:[#allocation5 + $0x768] sm:$0xff]
    %v296 = vld [vmem:[#allocation5 + $0x770] sm:$0xff]
    %v297 = vld [vmem:[#allocation5 + $0x778] sm:$0xff]
    %v298 = vld [vmem:[#allocation5 + $0x780] sm:$0xff]
    %v299 = vld [vmem:[#allocation5 + $0x788] sm:$0xff]
    %v300 = vld [vmem:[#allocation5 + $0x790] sm:$0xff]
    %v301 = vld [vmem:[#allocation5 + $0x798] sm:$0xff]
    %v302 = vld [vmem:[#allocation5 + $0x7a0] sm:$0xff]
    %v303 = vld [vmem:[#allocation5 + $0x7a8] sm:$0xff]
    %v304 = vld [vmem:[#allocation5 + $0x7b0] sm:$0xff]
    %v305 = vld [vmem:[#allocation5 + $0x7b8] sm:$0xff]
    %v306 = vld [vmem:[#allocation5 + $0x7c0] sm:$0xff]
    %v307 = vld [vmem:[#allocation5 + $0x7c8] sm:$0xff]
    %v308 = vld [vmem:[#allocation5 + $0x7d0] sm:$0xff]
    %v309 = vld [vmem:[#allocation5 + $0x7d8] sm:$0xff]
    %v310 = vld [vmem:[#allocation5 + $0x7e0] sm:$0xff]
    %v311 = vld [vmem:[#allocation5 + $0x7e8] sm:$0xff]
    %v312 = vld [vmem:[#allocation5 + $0x7f0] sm:$0xff]
    %v313 = vld [vmem:[#allocation5 + $0x7f8] sm:$0xff]
    %v314 = vld [vmem:[#allocation5 + $0x800] sm:$0xff]
    %v315 = vld [vmem:[#allocation5 + $0x808] sm:$0xff]
    %v316 = vld [vmem:[#allocation5 + $0x810] sm:$0xff]
    %v317 = vld [vmem:[#allocation5 + $0x818] sm:$0xff]
    %v318 = vld [vmem:[#allocation5 + $0x820] sm:$0xff]
    %v319 = vld [vmem:[#allocation5 + $0x828] sm:$0xff]
    %v320 = vld [vmem:[#allocation5 + $0x830] sm:$0xff]
    %v321 = vld [vmem:[#allocation5 + $0x838] sm:$0xff]
    %v322 = vld [vmem:[#allocation5 + $0x840] sm:$0xff]
    %v323 = vld [vmem:[#allocation5 + $0x848] sm:$0xff]
    %v324 = vld [vmem:[#allocation5 + $0x850] sm:$0xff]
    %v325 = vld [vmem:[#allocation5 + $0x858] sm:$0xff]
    %v326 = vld [vmem:[#allocation5 + $0x860] sm:$0xff]
    %v327 = vld [vmem:[#allocation5 + $0x868] sm:$0xff]
    %v328 = vld [vmem:[#allocation5 + $0x870] sm:$0xff]
    %v329 = vld [vmem:[#allocation5 + $0x878] sm:$0xff]
    %v330 = vld [vmem:[#allocation5 + $0x880] sm:$0xff]
    %v331 = vld [vmem:[#allocation5 + $0x888] sm:$0xff]
    %v332 = vld [vmem:[#allocation5 + $0x890] sm:$0xff]
    %v333 = vld [vmem:[#allocation5 + $0x898] sm:$0xff]
    %v334 = vld [vmem:[#allocation5 + $0x8a0] sm:$0xff]
    %v335 = vld [vmem:[#allocation5 + $0x8a8] sm:$0xff]
    %v336 = vld [vmem:[#allocation5 + $0x8b0] sm:$0xff]
    %v337 = vld [vmem:[#allocation5 + $0x8b8] sm:$0xff]
    %v338 = vld [vmem:[#allocation5 + $0x8c0] sm:$0xff]
    %v339 = vld [vmem:[#allocation5 + $0x8c8] sm:$0xff]
    %v340 = vld [vmem:[#allocation5 + $0x8d0] sm:$0xff]
    %v341 = vld [vmem:[#allocation5 + $0x8d8] sm:$0xff]
    %v342 = vld [vmem:[#allocation5 + $0x8e0] sm:$0xff]
    %v343 = vld [vmem:[#allocation5 + $0x8e8] sm:$0xff]
    %v344 = vld [vmem:[#allocation5 + $0x8f0] sm:$0xff]
    %v345 = vld [vmem:[#allocation5 + $0x8f8] sm:$0xff]
    %v346 = vld [vmem:[#allocation5 + $0x900] sm:$0xff]
    %v347 = vld [vmem:[#allocation5 + $0x908] sm:$0xff]
    %v348 = vld [vmem:[#allocation5 + $0x910] sm:$0xff]
    %v349 = vld [vmem:[#allocation5 + $0x918] sm:$0xff]
    %v350 = vld [vmem:[#allocation5 + $0x920] sm:$0xff]
    %v351 = vld [vmem:[#allocation5 + $0x928] sm:$0xff]
    %v352 = vld [vmem:[#allocation5 + $0x930] sm:$0xff]
    %v353 = vld [vmem:[#allocation5 + $0x938] sm:$0xff]
    %v354 = vld [vmem:[#allocation5 + $0x940] sm:$0xff]
    %v355 = vld [vmem:[#allocation5 + $0x948] sm:$0xff]
    %v356 = vld [vmem:[#allocation5 + $0x950] sm:$0xff]
    %v357 = vld [vmem:[#allocation5 + $0x958] sm:$0xff]
    %v358 = vld [vmem:[#allocation5 + $0x960] sm:$0xff]
    %v359 = vld [vmem:[#allocation5 + $0x968] sm:$0xff]
    %v360 = vld [vmem:[#allocation5 + $0x970] sm:$0xff]
    %v361 = vld [vmem:[#allocation5 + $0x978] sm:$0xff]
    %v362 = vld [vmem:[#allocation5 + $0x980] sm:$0xff]
    %v363 = vld [vmem:[#allocation5 + $0x988] sm:$0xff]
    %v364 = vld [vmem:[#allocation5 + $0x990] sm:$0xff]
    %v365 = vld [vmem:[#allocation5 + $0x998] sm:$0xff]
    %v366 = vld [vmem:[#allocation5 + $0x9a0] sm:$0xff]
    %v367 = vld [vmem:[#allocation5 + $0x9a8] sm:$0xff]
    %v368 = vld [vmem:[#allocation5 + $0x9b0] sm:$0xff]
    %v369 = vld [vmem:[#allocation5 + $0x9b8] sm:$0xff]
    %v370 = vld [vmem:[#allocation5 + $0x9c0] sm:$0xff]
    %v371 = vld [vmem:[#allocation5 + $0x9c8] sm:$0xff]
    %v372 = vld [vmem:[#allocation5 + $0x9d0] sm:$0xff]
    %v373 = vld [vmem:[#allocation5 + $0x9d8] sm:$0xff]
    %v374 = vld [vmem:[#allocation5 + $0x9e0] sm:$0xff]
    %v375 = vld [vmem:[#allocation5 + $0x9e8] sm:$0xff]
    %v376 = vld [vmem:[#allocation5 + $0x9f0] sm:$0xff]
    %v377 = vld [vmem:[#allocation5 + $0x9f8] sm:$0xff]
    %v378 = vld [vmem:[#allocation5 + $0xa00] sm:$0xff]
    %v379 = vld [vmem:[#allocation5 + $0xa08] sm:$0xff]
    %v380 = vld [vmem:[#allocation5 + $0xa10] sm:$0xff]
    %v381 = vld [vmem:[#allocation5 + $0xa18] sm:$0xff]
    %v382 = vld [vmem:[#allocation5 + $0xa20] sm:$0xff]
    %v383 = vld [vmem:[#allocation5 + $0xa28] sm:$0xff]
    %v384 = vld [vmem:[#allocation5 + $0xa30] sm:$0xff]
    %v385 = vld [vmem:[#allocation5 + $0xa38] sm:$0xff]
    %v386 = vld [vmem:[#allocation5 + $0xa40] sm:$0xff]
    %v387 = vld [vmem:[#allocation5 + $0xa48] sm:$0xff]
    %v388 = vld [vmem:[#allocation5 + $0xa50] sm:$0xff]
    %v389 = vld [vmem:[#allocation5 + $0xa58] sm:$0xff]
    %v390 = vld [vmem:[#allocation5 + $0xa60] sm:$0xff]
    %v391 = vld [vmem:[#allocation5 + $0xa68] sm:$0xff]
    %v392 = vld [vmem:[#allocation5 + $0xa70] sm:$0xff]
    %v393 = vld [vmem:[#allocation5 + $0xa78] sm:$0xff]
    %v394 = vld [vmem:[#allocation5 + $0xa80] sm:$0xff]
    %v395 = vld [vmem:[#allocation5 + $0xa88] sm:$0xff]
    %v396 = vld [vmem:[#allocation5 + $0xa90] sm:$0xff]
    %v397 = vld [vmem:[#allocation5 + $0xa98] sm:$0xff]
    %v398 = vld [vmem:[#allocation5 + $0xaa0] sm:$0xff]
    %v399 = vld [vmem:[#allocation5 + $0xaa8] sm:$0xff]
    %v400 = vld [vmem:[#allocation5 + $0xab0] sm:$0xff]
    %v401 = vld [vmem:[#allocation5 + $0xab8] sm:$0xff]
    %v402 = vld [vmem:[#allocation5 + $0xac0] sm:$0xff]
    %v403 = vld [vmem:[#allocation5 + $0xac8] sm:$0xff]
    %v404 = vld [vmem:[#allocation5 + $0xad0] sm:$0xff]
    %v405 = vld [vmem:[#allocation5 + $0xad8] sm:$0xff]
    %v406 = vld [vmem:[#allocation5 + $0xae0] sm:$0xff]
    %v407 = vld [vmem:[#allocation5 + $0xae8] sm:$0xff]
    %v408 = vld [vmem:[#allocation5 + $0xaf0] sm:$0xff]
    %v409 = vld [vmem:[#allocation5 + $0xaf8] sm:$0xff]
    %v410 = vld [vmem:[#allocation5 + $0xb00] sm:$0xff]
    %v411 = vld [vmem:[#allocation5 + $0xb08] sm:$0xff]
    %v412 = vld [vmem:[#allocation5 + $0xb10] sm:$0xff]
    %v413 = vld [vmem:[#allocation5 + $0xb18] sm:$0xff]
    %v414 = vld [vmem:[#allocation5 + $0xb20] sm:$0xff]
    %v415 = vld [vmem:[#allocation5 + $0xb28] sm:$0xff]
    %v416 = vld [vmem:[#allocation5 + $0xb30] sm:$0xff]
    %v417 = vld [vmem:[#allocation5 + $0xb38] sm:$0xff]
    %v418 = vld [vmem:[#allocation5 + $0xb40] sm:$0xff]
    %v419 = vld [vmem:[#allocation5 + $0xb48] sm:$0xff]
    %v420 = vld [vmem:[#allocation5 + $0xb50] sm:$0xff]
    %v421 = vld [vmem:[#allocation5 + $0xb58] sm:$0xff]
    %v422 = vld [vmem:[#allocation5 + $0xb60] sm:$0xff]
    %v423 = vld [vmem:[#allocation5 + $0xb68] sm:$0xff]
    %v424 = vld [vmem:[#allocation5 + $0xb70] sm:$0xff]
    %v425 = vld [vmem:[#allocation5 + $0xb78] sm:$0xff]
    %v426 = vld [vmem:[#allocation5 + $0xb80] sm:$0xff]
    %v427 = vld [vmem:[#allocation5 + $0xb88] sm:$0xff]
    %v428 = vld [vmem:[#allocation5 + $0xb90] sm:$0xff]
    %v429 = vld [vmem:[#allocation5 + $0xb98] sm:$0xff]
    %v430 = vld [vmem:[#allocation5 + $0xba0] sm:$0xff]
    %v431 = vld [vmem:[#allocation5 + $0xba8] sm:$0xff]
    %v432 = vld [vmem:[#allocation5 + $0xbb0] sm:$0xff]
    %v433 = vld [vmem:[#allocation5 + $0xbb8] sm:$0xff]
    %v434 = vld [vmem:[#allocation5 + $0xbc0] sm:$0xff]
    %v435 = vld [vmem:[#allocation5 + $0xbc8] sm:$0xff]
    %v436 = vld [vmem:[#allocation5 + $0xbd0] sm:$0xff]
    %v437 = vld [vmem:[#allocation5 + $0xbd8] sm:$0xff]
    %v438 = vld [vmem:[#allocation5 + $0xbe0] sm:$0xff]
    %v439 = vld [vmem:[#allocation5 + $0xbe8] sm:$0xff]
    %v440 = vld [vmem:[#allocation5 + $0xbf0] sm:$0xff]
    %v441 = vld [vmem:[#allocation5 + $0xbf8] sm:$0xff]
    %v442 = vld [vmem:[#allocation5 + $0xc00] sm:$0xff]
    %v443 = vld [vmem:[#allocation5 + $0xc08] sm:$0xff]
    %v444 = vld [vmem:[#allocation5 + $0xc10] sm:$0xff]
    %v445 = vld [vmem:[#allocation5 + $0xc18] sm:$0xff]
    %v446 = vld [vmem:[#allocation5 + $0xc20] sm:$0xff]
    %v447 = vld [vmem:[#allocation5 + $0xc28] sm:$0xff]
    %v448 = vld [vmem:[#allocation5 + $0xc30] sm:$0xff]
    %v449 = vld [vmem:[#allocation5 + $0xc38] sm:$0xff]
    %v450 = vld [vmem:[#allocation5 + $0xc40] sm:$0xff]
    %v451 = vld [vmem:[#allocation5 + $0xc48] sm:$0xff]
    %v452 = vld [vmem:[#allocation5 + $0xc50] sm:$0xff]
    %v453 = vld [vmem:[#allocation5 + $0xc58] sm:$0xff]
    %v454 = vld [vmem:[#allocation5 + $0xc60] sm:$0xff]
    %v455 = vld [vmem:[#allocation5 + $0xc68] sm:$0xff]
    %v456 = vld [vmem:[#allocation5 + $0xc70] sm:$0xff]
    %v457 = vld [vmem:[#allocation5 + $0xc78] sm:$0xff]
    %v458 = vld [vmem:[#allocation5 + $0xc80] sm:$0xff]
    %v459 = vld [vmem:[#allocation5 + $0xc88] sm:$0xff]
    %v460 = vld [vmem:[#allocation5 + $0xc90] sm:$0xff]
    %v461 = vld [vmem:[#allocation5 + $0xc98] sm:$0xff]
    %v462 = vld [vmem:[#allocation5 + $0xca0] sm:$0xff]
    %v463 = vld [vmem:[#allocation5 + $0xca8] sm:$0xff]
    %v464 = vld [vmem:[#allocation5 + $0xcb0] sm:$0xff]
    %v465 = vld [vmem:[#allocation5 + $0xcb8] sm:$0xff]
    %v466 = vld [vmem:[#allocation5 + $0xcc0] sm:$0xff]
    %v467 = vld [vmem:[#allocation5 + $0xcc8] sm:$0xff]
    %v468 = vld [vmem:[#allocation5 + $0xcd0] sm:$0xff]
    %v469 = vld [vmem:[#allocation5 + $0xcd8] sm:$0xff]
    %v470 = vld [vmem:[#allocation5 + $0xce0] sm:$0xff]
    %v471 = vld [vmem:[#allocation5 + $0xce8] sm:$0xff]
    %v472 = vld [vmem:[#allocation5 + $0xcf0] sm:$0xff]
    %v473 = vld [vmem:[#allocation5 + $0xcf8] sm:$0xff]
    %v474 = vld [vmem:[#allocation5 + $0xd00] sm:$0xff]
    %v475 = vld [vmem:[#allocation5 + $0xd08] sm:$0xff]
    %v476 = vld [vmem:[#allocation5 + $0xd10] sm:$0xff]
    %v477 = vld [vmem:[#allocation5 + $0xd18] sm:$0xff]
    %v478 = vld [vmem:[#allocation5 + $0xd20] sm:$0xff]
    %v479 = vld [vmem:[#allocation5 + $0xd28] sm:$0xff]
    %v480 = vld [vmem:[#allocation5 + $0xd30] sm:$0xff]
    %v481 = vld [vmem:[#allocation5 + $0xd38] sm:$0xff]
    %v482 = vld [vmem:[#allocation5 + $0xd40] sm:$0xff]
    %v483 = vld [vmem:[#allocation5 + $0xd48] sm:$0xff]
    %v484 = vld [vmem:[#allocation5 + $0xd50] sm:$0xff]
    %v485 = vld [vmem:[#allocation5 + $0xd58] sm:$0xff]
    %v486 = vld [vmem:[#allocation5 + $0xd60] sm:$0xff]
    %v487 = vld [vmem:[#allocation5 + $0xd68] sm:$0xff]
    %v488 = vld [vmem:[#allocation5 + $0xd70] sm:$0xff]
    %v489 = vld [vmem:[#allocation5 + $0xd78] sm:$0xff]
    %v490 = vld [vmem:[#allocation5 + $0xd80] sm:$0xff]
    %v491 = vld [vmem:[#allocation5 + $0xd88] sm:$0xff]
    %v492 = vld [vmem:[#allocation5 + $0xd90] sm:$0xff]
    %v493 = vld [vmem:[#allocation5 + $0xd98] sm:$0xff]
    %v494 = vld [vmem:[#allocation5 + $0xda0] sm:$0xff]
    %v495 = vld [vmem:[#allocation5 + $0xda8] sm:$0xff]
    %v496 = vld [vmem:[#allocation5 + $0xdb0] sm:$0xff]
    %v497 = vld [vmem:[#allocation5 + $0xdb8] sm:$0xff]
    %v498 = vld [vmem:[#allocation5 + $0xdc0] sm:$0xff]
    %v499 = vld [vmem:[#allocation5 + $0xdc8] sm:$0xff]
    %v500 = vld [vmem:[#allocation5 + $0xdd0] sm:$0xff]
    %v501 = vld [vmem:[#allocation5 + $0xdd8] sm:$0xff]
    %v502 = vld [vmem:[#allocation5 + $0xde0] sm:$0xff]
    %v503 = vld [vmem:[#allocation5 + $0xde8] sm:$0xff]
    %v504 = vld [vmem:[#allocation5 + $0xdf0] sm:$0xff]
    %v505 = vld [vmem:[#allocation5 + $0xdf8] sm:$0xff]
    %v506 = vld [vmem:[#allocation5 + $0xe00] sm:$0xff]
    %v507 = vld [vmem:[#allocation5 + $0xe08] sm:$0xff]
    %v508 = vld [vmem:[#allocation5 + $0xe10] sm:$0xff]
    %v509 = vld [vmem:[#allocation5 + $0xe18] sm:$0xff]
    %v510 = vld [vmem:[#allocation5 + $0xe20] sm:$0xff]
    %v511 = vld [vmem:[#allocation5 + $0xe28] sm:$0xff]
    %v512 = vld [vmem:[#allocation5 + $0xe30] sm:$0xff]
    %v513 = vld [vmem:[#allocation5 + $0xe38] sm:$0xff]
    %v514 = vld [vmem:[#allocation5 + $0xe40] sm:$0xff]
    %v515 = vld [vmem:[#allocation5 + $0xe48] sm:$0xff]
    %v516 = vld [vmem:[#allocation5 + $0xe50] sm:$0xff]
    %v517 = vld [vmem:[#allocation5 + $0xe58] sm:$0xff]
    %v518 = vld [vmem:[#allocation5 + $0xe60] sm:$0xff]
    %v519 = vld [vmem:[#allocation5 + $0xe68] sm:$0xff]
    %v520 = vld [vmem:[#allocation5 + $0xe70] sm:$0xff]
    %v521 = vld [vmem:[#allocation5 + $0xe78] sm:$0xff]
    %v522 = vld [vmem:[#allocation5 + $0xe80] sm:$0xff]
    %v523 = vld [vmem:[#allocation5 + $0xe88] sm:$0xff]
    %v524 = vld [vmem:[#allocation5 + $0xe90] sm:$0xff]
    %v525 = vld [vmem:[#allocation5 + $0xe98] sm:$0xff]
    %v526 = vld [vmem:[#allocation5 + $0xea0] sm:$0xff]
    %v527 = vld [vmem:[#allocation5 + $0xea8] sm:$0xff]
    %v528 = vld [vmem:[#allocation5 + $0xeb0] sm:$0xff]
    %v529 = vld [vmem:[#allocation5 + $0xeb8] sm:$0xff]
    %v530 = vld [vmem:[#allocation5 + $0xec0] sm:$0xff]
    %v531 = vld [vmem:[#allocation5 + $0xec8] sm:$0xff]
    %v532 = vld [vmem:[#allocation5 + $0xed0] sm:$0xff]
    %v533 = vld [vmem:[#allocation5 + $0xed8] sm:$0xff]
    %v534 = vld [vmem:[#allocation5 + $0xee0] sm:$0xff]
    %v535 = vld [vmem:[#allocation5 + $0xee8] sm:$0xff]
    %v536 = vld [vmem:[#allocation5 + $0xef0] sm:$0xff]
    %v537 = vld [vmem:[#allocation5 + $0xef8] sm:$0xff]
    %v538 = vld [vmem:[#allocation5 + $0xf00] sm:$0xff]
    %v539 = vld [vmem:[#allocation5 + $0xf08] sm:$0xff]
    %v540 = vld [vmem:[#allocation5 + $0xf10] sm:$0xff]
    %v541 = vld [vmem:[#allocation5 + $0xf18] sm:$0xff]
    %v542 = vld [vmem:[#allocation5 + $0xf20] sm:$0xff]
    %v543 = vld [vmem:[#allocation5 + $0xf28] sm:$0xff]
    %v544 = vld [vmem:[#allocation5 + $0xf30] sm:$0xff]
    %v545 = vld [vmem:[#allocation5 + $0xf38] sm:$0xff]
    %v546 = vld [vmem:[#allocation5 + $0xf40] sm:$0xff]
    %v547 = vld [vmem:[#allocation5 + $0xf48] sm:$0xff]
    %v548 = vld [vmem:[#allocation5 + $0xf50] sm:$0xff]
    %v549 = vld [vmem:[#allocation5 + $0xf58] sm:$0xff]
    %v550 = vld [vmem:[#allocation5 + $0xf60] sm:$0xff]
    %v551 = vld [vmem:[#allocation5 + $0xf68] sm:$0xff]
    %v552 = vld [vmem:[#allocation5 + $0xf70] sm:$0xff]
    %v553 = vld [vmem:[#allocation5 + $0xf78] sm:$0xff]
    %v554 = vld [vmem:[#allocation5 + $0xf80] sm:$0xff]
    %v555 = vld [vmem:[#allocation5 + $0xf88] sm:$0xff]
    %v556 = vld [vmem:[#allocation5 + $0xf90] sm:$0xff]
    %v557 = vld [vmem:[#allocation5 + $0xf98] sm:$0xff]
    %v558 = vld [vmem:[#allocation5 + $0xfa0] sm:$0xff]
    %v559 = vld [vmem:[#allocation5 + $0xfa8] sm:$0xff]
    %v560 = vld [vmem:[#allocation5 + $0xfb0] sm:$0xff]
    %v561 = vld [vmem:[#allocation5 + $0xfb8] sm:$0xff]
    %v562 = vld [vmem:[#allocation5 + $0xfc0] sm:$0xff]
    %v563 = vld [vmem:[#allocation5 + $0xfc8] sm:$0xff]
    %v564 = vld [vmem:[#allocation5 + $0xfd0] sm:$0xff]
    %v565 = vld [vmem:[#allocation5 + $0xfd8] sm:$0xff]
    %v566 = vld [vmem:[#allocation5 + $0xfe0] sm:$0xff]
    %v567 = vld [vmem:[#allocation5 + $0xfe8] sm:$0xff]
    %v568 = vld [vmem:[#allocation5 + $0xff0] sm:$0xff]
    %v569 = vld [vmem:[#allocation5 + $0xff8] sm:$0xff]
    %v574 = vunpack.c.l.b16 %v54
    %v575 = vunpack.c.h.b16 %v54
    %v576 = vunpack.c.l.b16 %v55
    %v577 = vunpack.c.h.b16 %v55
    %v578 = vunpack.c.l.b16 %v56
    %v579 = vunpack.c.h.b16 %v56
    %v580 = vunpack.c.l.b16 %v57
    %v581 = vunpack.c.h.b16 %v57
    %v582 = vpack.c.b16 %v574, %v574
    %v583 = vpack.c.b16 %v575, %v575
    %v584 = vpack.c.b16 %v576, %v576
    %v585 = vpack.c.b16 %v577, %v577
    %v586 = vpack.c.b16 %v578, %v578
    %v587 = vpack.c.b16 %v579, %v579
    %v588 = vpack.c.b16 %v580, %v580
    %v589 = vpack.c.b16 %v581, %v581
    %v1110 = vunpack.c.l.b16 %v58
    %v1111 = vunpack.c.h.b16 %v58
    %v1112 = vunpack.c.l.b16 %v59
    %v1113 = vunpack.c.h.b16 %v59
    %v1114 = vunpack.c.l.b16 %v60
    %v1115 = vunpack.c.h.b16 %v60
    %v1116 = vunpack.c.l.b16 %v61
    %v1117 = vunpack.c.h.b16 %v61
    %v1118 = vunpack.c.l.b16 %v62
    %v1119 = vunpack.c.h.b16 %v62
    %v1120 = vunpack.c.l.b16 %v63
    %v1121 = vunpack.c.h.b16 %v63
    %v1122 = vunpack.c.l.b16 %v64
    %v1123 = vunpack.c.h.b16 %v64
    %v1124 = vunpack.c.l.b16 %v65
    %v1125 = vunpack.c.h.b16 %v65
    %v1126 = vunpack.c.l.b16 %v66
    %v1127 = vunpack.c.h.b16 %v66
    %v1128 = vunpack.c.l.b16 %v67
    %v1129 = vunpack.c.h.b16 %v67
    %v1130 = vunpack.c.l.b16 %v68
    %v1131 = vunpack.c.h.b16 %v68
    %v1132 = vunpack.c.l.b16 %v69
    %v1133 = vunpack.c.h.b16 %v69
    %v1134 = vunpack.c.l.b16 %v70
    %v1135 = vunpack.c.h.b16 %v70
    %v1136 = vunpack.c.l.b16 %v71
    %v1137 = vunpack.c.h.b16 %v71
    %v1138 = vunpack.c.l.b16 %v72
    %v1139 = vunpack.c.h.b16 %v72
    %v1140 = vunpack.c.l.b16 %v73
    %v1141 = vunpack.c.h.b16 %v73
    %v1142 = vunpack.c.l.b16 %v74
    %v1143 = vunpack.c.h.b16 %v74
    %v1144 = vunpack.c.l.b16 %v75
    %v1145 = vunpack.c.h.b16 %v75
    %v1146 = vunpack.c.l.b16 %v76
    %v1147 = vunpack.c.h.b16 %v76
    %v1148 = vunpack.c.l.b16 %v77
    %v1149 = vunpack.c.h.b16 %v77
    %v1150 = vunpack.c.l.b16 %v78
    %v1151 = vunpack.c.h.b16 %v78
    %v1152 = vunpack.c.l.b16 %v79
    %v1153 = vunpack.c.h.b16 %v79
    %v1154 = vunpack.c.l.b16 %v80
    %v1155 = vunpack.c.h.b16 %v80
    %v1156 = vunpack.c.l.b16 %v81
    %v1157 = vunpack.c.h.b16 %v81
    %v1158 = vunpack.c.l.b16 %v82
    %v1159 = vunpack.c.h.b16 %v82
    %v1160 = vunpack.c.l.b16 %v83
    %v1161 = vunpack.c.h.b16 %v83
    %v1162 = vunpack.c.l.b16 %v84
    %v1163 = vunpack.c.h.b16 %v84
    %v1164 = vunpack.c.l.b16 %v85
    %v1165 = vunpack.c.h.b16 %v85
    %v1166 = vunpack.c.l.b16 %v86
    %v1167 = vunpack.c.h.b16 %v86
    %v1168 = vunpack.c.l.b16 %v87
    %v1169 = vunpack.c.h.b16 %v87
    %v1170 = vunpack.c.l.b16 %v88
    %v1171 = vunpack.c.h.b16 %v88
    %v1172 = vunpack.c.l.b16 %v89
    %v1173 = vunpack.c.h.b16 %v89
    %v1174 = vunpack.c.l.b16 %v90
    %v1175 = vunpack.c.h.b16 %v90
    %v1176 = vunpack.c.l.b16 %v91
    %v1177 = vunpack.c.h.b16 %v91
    %v1178 = vunpack.c.l.b16 %v92
    %v1179 = vunpack.c.h.b16 %v92
    %v1180 = vunpack.c.l.b16 %v93
    %v1181 = vunpack.c.h.b16 %v93
    %v1182 = vunpack.c.l.b16 %v94
    %v1183 = vunpack.c.h.b16 %v94
    %v1184 = vunpack.c.l.b16 %v95
    %v1185 = vunpack.c.h.b16 %v95
    %v1186 = vunpack.c.l.b16 %v96
    %v1187 = vunpack.c.h.b16 %v96
    %v1188 = vunpack.c.l.b16 %v97
    %v1189 = vunpack.c.h.b16 %v97
    %v1190 = vunpack.c.l.b16 %v98
    %v1191 = vunpack.c.h.b16 %v98
    %v1192 = vunpack.c.l.b16 %v99
    %v1193 = vunpack.c.h.b16 %v99
    %v1194 = vunpack.c.l.b16 %v100
    %v1195 = vunpack.c.h.b16 %v100
    %v1196 = vunpack.c.l.b16 %v101
    %v1197 = vunpack.c.h.b16 %v101
    %v1198 = vunpack.c.l.b16 %v102
    %v1199 = vunpack.c.h.b16 %v102
    %v1200 = vunpack.c.l.b16 %v103
    %v1201 = vunpack.c.h.b16 %v103
    %v1202 = vunpack.c.l.b16 %v104
    %v1203 = vunpack.c.h.b16 %v104
    %v1204 = vunpack.c.l.b16 %v105
    %v1205 = vunpack.c.h.b16 %v105
    %v1206 = vunpack.c.l.b16 %v106
    %v1207 = vunpack.c.h.b16 %v106
    %v1208 = vunpack.c.l.b16 %v107
    %v1209 = vunpack.c.h.b16 %v107
    %v1210 = vunpack.c.l.b16 %v108
    %v1211 = vunpack.c.h.b16 %v108
    %v1212 = vunpack.c.l.b16 %v109
    %v1213 = vunpack.c.h.b16 %v109
    %v1214 = vunpack.c.l.b16 %v110
    %v1215 = vunpack.c.h.b16 %v110
    %v1216 = vunpack.c.l.b16 %v111
    %v1217 = vunpack.c.h.b16 %v111
    %v1218 = vunpack.c.l.b16 %v112
    %v1219 = vunpack.c.h.b16 %v112
    %v1220 = vunpack.c.l.b16 %v113
    %v1221 = vunpack.c.h.b16 %v113
    %v1222 = vunpack.c.l.b16 %v114
    %v1223 = vunpack.c.h.b16 %v114
    %v1224 = vunpack.c.l.b16 %v115
    %v1225 = vunpack.c.h.b16 %v115
    %v1226 = vunpack.c.l.b16 %v116
    %v1227 = vunpack.c.h.b16 %v116
    %v1228 = vunpack.c.l.b16 %v117
    %v1229 = vunpack.c.h.b16 %v117
    %v1230 = vunpack.c.l.b16 %v118
    %v1231 = vunpack.c.h.b16 %v118
    %v1232 = vunpack.c.l.b16 %v119
    %v1233 = vunpack.c.h.b16 %v119
    %v1234 = vunpack.c.l.b16 %v120
    %v1235 = vunpack.c.h.b16 %v120
    %v1236 = vunpack.c.l.b16 %v121
    %v1237 = vunpack.c.h.b16 %v121
    %v1238 = vunpack.c.l.b16 %v122
    %v1239 = vunpack.c.h.b16 %v122
    %v1240 = vunpack.c.l.b16 %v123
    %v1241 = vunpack.c.h.b16 %v123
    %v1242 = vunpack.c.l.b16 %v124
    %v1243 = vunpack.c.h.b16 %v124
    %v1244 = vunpack.c.l.b16 %v125
    %v1245 = vunpack.c.h.b16 %v125
    %v1246 = vunpack.c.l.b16 %v126
    %v1247 = vunpack.c.h.b16 %v126
    %v1248 = vunpack.c.l.b16 %v127
    %v1249 = vunpack.c.h.b16 %v127
    %v1250 = vunpack.c.l.b16 %v128
    %v1251 = vunpack.c.h.b16 %v128
    %v1252 = vunpack.c.l.b16 %v129
    %v1253 = vunpack.c.h.b16 %v129
    %v1254 = vunpack.c.l.b16 %v130
    %v1255 = vunpack.c.h.b16 %v130
    %v1256 = vunpack.c.l.b16 %v131
    %v1257 = vunpack.c.h.b16 %v131
    %v1258 = vunpack.c.l.b16 %v132
    %v1259 = vunpack.c.h.b16 %v132
    %v1260 = vunpack.c.l.b16 %v133
    %v1261 = vunpack.c.h.b16 %v133
    %v1262 = vunpack.c.l.b16 %v134
    %v1263 = vunpack.c.h.b16 %v134
    %v1264 = vunpack.c.l.b16 %v135
    %v1265 = vunpack.c.h.b16 %v135
    %v1266 = vunpack.c.l.b16 %v136
    %v1267 = vunpack.c.h.b16 %v136
    %v1268 = vunpack.c.l.b16 %v137
    %v1269 = vunpack.c.h.b16 %v137
    %v1270 = vunpack.c.l.b16 %v138
    %v1271 = vunpack.c.h.b16 %v138
    %v1272 = vunpack.c.l.b16 %v139
    %v1273 = vunpack.c.h.b16 %v139
    %v1274 = vunpack.c.l.b16 %v140
    %v1275 = vunpack.c.h.b16 %v140
    %v1276 = vunpack.c.l.b16 %v141
    %v1277 = vunpack.c.h.b16 %v141
    %v1278 = vunpack.c.l.b16 %v142
    %v1279 = vunpack.c.h.b16 %v142
    %v1280 = vunpack.c.l.b16 %v143
    %v1281 = vunpack.c.h.b16 %v143
    %v1282 = vunpack.c.l.b16 %v144
    %v1283 = vunpack.c.h.b16 %v144
    %v1284 = vunpack.c.l.b16 %v145
    %v1285 = vunpack.c.h.b16 %v145
    %v1286 = vunpack.c.l.b16 %v146
    %v1287 = vunpack.c.h.b16 %v146
    %v1288 = vunpack.c.l.b16 %v147
    %v1289 = vunpack.c.h.b16 %v147
    %v1290 = vunpack.c.l.b16 %v148
    %v1291 = vunpack.c.h.b16 %v148
    %v1292 = vunpack.c.l.b16 %v149
    %v1293 = vunpack.c.h.b16 %v149
    %v1294 = vunpack.c.l.b16 %v150
    %v1295 = vunpack.c.h.b16 %v150
    %v1296 = vunpack.c.l.b16 %v151
    %v1297 = vunpack.c.h.b16 %v151
    %v1298 = vunpack.c.l.b16 %v152
    %v1299 = vunpack.c.h.b16 %v152
    %v1300 = vunpack.c.l.b16 %v153
    %v1301 = vunpack.c.h.b16 %v153
    %v1302 = vunpack.c.l.b16 %v154
    %v1303 = vunpack.c.h.b16 %v154
    %v1304 = vunpack.c.l.b16 %v155
    %v1305 = vunpack.c.h.b16 %v155
    %v1306 = vunpack.c.l.b16 %v156
    %v1307 = vunpack.c.h.b16 %v156
    %v1308 = vunpack.c.l.b16 %v157
    %v1309 = vunpack.c.h.b16 %v157
    %v1310 = vunpack.c.l.b16 %v158
    %v1311 = vunpack.c.h.b16 %v158
    %v1312 = vunpack.c.l.b16 %v159
    %v1313 = vunpack.c.h.b16 %v159
    %v1314 = vunpack.c.l.b16 %v160
    %v1315 = vunpack.c.h.b16 %v160
    %v1316 = vunpack.c.l.b16 %v161
    %v1317 = vunpack.c.h.b16 %v161
    %v1318 = vunpack.c.l.b16 %v162
    %v1319 = vunpack.c.h.b16 %v162
    %v1320 = vunpack.c.l.b16 %v163
    %v1321 = vunpack.c.h.b16 %v163
    %v1322 = vunpack.c.l.b16 %v164
    %v1323 = vunpack.c.h.b16 %v164
    %v1324 = vunpack.c.l.b16 %v165
    %v1325 = vunpack.c.h.b16 %v165
    %v1326 = vunpack.c.l.b16 %v166
    %v1327 = vunpack.c.h.b16 %v166
    %v1328 = vunpack.c.l.b16 %v167
    %v1329 = vunpack.c.h.b16 %v167
    %v1330 = vunpack.c.l.b16 %v168
    %v1331 = vunpack.c.h.b16 %v168
    %v1332 = vunpack.c.l.b16 %v169
    %v1333 = vunpack.c.h.b16 %v169
    %v1334 = vunpack.c.l.b16 %v170
    %v1335 = vunpack.c.h.b16 %v170
    %v1336 = vunpack.c.l.b16 %v171
    %v1337 = vunpack.c.h.b16 %v171
    %v1338 = vunpack.c.l.b16 %v172
    %v1339 = vunpack.c.h.b16 %v172
    %v1340 = vunpack.c.l.b16 %v173
    %v1341 = vunpack.c.h.b16 %v173
    %v1342 = vunpack.c.l.b16 %v174
    %v1343 = vunpack.c.h.b16 %v174
    %v1344 = vunpack.c.l.b16 %v175
    %v1345 = vunpack.c.h.b16 %v175
    %v1346 = vunpack.c.l.b16 %v176
    %v1347 = vunpack.c.h.b16 %v176
    %v1348 = vunpack.c.l.b16 %v177
    %v1349 = vunpack.c.h.b16 %v177
    %v1350 = vunpack.c.l.b16 %v178
    %v1351 = vunpack.c.h.b16 %v178
    %v1352 = vunpack.c.l.b16 %v179
    %v1353 = vunpack.c.h.b16 %v179
    %v1354 = vunpack.c.l.b16 %v180
    %v1355 = vunpack.c.h.b16 %v180
    %v1356 = vunpack.c.l.b16 %v181
    %v1357 = vunpack.c.h.b16 %v181
    %v1358 = vunpack.c.l.b16 %v182
    %v1359 = vunpack.c.h.b16 %v182
    %v1360 = vunpack.c.l.b16 %v183
    %v1361 = vunpack.c.h.b16 %v183
    %v1362 = vunpack.c.l.b16 %v184
    %v1363 = vunpack.c.h.b16 %v184
    %v1364 = vunpack.c.l.b16 %v185
    %v1365 = vunpack.c.h.b16 %v185
    %v1366 = vunpack.c.l.b16 %v186
    %v1367 = vunpack.c.h.b16 %v186
    %v1368 = vunpack.c.l.b16 %v187
    %v1369 = vunpack.c.h.b16 %v187
    %v1370 = vunpack.c.l.b16 %v188
    %v1371 = vunpack.c.h.b16 %v188
    %v1372 = vunpack.c.l.b16 %v189
    %v1373 = vunpack.c.h.b16 %v189
    %v1374 = vunpack.c.l.b16 %v190
    %v1375 = vunpack.c.h.b16 %v190
    %v1376 = vunpack.c.l.b16 %v191
    %v1377 = vunpack.c.h.b16 %v191
    %v1378 = vunpack.c.l.b16 %v192
    %v1379 = vunpack.c.h.b16 %v192
    %v1380 = vunpack.c.l.b16 %v193
    %v1381 = vunpack.c.h.b16 %v193
    %v1382 = vunpack.c.l.b16 %v194
    %v1383 = vunpack.c.h.b16 %v194
    %v1384 = vunpack.c.l.b16 %v195
    %v1385 = vunpack.c.h.b16 %v195
    %v1386 = vunpack.c.l.b16 %v196
    %v1387 = vunpack.c.h.b16 %v196
    %v1388 = vunpack.c.l.b16 %v197
    %v1389 = vunpack.c.h.b16 %v197
    %v1390 = vunpack.c.l.b16 %v198
    %v1391 = vunpack.c.h.b16 %v198
    %v1392 = vunpack.c.l.b16 %v199
    %v1393 = vunpack.c.h.b16 %v199
    %v1394 = vunpack.c.l.b16 %v200
    %v1395 = vunpack.c.h.b16 %v200
    %v1396 = vunpack.c.l.b16 %v201
    %v1397 = vunpack.c.h.b16 %v201
    %v1398 = vunpack.c.l.b16 %v202
    %v1399 = vunpack.c.h.b16 %v202
    %v1400 = vunpack.c.l.b16 %v203
    %v1401 = vunpack.c.h.b16 %v203
    %v1402 = vunpack.c.l.b16 %v204
    %v1403 = vunpack.c.h.b16 %v204
    %v1404 = vunpack.c.l.b16 %v205
    %v1405 = vunpack.c.h.b16 %v205
    %v1406 = vunpack.c.l.b16 %v206
    %v1407 = vunpack.c.h.b16 %v206
    %v1408 = vunpack.c.l.b16 %v207
    %v1409 = vunpack.c.h.b16 %v207
    %v1410 = vunpack.c.l.b16 %v208
    %v1411 = vunpack.c.h.b16 %v208
    %v1412 = vunpack.c.l.b16 %v209
    %v1413 = vunpack.c.h.b16 %v209
    %v1414 = vunpack.c.l.b16 %v210
    %v1415 = vunpack.c.h.b16 %v210
    %v1416 = vunpack.c.l.b16 %v211
    %v1417 = vunpack.c.h.b16 %v211
    %v1418 = vunpack.c.l.b16 %v212
    %v1419 = vunpack.c.h.b16 %v212
    %v1420 = vunpack.c.l.b16 %v213
    %v1421 = vunpack.c.h.b16 %v213
    %v1422 = vunpack.c.l.b16 %v214
    %v1423 = vunpack.c.h.b16 %v214
    %v1424 = vunpack.c.l.b16 %v215
    %v1425 = vunpack.c.h.b16 %v215
    %v1426 = vunpack.c.l.b16 %v216
    %v1427 = vunpack.c.h.b16 %v216
    %v1428 = vunpack.c.l.b16 %v217
    %v1429 = vunpack.c.h.b16 %v217
    %v1430 = vunpack.c.l.b16 %v218
    %v1431 = vunpack.c.h.b16 %v218
    %v1432 = vunpack.c.l.b16 %v219
    %v1433 = vunpack.c.h.b16 %v219
    %v1434 = vunpack.c.l.b16 %v220
    %v1435 = vunpack.c.h.b16 %v220
    %v1436 = vunpack.c.l.b16 %v221
    %v1437 = vunpack.c.h.b16 %v221
    %v1438 = vunpack.c.l.b16 %v222
    %v1439 = vunpack.c.h.b16 %v222
    %v1440 = vunpack.c.l.b16 %v223
    %v1441 = vunpack.c.h.b16 %v223
    %v1442 = vunpack.c.l.b16 %v224
    %v1443 = vunpack.c.h.b16 %v224
    %v1444 = vunpack.c.l.b16 %v225
    %v1445 = vunpack.c.h.b16 %v225
    %v1446 = vunpack.c.l.b16 %v226
    %v1447 = vunpack.c.h.b16 %v226
    %v1448 = vunpack.c.l.b16 %v227
    %v1449 = vunpack.c.h.b16 %v227
    %v1450 = vunpack.c.l.b16 %v228
    %v1451 = vunpack.c.h.b16 %v228
    %v1452 = vunpack.c.l.b16 %v229
    %v1453 = vunpack.c.h.b16 %v229
    %v1454 = vunpack.c.l.b16 %v230
    %v1455 = vunpack.c.h.b16 %v230
    %v1456 = vunpack.c.l.b16 %v231
    %v1457 = vunpack.c.h.b16 %v231
    %v1458 = vunpack.c.l.b16 %v232
    %v1459 = vunpack.c.h.b16 %v232
    %v1460 = vunpack.c.l.b16 %v233
    %v1461 = vunpack.c.h.b16 %v233
    %v1462 = vunpack.c.l.b16 %v234
    %v1463 = vunpack.c.h.b16 %v234
    %v1464 = vunpack.c.l.b16 %v235
    %v1465 = vunpack.c.h.b16 %v235
    %v1466 = vunpack.c.l.b16 %v236
    %v1467 = vunpack.c.h.b16 %v236
    %v1468 = vunpack.c.l.b16 %v237
    %v1469 = vunpack.c.h.b16 %v237
    %v1470 = vunpack.c.l.b16 %v238
    %v1471 = vunpack.c.h.b16 %v238
    %v1472 = vunpack.c.l.b16 %v239
    %v1473 = vunpack.c.h.b16 %v239
    %v1474 = vunpack.c.l.b16 %v240
    %v1475 = vunpack.c.h.b16 %v240
    %v1476 = vunpack.c.l.b16 %v241
    %v1477 = vunpack.c.h.b16 %v241
    %v1478 = vunpack.c.l.b16 %v242
    %v1479 = vunpack.c.h.b16 %v242
    %v1480 = vunpack.c.l.b16 %v243
    %v1481 = vunpack.c.h.b16 %v243
    %v1482 = vunpack.c.l.b16 %v244
    %v1483 = vunpack.c.h.b16 %v244
    %v1484 = vunpack.c.l.b16 %v245
    %v1485 = vunpack.c.h.b16 %v245
    %v1486 = vunpack.c.l.b16 %v246
    %v1487 = vunpack.c.h.b16 %v246
    %v1488 = vunpack.c.l.b16 %v247
    %v1489 = vunpack.c.h.b16 %v247
    %v1490 = vunpack.c.l.b16 %v248
    %v1491 = vunpack.c.h.b16 %v248
    %v1492 = vunpack.c.l.b16 %v249
    %v1493 = vunpack.c.h.b16 %v249
    %v1494 = vunpack.c.l.b16 %v250
    %v1495 = vunpack.c.h.b16 %v250
    %v1496 = vunpack.c.l.b16 %v251
    %v1497 = vunpack.c.h.b16 %v251
    %v1498 = vunpack.c.l.b16 %v252
    %v1499 = vunpack.c.h.b16 %v252
    %v1500 = vunpack.c.l.b16 %v253
    %v1501 = vunpack.c.h.b16 %v253
    %v1502 = vunpack.c.l.b16 %v254
    %v1503 = vunpack.c.h.b16 %v254
    %v1504 = vunpack.c.l.b16 %v255
    %v1505 = vunpack.c.h.b16 %v255
    %v1506 = vunpack.c.l.b16 %v256
    %v1507 = vunpack.c.h.b16 %v256
    %v1508 = vunpack.c.l.b16 %v257
    %v1509 = vunpack.c.h.b16 %v257
    %v1510 = vunpack.c.l.b16 %v258
    %v1511 = vunpack.c.h.b16 %v258
    %v1512 = vunpack.c.l.b16 %v259
    %v1513 = vunpack.c.h.b16 %v259
    %v1514 = vunpack.c.l.b16 %v260
    %v1515 = vunpack.c.h.b16 %v260
    %v1516 = vunpack.c.l.b16 %v261
    %v1517 = vunpack.c.h.b16 %v261
    %v1518 = vunpack.c.l.b16 %v262
    %v1519 = vunpack.c.h.b16 %v262
    %v1520 = vunpack.c.l.b16 %v263
    %v1521 = vunpack.c.h.b16 %v263
    %v1522 = vunpack.c.l.b16 %v264
    %v1523 = vunpack.c.h.b16 %v264
    %v1524 = vunpack.c.l.b16 %v265
    %v1525 = vunpack.c.h.b16 %v265
    %v1526 = vunpack.c.l.b16 %v266
    %v1527 = vunpack.c.h.b16 %v266
    %v1528 = vunpack.c.l.b16 %v267
    %v1529 = vunpack.c.h.b16 %v267
    %v1530 = vunpack.c.l.b16 %v268
    %v1531 = vunpack.c.h.b16 %v268
    %v1532 = vunpack.c.l.b16 %v269
    %v1533 = vunpack.c.h.b16 %v269
    %v1534 = vunpack.c.l.b16 %v270
    %v1535 = vunpack.c.h.b16 %v270
    %v1536 = vunpack.c.l.b16 %v271
    %v1537 = vunpack.c.h.b16 %v271
    %v1538 = vunpack.c.l.b16 %v272
    %v1539 = vunpack.c.h.b16 %v272
    %v1540 = vunpack.c.l.b16 %v273
    %v1541 = vunpack.c.h.b16 %v273
    %v1542 = vunpack.c.l.b16 %v274
    %v1543 = vunpack.c.h.b16 %v274
    %v1544 = vunpack.c.l.b16 %v275
    %v1545 = vunpack.c.h.b16 %v275
    %v1546 = vunpack.c.l.b16 %v276
    %v1547 = vunpack.c.h.b16 %v276
    %v1548 = vunpack.c.l.b16 %v277
    %v1549 = vunpack.c.h.b16 %v277
    %v1550 = vunpack.c.l.b16 %v278
    %v1551 = vunpack.c.h.b16 %v278
    %v1552 = vunpack.c.l.b16 %v279
    %v1553 = vunpack.c.h.b16 %v279
    %v1554 = vunpack.c.l.b16 %v280
    %v1555 = vunpack.c.h.b16 %v280
    %v1556 = vunpack.c.l.b16 %v281
    %v1557 = vunpack.c.h.b16 %v281
    %v1558 = vunpack.c.l.b16 %v282
    %v1559 = vunpack.c.h.b16 %v282
    %v1560 = vunpack.c.l.b16 %v283
    %v1561 = vunpack.c.h.b16 %v283
    %v1562 = vunpack.c.l.b16 %v284
    %v1563 = vunpack.c.h.b16 %v284
    %v1564 = vunpack.c.l.b16 %v285
    %v1565 = vunpack.c.h.b16 %v285
    %v1566 = vunpack.c.l.b16 %v286
    %v1567 = vunpack.c.h.b16 %v286
    %v1568 = vunpack.c.l.b16 %v287
    %v1569 = vunpack.c.h.b16 %v287
    %v1570 = vunpack.c.l.b16 %v288
    %v1571 = vunpack.c.h.b16 %v288
    %v1572 = vunpack.c.l.b16 %v289
    %v1573 = vunpack.c.h.b16 %v289
    %v1574 = vunpack.c.l.b16 %v290
    %v1575 = vunpack.c.h.b16 %v290
    %v1576 = vunpack.c.l.b16 %v291
    %v1577 = vunpack.c.h.b16 %v291
    %v1578 = vunpack.c.l.b16 %v292
    %v1579 = vunpack.c.h.b16 %v292
    %v1580 = vunpack.c.l.b16 %v293
    %v1581 = vunpack.c.h.b16 %v293
    %v1582 = vunpack.c.l.b16 %v294
    %v1583 = vunpack.c.h.b16 %v294
    %v1584 = vunpack.c.l.b16 %v295
    %v1585 = vunpack.c.h.b16 %v295
    %v1586 = vunpack.c.l.b16 %v296
    %v1587 = vunpack.c.h.b16 %v296
    %v1588 = vunpack.c.l.b16 %v297
    %v1589 = vunpack.c.h.b16 %v297
    %v1590 = vunpack.c.l.b16 %v298
    %v1591 = vunpack.c.h.b16 %v298
    %v1592 = vunpack.c.l.b16 %v299
    %v1593 = vunpack.c.h.b16 %v299
    %v1594 = vunpack.c.l.b16 %v300
    %v1595 = vunpack.c.h.b16 %v300
    %v1596 = vunpack.c.l.b16 %v301
    %v1597 = vunpack.c.h.b16 %v301
    %v1598 = vunpack.c.l.b16 %v302
    %v1599 = vunpack.c.h.b16 %v302
    %v1600 = vunpack.c.l.b16 %v303
    %v1601 = vunpack.c.h.b16 %v303
    %v1602 = vunpack.c.l.b16 %v304
    %v1603 = vunpack.c.h.b16 %v304
    %v1604 = vunpack.c.l.b16 %v305
    %v1605 = vunpack.c.h.b16 %v305
    %v1606 = vunpack.c.l.b16 %v306
    %v1607 = vunpack.c.h.b16 %v306
    %v1608 = vunpack.c.l.b16 %v307
    %v1609 = vunpack.c.h.b16 %v307
    %v1610 = vunpack.c.l.b16 %v308
    %v1611 = vunpack.c.h.b16 %v308
    %v1612 = vunpack.c.l.b16 %v309
    %v1613 = vunpack.c.h.b16 %v309
    %v1614 = vunpack.c.l.b16 %v310
    %v1615 = vunpack.c.h.b16 %v310
    %v1616 = vunpack.c.l.b16 %v311
    %v1617 = vunpack.c.h.b16 %v311
    %v1618 = vunpack.c.l.b16 %v312
    %v1619 = vunpack.c.h.b16 %v312
    %v1620 = vunpack.c.l.b16 %v313
    %v1621 = vunpack.c.h.b16 %v313
    %v1622 = vunpack.c.l.b16 %v314
    %v1623 = vunpack.c.h.b16 %v314
    %v1624 = vunpack.c.l.b16 %v315
    %v1625 = vunpack.c.h.b16 %v315
    %v1626 = vunpack.c.l.b16 %v316
    %v1627 = vunpack.c.h.b16 %v316
    %v1628 = vunpack.c.l.b16 %v317
    %v1629 = vunpack.c.h.b16 %v317
    %v1630 = vunpack.c.l.b16 %v318
    %v1631 = vunpack.c.h.b16 %v318
    %v1632 = vunpack.c.l.b16 %v319
    %v1633 = vunpack.c.h.b16 %v319
    %v1634 = vunpack.c.l.b16 %v320
    %v1635 = vunpack.c.h.b16 %v320
    %v1636 = vunpack.c.l.b16 %v321
    %v1637 = vunpack.c.h.b16 %v321
    %v1638 = vunpack.c.l.b16 %v322
    %v1639 = vunpack.c.h.b16 %v322
    %v1640 = vunpack.c.l.b16 %v323
    %v1641 = vunpack.c.h.b16 %v323
    %v1642 = vunpack.c.l.b16 %v324
    %v1643 = vunpack.c.h.b16 %v324
    %v1644 = vunpack.c.l.b16 %v325
    %v1645 = vunpack.c.h.b16 %v325
    %v1646 = vunpack.c.l.b16 %v326
    %v1647 = vunpack.c.h.b16 %v326
    %v1648 = vunpack.c.l.b16 %v327
    %v1649 = vunpack.c.h.b16 %v327
    %v1650 = vunpack.c.l.b16 %v328
    %v1651 = vunpack.c.h.b16 %v328
    %v1652 = vunpack.c.l.b16 %v329
    %v1653 = vunpack.c.h.b16 %v329
    %v1654 = vunpack.c.l.b16 %v330
    %v1655 = vunpack.c.h.b16 %v330
    %v1656 = vunpack.c.l.b16 %v331
    %v1657 = vunpack.c.h.b16 %v331
    %v1658 = vunpack.c.l.b16 %v332
    %v1659 = vunpack.c.h.b16 %v332
    %v1660 = vunpack.c.l.b16 %v333
    %v1661 = vunpack.c.h.b16 %v333
    %v1662 = vunpack.c.l.b16 %v334
    %v1663 = vunpack.c.h.b16 %v334
    %v1664 = vunpack.c.l.b16 %v335
    %v1665 = vunpack.c.h.b16 %v335
    %v1666 = vunpack.c.l.b16 %v336
    %v1667 = vunpack.c.h.b16 %v336
    %v1668 = vunpack.c.l.b16 %v337
    %v1669 = vunpack.c.h.b16 %v337
    %v1670 = vunpack.c.l.b16 %v338
    %v1671 = vunpack.c.h.b16 %v338
    %v1672 = vunpack.c.l.b16 %v339
    %v1673 = vunpack.c.h.b16 %v339
    %v1674 = vunpack.c.l.b16 %v340
    %v1675 = vunpack.c.h.b16 %v340
    %v1676 = vunpack.c.l.b16 %v341
    %v1677 = vunpack.c.h.b16 %v341
    %v1678 = vunpack.c.l.b16 %v342
    %v1679 = vunpack.c.h.b16 %v342
    %v1680 = vunpack.c.l.b16 %v343
    %v1681 = vunpack.c.h.b16 %v343
    %v1682 = vunpack.c.l.b16 %v344
    %v1683 = vunpack.c.h.b16 %v344
    %v1684 = vunpack.c.l.b16 %v345
    %v1685 = vunpack.c.h.b16 %v345
    %v1686 = vunpack.c.l.b16 %v346
    %v1687 = vunpack.c.h.b16 %v346
    %v1688 = vunpack.c.l.b16 %v347
    %v1689 = vunpack.c.h.b16 %v347
    %v1690 = vunpack.c.l.b16 %v348
    %v1691 = vunpack.c.h.b16 %v348
    %v1692 = vunpack.c.l.b16 %v349
    %v1693 = vunpack.c.h.b16 %v349
    %v1694 = vunpack.c.l.b16 %v350
    %v1695 = vunpack.c.h.b16 %v350
    %v1696 = vunpack.c.l.b16 %v351
    %v1697 = vunpack.c.h.b16 %v351
    %v1698 = vunpack.c.l.b16 %v352
    %v1699 = vunpack.c.h.b16 %v352
    %v1700 = vunpack.c.l.b16 %v353
    %v1701 = vunpack.c.h.b16 %v353
    %v1702 = vunpack.c.l.b16 %v354
    %v1703 = vunpack.c.h.b16 %v354
    %v1704 = vunpack.c.l.b16 %v355
    %v1705 = vunpack.c.h.b16 %v355
    %v1706 = vunpack.c.l.b16 %v356
    %v1707 = vunpack.c.h.b16 %v356
    %v1708 = vunpack.c.l.b16 %v357
    %v1709 = vunpack.c.h.b16 %v357
    %v1710 = vunpack.c.l.b16 %v358
    %v1711 = vunpack.c.h.b16 %v358
    %v1712 = vunpack.c.l.b16 %v359
    %v1713 = vunpack.c.h.b16 %v359
    %v1714 = vunpack.c.l.b16 %v360
    %v1715 = vunpack.c.h.b16 %v360
    %v1716 = vunpack.c.l.b16 %v361
    %v1717 = vunpack.c.h.b16 %v361
    %v1718 = vunpack.c.l.b16 %v362
    %v1719 = vunpack.c.h.b16 %v362
    %v1720 = vunpack.c.l.b16 %v363
    %v1721 = vunpack.c.h.b16 %v363
    %v1722 = vunpack.c.l.b16 %v364
    %v1723 = vunpack.c.h.b16 %v364
    %v1724 = vunpack.c.l.b16 %v365
    %v1725 = vunpack.c.h.b16 %v365
    %v1726 = vunpack.c.l.b16 %v366
    %v1727 = vunpack.c.h.b16 %v366
    %v1728 = vunpack.c.l.b16 %v367
    %v1729 = vunpack.c.h.b16 %v367
    %v1730 = vunpack.c.l.b16 %v368
    %v1731 = vunpack.c.h.b16 %v368
    %v1732 = vunpack.c.l.b16 %v369
    %v1733 = vunpack.c.h.b16 %v369
    %v1734 = vunpack.c.l.b16 %v370
    %v1735 = vunpack.c.h.b16 %v370
    %v1736 = vunpack.c.l.b16 %v371
    %v1737 = vunpack.c.h.b16 %v371
    %v1738 = vunpack.c.l.b16 %v372
    %v1739 = vunpack.c.h.b16 %v372
    %v1740 = vunpack.c.l.b16 %v373
    %v1741 = vunpack.c.h.b16 %v373
    %v1742 = vunpack.c.l.b16 %v374
    %v1743 = vunpack.c.h.b16 %v374
    %v1744 = vunpack.c.l.b16 %v375
    %v1745 = vunpack.c.h.b16 %v375
    %v1746 = vunpack.c.l.b16 %v376
    %v1747 = vunpack.c.h.b16 %v376
    %v1748 = vunpack.c.l.b16 %v377
    %v1749 = vunpack.c.h.b16 %v377
    %v1750 = vunpack.c.l.b16 %v378
    %v1751 = vunpack.c.h.b16 %v378
    %v1752 = vunpack.c.l.b16 %v379
    %v1753 = vunpack.c.h.b16 %v379
    %v1754 = vunpack.c.l.b16 %v380
    %v1755 = vunpack.c.h.b16 %v380
    %v1756 = vunpack.c.l.b16 %v381
    %v1757 = vunpack.c.h.b16 %v381
    %v1758 = vunpack.c.l.b16 %v382
    %v1759 = vunpack.c.h.b16 %v382
    %v1760 = vunpack.c.l.b16 %v383
    %v1761 = vunpack.c.h.b16 %v383
    %v1762 = vunpack.c.l.b16 %v384
    %v1763 = vunpack.c.h.b16 %v384
    %v1764 = vunpack.c.l.b16 %v385
    %v1765 = vunpack.c.h.b16 %v385
    %v1766 = vunpack.c.l.b16 %v386
    %v1767 = vunpack.c.h.b16 %v386
    %v1768 = vunpack.c.l.b16 %v387
    %v1769 = vunpack.c.h.b16 %v387
    %v1770 = vunpack.c.l.b16 %v388
    %v1771 = vunpack.c.h.b16 %v388
    %v1772 = vunpack.c.l.b16 %v389
    %v1773 = vunpack.c.h.b16 %v389
    %v1774 = vunpack.c.l.b16 %v390
    %v1775 = vunpack.c.h.b16 %v390
    %v1776 = vunpack.c.l.b16 %v391
    %v1777 = vunpack.c.h.b16 %v391
    %v1778 = vunpack.c.l.b16 %v392
    %v1779 = vunpack.c.h.b16 %v392
    %v1780 = vunpack.c.l.b16 %v393
    %v1781 = vunpack.c.h.b16 %v393
    %v1782 = vunpack.c.l.b16 %v394
    %v1783 = vunpack.c.h.b16 %v394
    %v1784 = vunpack.c.l.b16 %v395
    %v1785 = vunpack.c.h.b16 %v395
    %v1786 = vunpack.c.l.b16 %v396
    %v1787 = vunpack.c.h.b16 %v396
    %v1788 = vunpack.c.l.b16 %v397
    %v1789 = vunpack.c.h.b16 %v397
    %v1790 = vunpack.c.l.b16 %v398
    %v1791 = vunpack.c.h.b16 %v398
    %v1792 = vunpack.c.l.b16 %v399
    %v1793 = vunpack.c.h.b16 %v399
    %v1794 = vunpack.c.l.b16 %v400
    %v1795 = vunpack.c.h.b16 %v400
    %v1796 = vunpack.c.l.b16 %v401
    %v1797 = vunpack.c.h.b16 %v401
    %v1798 = vunpack.c.l.b16 %v402
    %v1799 = vunpack.c.h.b16 %v402
    %v1800 = vunpack.c.l.b16 %v403
    %v1801 = vunpack.c.h.b16 %v403
    %v1802 = vunpack.c.l.b16 %v404
    %v1803 = vunpack.c.h.b16 %v404
    %v1804 = vunpack.c.l.b16 %v405
    %v1805 = vunpack.c.h.b16 %v405
    %v1806 = vunpack.c.l.b16 %v406
    %v1807 = vunpack.c.h.b16 %v406
    %v1808 = vunpack.c.l.b16 %v407
    %v1809 = vunpack.c.h.b16 %v407
    %v1810 = vunpack.c.l.b16 %v408
    %v1811 = vunpack.c.h.b16 %v408
    %v1812 = vunpack.c.l.b16 %v409
    %v1813 = vunpack.c.h.b16 %v409
    %v1814 = vunpack.c.l.b16 %v410
    %v1815 = vunpack.c.h.b16 %v410
    %v1816 = vunpack.c.l.b16 %v411
    %v1817 = vunpack.c.h.b16 %v411
    %v1818 = vunpack.c.l.b16 %v412
    %v1819 = vunpack.c.h.b16 %v412
    %v1820 = vunpack.c.l.b16 %v413
    %v1821 = vunpack.c.h.b16 %v413
    %v1822 = vunpack.c.l.b16 %v414
    %v1823 = vunpack.c.h.b16 %v414
    %v1824 = vunpack.c.l.b16 %v415
    %v1825 = vunpack.c.h.b16 %v415
    %v1826 = vunpack.c.l.b16 %v416
    %v1827 = vunpack.c.h.b16 %v416
    %v1828 = vunpack.c.l.b16 %v417
    %v1829 = vunpack.c.h.b16 %v417
    %v1830 = vunpack.c.l.b16 %v418
    %v1831 = vunpack.c.h.b16 %v418
    %v1832 = vunpack.c.l.b16 %v419
    %v1833 = vunpack.c.h.b16 %v419
    %v1834 = vunpack.c.l.b16 %v420
    %v1835 = vunpack.c.h.b16 %v420
    %v1836 = vunpack.c.l.b16 %v421
    %v1837 = vunpack.c.h.b16 %v421
    %v1838 = vunpack.c.l.b16 %v422
    %v1839 = vunpack.c.h.b16 %v422
    %v1840 = vunpack.c.l.b16 %v423
    %v1841 = vunpack.c.h.b16 %v423
    %v1842 = vunpack.c.l.b16 %v424
    %v1843 = vunpack.c.h.b16 %v424
    %v1844 = vunpack.c.l.b16 %v425
    %v1845 = vunpack.c.h.b16 %v425
    %v1846 = vunpack.c.l.b16 %v426
    %v1847 = vunpack.c.h.b16 %v426
    %v1848 = vunpack.c.l.b16 %v427
    %v1849 = vunpack.c.h.b16 %v427
    %v1850 = vunpack.c.l.b16 %v428
    %v1851 = vunpack.c.h.b16 %v428
    %v1852 = vunpack.c.l.b16 %v429
    %v1853 = vunpack.c.h.b16 %v429
    %v1854 = vunpack.c.l.b16 %v430
    %v1855 = vunpack.c.h.b16 %v430
    %v1856 = vunpack.c.l.b16 %v431
    %v1857 = vunpack.c.h.b16 %v431
    %v1858 = vunpack.c.l.b16 %v432
    %v1859 = vunpack.c.h.b16 %v432
    %v1860 = vunpack.c.l.b16 %v433
    %v1861 = vunpack.c.h.b16 %v433
    %v1862 = vunpack.c.l.b16 %v434
    %v1863 = vunpack.c.h.b16 %v434
    %v1864 = vunpack.c.l.b16 %v435
    %v1865 = vunpack.c.h.b16 %v435
    %v1866 = vunpack.c.l.b16 %v436
    %v1867 = vunpack.c.h.b16 %v436
    %v1868 = vunpack.c.l.b16 %v437
    %v1869 = vunpack.c.h.b16 %v437
    %v1870 = vunpack.c.l.b16 %v438
    %v1871 = vunpack.c.h.b16 %v438
    %v1872 = vunpack.c.l.b16 %v439
    %v1873 = vunpack.c.h.b16 %v439
    %v1874 = vunpack.c.l.b16 %v440
    %v1875 = vunpack.c.h.b16 %v440
    %v1876 = vunpack.c.l.b16 %v441
    %v1877 = vunpack.c.h.b16 %v441
    %v1878 = vunpack.c.l.b16 %v442
    %v1879 = vunpack.c.h.b16 %v442
    %v1880 = vunpack.c.l.b16 %v443
    %v1881 = vunpack.c.h.b16 %v443
    %v1882 = vunpack.c.l.b16 %v444
    %v1883 = vunpack.c.h.b16 %v444
    %v1884 = vunpack.c.l.b16 %v445
    %v1885 = vunpack.c.h.b16 %v445
    %v1886 = vunpack.c.l.b16 %v446
    %v1887 = vunpack.c.h.b16 %v446
    %v1888 = vunpack.c.l.b16 %v447
    %v1889 = vunpack.c.h.b16 %v447
    %v1890 = vunpack.c.l.b16 %v448
    %v1891 = vunpack.c.h.b16 %v448
    %v1892 = vunpack.c.l.b16 %v449
    %v1893 = vunpack.c.h.b16 %v449
    %v1894 = vunpack.c.l.b16 %v450
    %v1895 = vunpack.c.h.b16 %v450
    %v1896 = vunpack.c.l.b16 %v451
    %v1897 = vunpack.c.h.b16 %v451
    %v1898 = vunpack.c.l.b16 %v452
    %v1899 = vunpack.c.h.b16 %v452
    %v1900 = vunpack.c.l.b16 %v453
    %v1901 = vunpack.c.h.b16 %v453
    %v1902 = vunpack.c.l.b16 %v454
    %v1903 = vunpack.c.h.b16 %v454
    %v1904 = vunpack.c.l.b16 %v455
    %v1905 = vunpack.c.h.b16 %v455
    %v1906 = vunpack.c.l.b16 %v456
    %v1907 = vunpack.c.h.b16 %v456
    %v1908 = vunpack.c.l.b16 %v457
    %v1909 = vunpack.c.h.b16 %v457
    %v1910 = vunpack.c.l.b16 %v458
    %v1911 = vunpack.c.h.b16 %v458
    %v1912 = vunpack.c.l.b16 %v459
    %v1913 = vunpack.c.h.b16 %v459
    %v1914 = vunpack.c.l.b16 %v460
    %v1915 = vunpack.c.h.b16 %v460
    %v1916 = vunpack.c.l.b16 %v461
    %v1917 = vunpack.c.h.b16 %v461
    %v1918 = vunpack.c.l.b16 %v462
    %v1919 = vunpack.c.h.b16 %v462
    %v1920 = vunpack.c.l.b16 %v463
    %v1921 = vunpack.c.h.b16 %v463
    %v1922 = vunpack.c.l.b16 %v464
    %v1923 = vunpack.c.h.b16 %v464
    %v1924 = vunpack.c.l.b16 %v465
    %v1925 = vunpack.c.h.b16 %v465
    %v1926 = vunpack.c.l.b16 %v466
    %v1927 = vunpack.c.h.b16 %v466
    %v1928 = vunpack.c.l.b16 %v467
    %v1929 = vunpack.c.h.b16 %v467
    %v1930 = vunpack.c.l.b16 %v468
    %v1931 = vunpack.c.h.b16 %v468
    %v1932 = vunpack.c.l.b16 %v469
    %v1933 = vunpack.c.h.b16 %v469
    %v1934 = vunpack.c.l.b16 %v470
    %v1935 = vunpack.c.h.b16 %v470
    %v1936 = vunpack.c.l.b16 %v471
    %v1937 = vunpack.c.h.b16 %v471
    %v1938 = vunpack.c.l.b16 %v472
    %v1939 = vunpack.c.h.b16 %v472
    %v1940 = vunpack.c.l.b16 %v473
    %v1941 = vunpack.c.h.b16 %v473
    %v1942 = vunpack.c.l.b16 %v474
    %v1943 = vunpack.c.h.b16 %v474
    %v1944 = vunpack.c.l.b16 %v475
    %v1945 = vunpack.c.h.b16 %v475
    %v1946 = vunpack.c.l.b16 %v476
    %v1947 = vunpack.c.h.b16 %v476
    %v1948 = vunpack.c.l.b16 %v477
    %v1949 = vunpack.c.h.b16 %v477
    %v1950 = vunpack.c.l.b16 %v478
    %v1951 = vunpack.c.h.b16 %v478
    %v1952 = vunpack.c.l.b16 %v479
    %v1953 = vunpack.c.h.b16 %v479
    %v1954 = vunpack.c.l.b16 %v480
    %v1955 = vunpack.c.h.b16 %v480
    %v1956 = vunpack.c.l.b16 %v481
    %v1957 = vunpack.c.h.b16 %v481
    %v1958 = vunpack.c.l.b16 %v482
    %v1959 = vunpack.c.h.b16 %v482
    %v1960 = vunpack.c.l.b16 %v483
    %v1961 = vunpack.c.h.b16 %v483
    %v1962 = vunpack.c.l.b16 %v484
    %v1963 = vunpack.c.h.b16 %v484
    %v1964 = vunpack.c.l.b16 %v485
    %v1965 = vunpack.c.h.b16 %v485
    %v1966 = vunpack.c.l.b16 %v486
    %v1967 = vunpack.c.h.b16 %v486
    %v1968 = vunpack.c.l.b16 %v487
    %v1969 = vunpack.c.h.b16 %v487
    %v1970 = vunpack.c.l.b16 %v488
    %v1971 = vunpack.c.h.b16 %v488
    %v1972 = vunpack.c.l.b16 %v489
    %v1973 = vunpack.c.h.b16 %v489
    %v1974 = vunpack.c.l.b16 %v490
    %v1975 = vunpack.c.h.b16 %v490
    %v1976 = vunpack.c.l.b16 %v491
    %v1977 = vunpack.c.h.b16 %v491
    %v1978 = vunpack.c.l.b16 %v492
    %v1979 = vunpack.c.h.b16 %v492
    %v1980 = vunpack.c.l.b16 %v493
    %v1981 = vunpack.c.h.b16 %v493
    %v1982 = vunpack.c.l.b16 %v494
    %v1983 = vunpack.c.h.b16 %v494
    %v1984 = vunpack.c.l.b16 %v495
    %v1985 = vunpack.c.h.b16 %v495
    %v1986 = vunpack.c.l.b16 %v496
    %v1987 = vunpack.c.h.b16 %v496
    %v1988 = vunpack.c.l.b16 %v497
    %v1989 = vunpack.c.h.b16 %v497
    %v1990 = vunpack.c.l.b16 %v498
    %v1991 = vunpack.c.h.b16 %v498
    %v1992 = vunpack.c.l.b16 %v499
    %v1993 = vunpack.c.h.b16 %v499
    %v1994 = vunpack.c.l.b16 %v500
    %v1995 = vunpack.c.h.b16 %v500
    %v1996 = vunpack.c.l.b16 %v501
    %v1997 = vunpack.c.h.b16 %v501
    %v1998 = vunpack.c.l.b16 %v502
    %v1999 = vunpack.c.h.b16 %v502
    %v2000 = vunpack.c.l.b16 %v503
    %v2001 = vunpack.c.h.b16 %v503
    %v2002 = vunpack.c.l.b16 %v504
    %v2003 = vunpack.c.h.b16 %v504
    %v2004 = vunpack.c.l.b16 %v505
    %v2005 = vunpack.c.h.b16 %v505
    %v2006 = vunpack.c.l.b16 %v506
    %v2007 = vunpack.c.h.b16 %v506
    %v2008 = vunpack.c.l.b16 %v507
    %v2009 = vunpack.c.h.b16 %v507
    %v2010 = vunpack.c.l.b16 %v508
    %v2011 = vunpack.c.h.b16 %v508
    %v2012 = vunpack.c.l.b16 %v509
    %v2013 = vunpack.c.h.b16 %v509
    %v2014 = vunpack.c.l.b16 %v510
    %v2015 = vunpack.c.h.b16 %v510
    %v2016 = vunpack.c.l.b16 %v511
    %v2017 = vunpack.c.h.b16 %v511
    %v2018 = vunpack.c.l.b16 %v512
    %v2019 = vunpack.c.h.b16 %v512
    %v2020 = vunpack.c.l.b16 %v513
    %v2021 = vunpack.c.h.b16 %v513
    %v2022 = vunpack.c.l.b16 %v514
    %v2023 = vunpack.c.h.b16 %v514
    %v2024 = vunpack.c.l.b16 %v515
    %v2025 = vunpack.c.h.b16 %v515
    %v2026 = vunpack.c.l.b16 %v516
    %v2027 = vunpack.c.h.b16 %v516
    %v2028 = vunpack.c.l.b16 %v517
    %v2029 = vunpack.c.h.b16 %v517
    %v2030 = vunpack.c.l.b16 %v518
    %v2031 = vunpack.c.h.b16 %v518
    %v2032 = vunpack.c.l.b16 %v519
    %v2033 = vunpack.c.h.b16 %v519
    %v2034 = vunpack.c.l.b16 %v520
    %v2035 = vunpack.c.h.b16 %v520
    %v2036 = vunpack.c.l.b16 %v521
    %v2037 = vunpack.c.h.b16 %v521
    %v2038 = vunpack.c.l.b16 %v522
    %v2039 = vunpack.c.h.b16 %v522
    %v2040 = vunpack.c.l.b16 %v523
    %v2041 = vunpack.c.h.b16 %v523
    %v2042 = vunpack.c.l.b16 %v524
    %v2043 = vunpack.c.h.b16 %v524
    %v2044 = vunpack.c.l.b16 %v525
    %v2045 = vunpack.c.h.b16 %v525
    %v2046 = vunpack.c.l.b16 %v526
    %v2047 = vunpack.c.h.b16 %v526
    %v2048 = vunpack.c.l.b16 %v527
    %v2049 = vunpack.c.h.b16 %v527
    %v2050 = vunpack.c.l.b16 %v528
    %v2051 = vunpack.c.h.b16 %v528
    %v2052 = vunpack.c.l.b16 %v529
    %v2053 = vunpack.c.h.b16 %v529
    %v2054 = vunpack.c.l.b16 %v530
    %v2055 = vunpack.c.h.b16 %v530
    %v2056 = vunpack.c.l.b16 %v531
    %v2057 = vunpack.c.h.b16 %v531
    %v2058 = vunpack.c.l.b16 %v532
    %v2059 = vunpack.c.h.b16 %v532
    %v2060 = vunpack.c.l.b16 %v533
    %v2061 = vunpack.c.h.b16 %v533
    %v2062 = vunpack.c.l.b16 %v534
    %v2063 = vunpack.c.h.b16 %v534
    %v2064 = vunpack.c.l.b16 %v535
    %v2065 = vunpack.c.h.b16 %v535
    %v2066 = vunpack.c.l.b16 %v536
    %v2067 = vunpack.c.h.b16 %v536
    %v2068 = vunpack.c.l.b16 %v537
    %v2069 = vunpack.c.h.b16 %v537
    %v2070 = vunpack.c.l.b16 %v538
    %v2071 = vunpack.c.h.b16 %v538
    %v2072 = vunpack.c.l.b16 %v539
    %v2073 = vunpack.c.h.b16 %v539
    %v2074 = vunpack.c.l.b16 %v540
    %v2075 = vunpack.c.h.b16 %v540
    %v2076 = vunpack.c.l.b16 %v541
    %v2077 = vunpack.c.h.b16 %v541
    %v2078 = vunpack.c.l.b16 %v542
    %v2079 = vunpack.c.h.b16 %v542
    %v2080 = vunpack.c.l.b16 %v543
    %v2081 = vunpack.c.h.b16 %v543
    %v2082 = vunpack.c.l.b16 %v544
    %v2083 = vunpack.c.h.b16 %v544
    %v2084 = vunpack.c.l.b16 %v545
    %v2085 = vunpack.c.h.b16 %v545
    %v2086 = vunpack.c.l.b16 %v546
    %v2087 = vunpack.c.h.b16 %v546
    %v2088 = vunpack.c.l.b16 %v547
    %v2089 = vunpack.c.h.b16 %v547
    %v2090 = vunpack.c.l.b16 %v548
    %v2091 = vunpack.c.h.b16 %v548
    %v2092 = vunpack.c.l.b16 %v549
    %v2093 = vunpack.c.h.b16 %v549
    %v2094 = vunpack.c.l.b16 %v550
    %v2095 = vunpack.c.h.b16 %v550
    %v2096 = vunpack.c.l.b16 %v551
    %v2097 = vunpack.c.h.b16 %v551
    %v2098 = vunpack.c.l.b16 %v552
    %v2099 = vunpack.c.h.b16 %v552
    %v2100 = vunpack.c.l.b16 %v553
    %v2101 = vunpack.c.h.b16 %v553
    %v2102 = vunpack.c.l.b16 %v554
    %v2103 = vunpack.c.h.b16 %v554
    %v2104 = vunpack.c.l.b16 %v555
    %v2105 = vunpack.c.h.b16 %v555
    %v2106 = vunpack.c.l.b16 %v556
    %v2107 = vunpack.c.h.b16 %v556
    %v2108 = vunpack.c.l.b16 %v557
    %v2109 = vunpack.c.h.b16 %v557
    %v2110 = vunpack.c.l.b16 %v558
    %v2111 = vunpack.c.h.b16 %v558
    %v2112 = vunpack.c.l.b16 %v559
    %v2113 = vunpack.c.h.b16 %v559
    %v2114 = vunpack.c.l.b16 %v560
    %v2115 = vunpack.c.h.b16 %v560
    %v2116 = vunpack.c.l.b16 %v561
    %v2117 = vunpack.c.h.b16 %v561
    %v2118 = vunpack.c.l.b16 %v562
    %v2119 = vunpack.c.h.b16 %v562
    %v2120 = vunpack.c.l.b16 %v563
    %v2121 = vunpack.c.h.b16 %v563
    %v2122 = vunpack.c.l.b16 %v564
    %v2123 = vunpack.c.h.b16 %v564
    %v2124 = vunpack.c.l.b16 %v565
    %v2125 = vunpack.c.h.b16 %v565
    %v2126 = vunpack.c.l.b16 %v566
    %v2127 = vunpack.c.h.b16 %v566
    %v2128 = vunpack.c.l.b16 %v567
    %v2129 = vunpack.c.h.b16 %v567
    %v2130 = vunpack.c.l.b16 %v568
    %v2131 = vunpack.c.h.b16 %v568
    %v2132 = vunpack.c.l.b16 %v569
    %v2133 = vunpack.c.h.b16 %v569
    %v2134 = vpack.c.b16 %v1118, %v1110
    %v2135 = vpack.c.b16 %v1119, %v1111
    %v2136 = vpack.c.b16 %v1120, %v1112
    %v2137 = vpack.c.b16 %v1121, %v1113
    %v2138 = vpack.c.b16 %v1122, %v1114
    %v2139 = vpack.c.b16 %v1123, %v1115
    %v2140 = vpack.c.b16 %v1124, %v1116
    %v2141 = vpack.c.b16 %v1125, %v1117
    %v2142 = vpack.c.b16 %v1134, %v1126
    %v2143 = vpack.c.b16 %v1135, %v1127
    %v2144 = vpack.c.b16 %v1136, %v1128
    %v2145 = vpack.c.b16 %v1137, %v1129
    %v2146 = vpack.c.b16 %v1138, %v1130
    %v2147 = vpack.c.b16 %v1139, %v1131
    %v2148 = vpack.c.b16 %v1140, %v1132
    %v2149 = vpack.c.b16 %v1141, %v1133
    %v2150 = vpack.c.b16 %v1150, %v1142
    %v2151 = vpack.c.b16 %v1151, %v1143
    %v2152 = vpack.c.b16 %v1152, %v1144
    %v2153 = vpack.c.b16 %v1153, %v1145
    %v2154 = vpack.c.b16 %v1154, %v1146
    %v2155 = vpack.c.b16 %v1155, %v1147
    %v2156 = vpack.c.b16 %v1156, %v1148
    %v2157 = vpack.c.b16 %v1157, %v1149
    %v2158 = vpack.c.b16 %v1166, %v1158
    %v2159 = vpack.c.b16 %v1167, %v1159
    %v2160 = vpack.c.b16 %v1168, %v1160
    %v2161 = vpack.c.b16 %v1169, %v1161
    %v2162 = vpack.c.b16 %v1170, %v1162
    %v2163 = vpack.c.b16 %v1171, %v1163
    %v2164 = vpack.c.b16 %v1172, %v1164
    %v2165 = vpack.c.b16 %v1173, %v1165
    %v2166 = vpack.c.b16 %v1182, %v1174
    %v2167 = vpack.c.b16 %v1183, %v1175
    %v2168 = vpack.c.b16 %v1184, %v1176
    %v2169 = vpack.c.b16 %v1185, %v1177
    %v2170 = vpack.c.b16 %v1186, %v1178
    %v2171 = vpack.c.b16 %v1187, %v1179
    %v2172 = vpack.c.b16 %v1188, %v1180
    %v2173 = vpack.c.b16 %v1189, %v1181
    %v2174 = vpack.c.b16 %v1198, %v1190
    %v2175 = vpack.c.b16 %v1199, %v1191
    %v2176 = vpack.c.b16 %v1200, %v1192
    %v2177 = vpack.c.b16 %v1201, %v1193
    %v2178 = vpack.c.b16 %v1202, %v1194
    %v2179 = vpack.c.b16 %v1203, %v1195
    %v2180 = vpack.c.b16 %v1204, %v1196
    %v2181 = vpack.c.b16 %v1205, %v1197
    %v2182 = vpack.c.b16 %v1214, %v1206
    %v2183 = vpack.c.b16 %v1215, %v1207
    %v2184 = vpack.c.b16 %v1216, %v1208
    %v2185 = vpack.c.b16 %v1217, %v1209
    %v2186 = vpack.c.b16 %v1218, %v1210
    %v2187 = vpack.c.b16 %v1219, %v1211
    %v2188 = vpack.c.b16 %v1220, %v1212
    %v2189 = vpack.c.b16 %v1221, %v1213
    %v2190 = vpack.c.b16 %v1230, %v1222
    %v2191 = vpack.c.b16 %v1231, %v1223
    %v2192 = vpack.c.b16 %v1232, %v1224
    %v2193 = vpack.c.b16 %v1233, %v1225
    %v2194 = vpack.c.b16 %v1234, %v1226
    %v2195 = vpack.c.b16 %v1235, %v1227
    %v2196 = vpack.c.b16 %v1236, %v1228
    %v2197 = vpack.c.b16 %v1237, %v1229
    %v2198 = vpack.c.b16 %v1246, %v1238
    %v2199 = vpack.c.b16 %v1247, %v1239
    %v2200 = vpack.c.b16 %v1248, %v1240
    %v2201 = vpack.c.b16 %v1249, %v1241
    %v2202 = vpack.c.b16 %v1250, %v1242
    %v2203 = vpack.c.b16 %v1251, %v1243
    %v2204 = vpack.c.b16 %v1252, %v1244
    %v2205 = vpack.c.b16 %v1253, %v1245
    %v2206 = vpack.c.b16 %v1262, %v1254
    %v2207 = vpack.c.b16 %v1263, %v1255
    %v2208 = vpack.c.b16 %v1264, %v1256
    %v2209 = vpack.c.b16 %v1265, %v1257
    %v2210 = vpack.c.b16 %v1266, %v1258
    %v2211 = vpack.c.b16 %v1267, %v1259
    %v2212 = vpack.c.b16 %v1268, %v1260
    %v2213 = vpack.c.b16 %v1269, %v1261
    %v2214 = vpack.c.b16 %v1278, %v1270
    %v2215 = vpack.c.b16 %v1279, %v1271
    %v2216 = vpack.c.b16 %v1280, %v1272
    %v2217 = vpack.c.b16 %v1281, %v1273
    %v2218 = vpack.c.b16 %v1282, %v1274
    %v2219 = vpack.c.b16 %v1283, %v1275
    %v2220 = vpack.c.b16 %v1284, %v1276
    %v2221 = vpack.c.b16 %v1285, %v1277
    %v2222 = vpack.c.b16 %v1294, %v1286
    %v2223 = vpack.c.b16 %v1295, %v1287
    %v2224 = vpack.c.b16 %v1296, %v1288
    %v2225 = vpack.c.b16 %v1297, %v1289
    %v2226 = vpack.c.b16 %v1298, %v1290
    %v2227 = vpack.c.b16 %v1299, %v1291
    %v2228 = vpack.c.b16 %v1300, %v1292
    %v2229 = vpack.c.b16 %v1301, %v1293
    %v2230 = vpack.c.b16 %v1310, %v1302
    %v2231 = vpack.c.b16 %v1311, %v1303
    %v2232 = vpack.c.b16 %v1312, %v1304
    %v2233 = vpack.c.b16 %v1313, %v1305
    %v2234 = vpack.c.b16 %v1314, %v1306
    %v2235 = vpack.c.b16 %v1315, %v1307
    %v2236 = vpack.c.b16 %v1316, %v1308
    %v2237 = vpack.c.b16 %v1317, %v1309
    %v2238 = vpack.c.b16 %v1326, %v1318
    %v2239 = vpack.c.b16 %v1327, %v1319
    %v2240 = vpack.c.b16 %v1328, %v1320
    %v2241 = vpack.c.b16 %v1329, %v1321
    %v2242 = vpack.c.b16 %v1330, %v1322
    %v2243 = vpack.c.b16 %v1331, %v1323
    %v2244 = vpack.c.b16 %v1332, %v1324
    %v2245 = vpack.c.b16 %v1333, %v1325
    %v2246 = vpack.c.b16 %v1342, %v1334
    %v2247 = vpack.c.b16 %v1343, %v1335
    %v2248 = vpack.c.b16 %v1344, %v1336
    %v2249 = vpack.c.b16 %v1345, %v1337
    %v2250 = vpack.c.b16 %v1346, %v1338
    %v2251 = vpack.c.b16 %v1347, %v1339
    %v2252 = vpack.c.b16 %v1348, %v1340
    %v2253 = vpack.c.b16 %v1349, %v1341
    %v2254 = vpack.c.b16 %v1358, %v1350
    %v2255 = vpack.c.b16 %v1359, %v1351
    %v2256 = vpack.c.b16 %v1360, %v1352
    %v2257 = vpack.c.b16 %v1361, %v1353
    %v2258 = vpack.c.b16 %v1362, %v1354
    %v2259 = vpack.c.b16 %v1363, %v1355
    %v2260 = vpack.c.b16 %v1364, %v1356
    %v2261 = vpack.c.b16 %v1365, %v1357
    %v2262 = vpack.c.b16 %v1374, %v1366
    %v2263 = vpack.c.b16 %v1375, %v1367
    %v2264 = vpack.c.b16 %v1376, %v1368
    %v2265 = vpack.c.b16 %v1377, %v1369
    %v2266 = vpack.c.b16 %v1378, %v1370
    %v2267 = vpack.c.b16 %v1379, %v1371
    %v2268 = vpack.c.b16 %v1380, %v1372
    %v2269 = vpack.c.b16 %v1381, %v1373
    %v2270 = vpack.c.b16 %v1390, %v1382
    %v2271 = vpack.c.b16 %v1391, %v1383
    %v2272 = vpack.c.b16 %v1392, %v1384
    %v2273 = vpack.c.b16 %v1393, %v1385
    %v2274 = vpack.c.b16 %v1394, %v1386
    %v2275 = vpack.c.b16 %v1395, %v1387
    %v2276 = vpack.c.b16 %v1396, %v1388
    %v2277 = vpack.c.b16 %v1397, %v1389
    %v2278 = vpack.c.b16 %v1406, %v1398
    %v2279 = vpack.c.b16 %v1407, %v1399
    %v2280 = vpack.c.b16 %v1408, %v1400
    %v2281 = vpack.c.b16 %v1409, %v1401
    %v2282 = vpack.c.b16 %v1410, %v1402
    %v2283 = vpack.c.b16 %v1411, %v1403
    %v2284 = vpack.c.b16 %v1412, %v1404
    %v2285 = vpack.c.b16 %v1413, %v1405
    %v2286 = vpack.c.b16 %v1422, %v1414
    %v2287 = vpack.c.b16 %v1423, %v1415
    %v2288 = vpack.c.b16 %v1424, %v1416
    %v2289 = vpack.c.b16 %v1425, %v1417
    %v2290 = vpack.c.b16 %v1426, %v1418
    %v2291 = vpack.c.b16 %v1427, %v1419
    %v2292 = vpack.c.b16 %v1428, %v1420
    %v2293 = vpack.c.b16 %v1429, %v1421
    %v2294 = vpack.c.b16 %v1438, %v1430
    %v2295 = vpack.c.b16 %v1439, %v1431
    %v2296 = vpack.c.b16 %v1440, %v1432
    %v2297 = vpack.c.b16 %v1441, %v1433
    %v2298 = vpack.c.b16 %v1442, %v1434
    %v2299 = vpack.c.b16 %v1443, %v1435
    %v2300 = vpack.c.b16 %v1444, %v1436
    %v2301 = vpack.c.b16 %v1445, %v1437
    %v2302 = vpack.c.b16 %v1454, %v1446
    %v2303 = vpack.c.b16 %v1455, %v1447
    %v2304 = vpack.c.b16 %v1456, %v1448
    %v2305 = vpack.c.b16 %v1457, %v1449
    %v2306 = vpack.c.b16 %v1458, %v1450
    %v2307 = vpack.c.b16 %v1459, %v1451
    %v2308 = vpack.c.b16 %v1460, %v1452
    %v2309 = vpack.c.b16 %v1461, %v1453
    %v2310 = vpack.c.b16 %v1470, %v1462
    %v2311 = vpack.c.b16 %v1471, %v1463
    %v2312 = vpack.c.b16 %v1472, %v1464
    %v2313 = vpack.c.b16 %v1473, %v1465
    %v2314 = vpack.c.b16 %v1474, %v1466
    %v2315 = vpack.c.b16 %v1475, %v1467
    %v2316 = vpack.c.b16 %v1476, %v1468
    %v2317 = vpack.c.b16 %v1477, %v1469
    %v2318 = vpack.c.b16 %v1486, %v1478
    %v2319 = vpack.c.b16 %v1487, %v1479
    %v2320 = vpack.c.b16 %v1488, %v1480
    %v2321 = vpack.c.b16 %v1489, %v1481
    %v2322 = vpack.c.b16 %v1490, %v1482
    %v2323 = vpack.c.b16 %v1491, %v1483
    %v2324 = vpack.c.b16 %v1492, %v1484
    %v2325 = vpack.c.b16 %v1493, %v1485
    %v2326 = vpack.c.b16 %v1502, %v1494
    %v2327 = vpack.c.b16 %v1503, %v1495
    %v2328 = vpack.c.b16 %v1504, %v1496
    %v2329 = vpack.c.b16 %v1505, %v1497
    %v2330 = vpack.c.b16 %v1506, %v1498
    %v2331 = vpack.c.b16 %v1507, %v1499
    %v2332 = vpack.c.b16 %v1508, %v1500
    %v2333 = vpack.c.b16 %v1509, %v1501
    %v2334 = vpack.c.b16 %v1518, %v1510
    %v2335 = vpack.c.b16 %v1519, %v1511
    %v2336 = vpack.c.b16 %v1520, %v1512
    %v2337 = vpack.c.b16 %v1521, %v1513
    %v2338 = vpack.c.b16 %v1522, %v1514
    %v2339 = vpack.c.b16 %v1523, %v1515
    %v2340 = vpack.c.b16 %v1524, %v1516
    %v2341 = vpack.c.b16 %v1525, %v1517
    %v2342 = vpack.c.b16 %v1534, %v1526
    %v2343 = vpack.c.b16 %v1535, %v1527
    %v2344 = vpack.c.b16 %v1536, %v1528
    %v2345 = vpack.c.b16 %v1537, %v1529
    %v2346 = vpack.c.b16 %v1538, %v1530
    %v2347 = vpack.c.b16 %v1539, %v1531
    %v2348 = vpack.c.b16 %v1540, %v1532
    %v2349 = vpack.c.b16 %v1541, %v1533
    %v2350 = vpack.c.b16 %v1550, %v1542
    %v2351 = vpack.c.b16 %v1551, %v1543
    %v2352 = vpack.c.b16 %v1552, %v1544
    %v2353 = vpack.c.b16 %v1553, %v1545
    %v2354 = vpack.c.b16 %v1554, %v1546
    %v2355 = vpack.c.b16 %v1555, %v1547
    %v2356 = vpack.c.b16 %v1556, %v1548
    %v2357 = vpack.c.b16 %v1557, %v1549
    %v2358 = vpack.c.b16 %v1566, %v1558
    %v2359 = vpack.c.b16 %v1567, %v1559
    %v2360 = vpack.c.b16 %v1568, %v1560
    %v2361 = vpack.c.b16 %v1569, %v1561
    %v2362 = vpack.c.b16 %v1570, %v1562
    %v2363 = vpack.c.b16 %v1571, %v1563
    %v2364 = vpack.c.b16 %v1572, %v1564
    %v2365 = vpack.c.b16 %v1573, %v1565
    %v2366 = vpack.c.b16 %v1582, %v1574
    %v2367 = vpack.c.b16 %v1583, %v1575
    %v2368 = vpack.c.b16 %v1584, %v1576
    %v2369 = vpack.c.b16 %v1585, %v1577
    %v2370 = vpack.c.b16 %v1586, %v1578
    %v2371 = vpack.c.b16 %v1587, %v1579
    %v2372 = vpack.c.b16 %v1588, %v1580
    %v2373 = vpack.c.b16 %v1589, %v1581
    %v2374 = vpack.c.b16 %v1598, %v1590
    %v2375 = vpack.c.b16 %v1599, %v1591
    %v2376 = vpack.c.b16 %v1600, %v1592
    %v2377 = vpack.c.b16 %v1601, %v1593
    %v2378 = vpack.c.b16 %v1602, %v1594
    %v2379 = vpack.c.b16 %v1603, %v1595
    %v2380 = vpack.c.b16 %v1604, %v1596
    %v2381 = vpack.c.b16 %v1605, %v1597
    %v2382 = vpack.c.b16 %v1614, %v1606
    %v2383 = vpack.c.b16 %v1615, %v1607
    %v2384 = vpack.c.b16 %v1616, %v1608
    %v2385 = vpack.c.b16 %v1617, %v1609
    %v2386 = vpack.c.b16 %v1618, %v1610
    %v2387 = vpack.c.b16 %v1619, %v1611
    %v2388 = vpack.c.b16 %v1620, %v1612
    %v2389 = vpack.c.b16 %v1621, %v1613
    %v2390 = vpack.c.b16 %v1630, %v1622
    %v2391 = vpack.c.b16 %v1631, %v1623
    %v2392 = vpack.c.b16 %v1632, %v1624
    %v2393 = vpack.c.b16 %v1633, %v1625
    %v2394 = vpack.c.b16 %v1634, %v1626
    %v2395 = vpack.c.b16 %v1635, %v1627
    %v2396 = vpack.c.b16 %v1636, %v1628
    %v2397 = vpack.c.b16 %v1637, %v1629
    %v2398 = vpack.c.b16 %v1646, %v1638
    %v2399 = vpack.c.b16 %v1647, %v1639
    %v2400 = vpack.c.b16 %v1648, %v1640
    %v2401 = vpack.c.b16 %v1649, %v1641
    %v2402 = vpack.c.b16 %v1650, %v1642
    %v2403 = vpack.c.b16 %v1651, %v1643
    %v2404 = vpack.c.b16 %v1652, %v1644
    %v2405 = vpack.c.b16 %v1653, %v1645
    %v2406 = vpack.c.b16 %v1662, %v1654
    %v2407 = vpack.c.b16 %v1663, %v1655
    %v2408 = vpack.c.b16 %v1664, %v1656
    %v2409 = vpack.c.b16 %v1665, %v1657
    %v2410 = vpack.c.b16 %v1666, %v1658
    %v2411 = vpack.c.b16 %v1667, %v1659
    %v2412 = vpack.c.b16 %v1668, %v1660
    %v2413 = vpack.c.b16 %v1669, %v1661
    %v2414 = vpack.c.b16 %v1678, %v1670
    %v2415 = vpack.c.b16 %v1679, %v1671
    %v2416 = vpack.c.b16 %v1680, %v1672
    %v2417 = vpack.c.b16 %v1681, %v1673
    %v2418 = vpack.c.b16 %v1682, %v1674
    %v2419 = vpack.c.b16 %v1683, %v1675
    %v2420 = vpack.c.b16 %v1684, %v1676
    %v2421 = vpack.c.b16 %v1685, %v1677
    %v2422 = vpack.c.b16 %v1694, %v1686
    %v2423 = vpack.c.b16 %v1695, %v1687
    %v2424 = vpack.c.b16 %v1696, %v1688
    %v2425 = vpack.c.b16 %v1697, %v1689
    %v2426 = vpack.c.b16 %v1698, %v1690
    %v2427 = vpack.c.b16 %v1699, %v1691
    %v2428 = vpack.c.b16 %v1700, %v1692
    %v2429 = vpack.c.b16 %v1701, %v1693
    %v2430 = vpack.c.b16 %v1710, %v1702
    %v2431 = vpack.c.b16 %v1711, %v1703
    %v2432 = vpack.c.b16 %v1712, %v1704
    %v2433 = vpack.c.b16 %v1713, %v1705
    %v2434 = vpack.c.b16 %v1714, %v1706
    %v2435 = vpack.c.b16 %v1715, %v1707
    %v2436 = vpack.c.b16 %v1716, %v1708
    %v2437 = vpack.c.b16 %v1717, %v1709
    %v2438 = vpack.c.b16 %v1726, %v1718
    %v2439 = vpack.c.b16 %v1727, %v1719
    %v2440 = vpack.c.b16 %v1728, %v1720
    %v2441 = vpack.c.b16 %v1729, %v1721
    %v2442 = vpack.c.b16 %v1730, %v1722
    %v2443 = vpack.c.b16 %v1731, %v1723
    %v2444 = vpack.c.b16 %v1732, %v1724
    %v2445 = vpack.c.b16 %v1733, %v1725
    %v2446 = vpack.c.b16 %v1742, %v1734
    %v2447 = vpack.c.b16 %v1743, %v1735
    %v2448 = vpack.c.b16 %v1744, %v1736
    %v2449 = vpack.c.b16 %v1745, %v1737
    %v2450 = vpack.c.b16 %v1746, %v1738
    %v2451 = vpack.c.b16 %v1747, %v1739
    %v2452 = vpack.c.b16 %v1748, %v1740
    %v2453 = vpack.c.b16 %v1749, %v1741
    %v2454 = vpack.c.b16 %v1758, %v1750
    %v2455 = vpack.c.b16 %v1759, %v1751
    %v2456 = vpack.c.b16 %v1760, %v1752
    %v2457 = vpack.c.b16 %v1761, %v1753
    %v2458 = vpack.c.b16 %v1762, %v1754
    %v2459 = vpack.c.b16 %v1763, %v1755
    %v2460 = vpack.c.b16 %v1764, %v1756
    %v2461 = vpack.c.b16 %v1765, %v1757
    %v2462 = vpack.c.b16 %v1774, %v1766
    %v2463 = vpack.c.b16 %v1775, %v1767
    %v2464 = vpack.c.b16 %v1776, %v1768
    %v2465 = vpack.c.b16 %v1777, %v1769
    %v2466 = vpack.c.b16 %v1778, %v1770
    %v2467 = vpack.c.b16 %v1779, %v1771
    %v2468 = vpack.c.b16 %v1780, %v1772
    %v2469 = vpack.c.b16 %v1781, %v1773
    %v2470 = vpack.c.b16 %v1790, %v1782
    %v2471 = vpack.c.b16 %v1791, %v1783
    %v2472 = vpack.c.b16 %v1792, %v1784
    %v2473 = vpack.c.b16 %v1793, %v1785
    %v2474 = vpack.c.b16 %v1794, %v1786
    %v2475 = vpack.c.b16 %v1795, %v1787
    %v2476 = vpack.c.b16 %v1796, %v1788
    %v2477 = vpack.c.b16 %v1797, %v1789
    %v2478 = vpack.c.b16 %v1806, %v1798
    %v2479 = vpack.c.b16 %v1807, %v1799
    %v2480 = vpack.c.b16 %v1808, %v1800
    %v2481 = vpack.c.b16 %v1809, %v1801
    %v2482 = vpack.c.b16 %v1810, %v1802
    %v2483 = vpack.c.b16 %v1811, %v1803
    %v2484 = vpack.c.b16 %v1812, %v1804
    %v2485 = vpack.c.b16 %v1813, %v1805
    %v2486 = vpack.c.b16 %v1822, %v1814
    %v2487 = vpack.c.b16 %v1823, %v1815
    %v2488 = vpack.c.b16 %v1824, %v1816
    %v2489 = vpack.c.b16 %v1825, %v1817
    %v2490 = vpack.c.b16 %v1826, %v1818
    %v2491 = vpack.c.b16 %v1827, %v1819
    %v2492 = vpack.c.b16 %v1828, %v1820
    %v2493 = vpack.c.b16 %v1829, %v1821
    %v2494 = vpack.c.b16 %v1838, %v1830
    %v2495 = vpack.c.b16 %v1839, %v1831
    %v2496 = vpack.c.b16 %v1840, %v1832
    %v2497 = vpack.c.b16 %v1841, %v1833
    %v2498 = vpack.c.b16 %v1842, %v1834
    %v2499 = vpack.c.b16 %v1843, %v1835
    %v2500 = vpack.c.b16 %v1844, %v1836
    %v2501 = vpack.c.b16 %v1845, %v1837
    %v2502 = vpack.c.b16 %v1854, %v1846
    %v2503 = vpack.c.b16 %v1855, %v1847
    %v2504 = vpack.c.b16 %v1856, %v1848
    %v2505 = vpack.c.b16 %v1857, %v1849
    %v2506 = vpack.c.b16 %v1858, %v1850
    %v2507 = vpack.c.b16 %v1859, %v1851
    %v2508 = vpack.c.b16 %v1860, %v1852
    %v2509 = vpack.c.b16 %v1861, %v1853
    %v2510 = vpack.c.b16 %v1870, %v1862
    %v2511 = vpack.c.b16 %v1871, %v1863
    %v2512 = vpack.c.b16 %v1872, %v1864
    %v2513 = vpack.c.b16 %v1873, %v1865
    %v2514 = vpack.c.b16 %v1874, %v1866
    %v2515 = vpack.c.b16 %v1875, %v1867
    %v2516 = vpack.c.b16 %v1876, %v1868
    %v2517 = vpack.c.b16 %v1877, %v1869
    %v2518 = vpack.c.b16 %v1886, %v1878
    %v2519 = vpack.c.b16 %v1887, %v1879
    %v2520 = vpack.c.b16 %v1888, %v1880
    %v2521 = vpack.c.b16 %v1889, %v1881
    %v2522 = vpack.c.b16 %v1890, %v1882
    %v2523 = vpack.c.b16 %v1891, %v1883
    %v2524 = vpack.c.b16 %v1892, %v1884
    %v2525 = vpack.c.b16 %v1893, %v1885
    %v2526 = vpack.c.b16 %v1902, %v1894
    %v2527 = vpack.c.b16 %v1903, %v1895
    %v2528 = vpack.c.b16 %v1904, %v1896
    %v2529 = vpack.c.b16 %v1905, %v1897
    %v2530 = vpack.c.b16 %v1906, %v1898
    %v2531 = vpack.c.b16 %v1907, %v1899
    %v2532 = vpack.c.b16 %v1908, %v1900
    %v2533 = vpack.c.b16 %v1909, %v1901
    %v2534 = vpack.c.b16 %v1918, %v1910
    %v2535 = vpack.c.b16 %v1919, %v1911
    %v2536 = vpack.c.b16 %v1920, %v1912
    %v2537 = vpack.c.b16 %v1921, %v1913
    %v2538 = vpack.c.b16 %v1922, %v1914
    %v2539 = vpack.c.b16 %v1923, %v1915
    %v2540 = vpack.c.b16 %v1924, %v1916
    %v2541 = vpack.c.b16 %v1925, %v1917
    %v2542 = vpack.c.b16 %v1934, %v1926
    %v2543 = vpack.c.b16 %v1935, %v1927
    %v2544 = vpack.c.b16 %v1936, %v1928
    %v2545 = vpack.c.b16 %v1937, %v1929
    %v2546 = vpack.c.b16 %v1938, %v1930
    %v2547 = vpack.c.b16 %v1939, %v1931
    %v2548 = vpack.c.b16 %v1940, %v1932
    %v2549 = vpack.c.b16 %v1941, %v1933
    %v2550 = vpack.c.b16 %v1950, %v1942
    %v2551 = vpack.c.b16 %v1951, %v1943
    %v2552 = vpack.c.b16 %v1952, %v1944
    %v2553 = vpack.c.b16 %v1953, %v1945
    %v2554 = vpack.c.b16 %v1954, %v1946
    %v2555 = vpack.c.b16 %v1955, %v1947
    %v2556 = vpack.c.b16 %v1956, %v1948
    %v2557 = vpack.c.b16 %v1957, %v1949
    %v2558 = vpack.c.b16 %v1966, %v1958
    %v2559 = vpack.c.b16 %v1967, %v1959
    %v2560 = vpack.c.b16 %v1968, %v1960
    %v2561 = vpack.c.b16 %v1969, %v1961
    %v2562 = vpack.c.b16 %v1970, %v1962
    %v2563 = vpack.c.b16 %v1971, %v1963
    %v2564 = vpack.c.b16 %v1972, %v1964
    %v2565 = vpack.c.b16 %v1973, %v1965
    %v2566 = vpack.c.b16 %v1982, %v1974
    %v2567 = vpack.c.b16 %v1983, %v1975
    %v2568 = vpack.c.b16 %v1984, %v1976
    %v2569 = vpack.c.b16 %v1985, %v1977
    %v2570 = vpack.c.b16 %v1986, %v1978
    %v2571 = vpack.c.b16 %v1987, %v1979
    %v2572 = vpack.c.b16 %v1988, %v1980
    %v2573 = vpack.c.b16 %v1989, %v1981
    %v2574 = vpack.c.b16 %v1998, %v1990
    %v2575 = vpack.c.b16 %v1999, %v1991
    %v2576 = vpack.c.b16 %v2000, %v1992
    %v2577 = vpack.c.b16 %v2001, %v1993
    %v2578 = vpack.c.b16 %v2002, %v1994
    %v2579 = vpack.c.b16 %v2003, %v1995
    %v2580 = vpack.c.b16 %v2004, %v1996
    %v2581 = vpack.c.b16 %v2005, %v1997
    %v2582 = vpack.c.b16 %v2014, %v2006
    %v2583 = vpack.c.b16 %v2015, %v2007
    %v2584 = vpack.c.b16 %v2016, %v2008
    %v2585 = vpack.c.b16 %v2017, %v2009
    %v2586 = vpack.c.b16 %v2018, %v2010
    %v2587 = vpack.c.b16 %v2019, %v2011
    %v2588 = vpack.c.b16 %v2020, %v2012
    %v2589 = vpack.c.b16 %v2021, %v2013
    %v2590 = vpack.c.b16 %v2030, %v2022
    %v2591 = vpack.c.b16 %v2031, %v2023
    %v2592 = vpack.c.b16 %v2032, %v2024
    %v2593 = vpack.c.b16 %v2033, %v2025
    %v2594 = vpack.c.b16 %v2034, %v2026
    %v2595 = vpack.c.b16 %v2035, %v2027
    %v2596 = vpack.c.b16 %v2036, %v2028
    %v2597 = vpack.c.b16 %v2037, %v2029
    %v2598 = vpack.c.b16 %v2046, %v2038
    %v2599 = vpack.c.b16 %v2047, %v2039
    %v2600 = vpack.c.b16 %v2048, %v2040
    %v2601 = vpack.c.b16 %v2049, %v2041
    %v2602 = vpack.c.b16 %v2050, %v2042
    %v2603 = vpack.c.b16 %v2051, %v2043
    %v2604 = vpack.c.b16 %v2052, %v2044
    %v2605 = vpack.c.b16 %v2053, %v2045
    %v2606 = vpack.c.b16 %v2062, %v2054
    %v2607 = vpack.c.b16 %v2063, %v2055
    %v2608 = vpack.c.b16 %v2064, %v2056
    %v2609 = vpack.c.b16 %v2065, %v2057
    %v2610 = vpack.c.b16 %v2066, %v2058
    %v2611 = vpack.c.b16 %v2067, %v2059
    %v2612 = vpack.c.b16 %v2068, %v2060
    %v2613 = vpack.c.b16 %v2069, %v2061
    %v2614 = vpack.c.b16 %v2078, %v2070
    %v2615 = vpack.c.b16 %v2079, %v2071
    %v2616 = vpack.c.b16 %v2080, %v2072
    %v2617 = vpack.c.b16 %v2081, %v2073
    %v2618 = vpack.c.b16 %v2082, %v2074
    %v2619 = vpack.c.b16 %v2083, %v2075
    %v2620 = vpack.c.b16 %v2084, %v2076
    %v2621 = vpack.c.b16 %v2085, %v2077
    %v2622 = vpack.c.b16 %v2094, %v2086
    %v2623 = vpack.c.b16 %v2095, %v2087
    %v2624 = vpack.c.b16 %v2096, %v2088
    %v2625 = vpack.c.b16 %v2097, %v2089
    %v2626 = vpack.c.b16 %v2098, %v2090
    %v2627 = vpack.c.b16 %v2099, %v2091
    %v2628 = vpack.c.b16 %v2100, %v2092
    %v2629 = vpack.c.b16 %v2101, %v2093
    %v2630 = vpack.c.b16 %v2110, %v2102
    %v2631 = vpack.c.b16 %v2111, %v2103
    %v2632 = vpack.c.b16 %v2112, %v2104
    %v2633 = vpack.c.b16 %v2113, %v2105
    %v2634 = vpack.c.b16 %v2114, %v2106
    %v2635 = vpack.c.b16 %v2115, %v2107
    %v2636 = vpack.c.b16 %v2116, %v2108
    %v2637 = vpack.c.b16 %v2117, %v2109
    %v2638 = vpack.c.b16 %v2126, %v2118
    %v2639 = vpack.c.b16 %v2127, %v2119
    %v2640 = vpack.c.b16 %v2128, %v2120
    %v2641 = vpack.c.b16 %v2129, %v2121
    %v2642 = vpack.c.b16 %v2130, %v2122
    %v2643 = vpack.c.b16 %v2131, %v2123
    %v2644 = vpack.c.b16 %v2132, %v2124
    %v2645 = vpack.c.b16 %v2133, %v2125
    %3158 = vmatprep.subr.bf16.mxu0 %v2135
    %3159 = vmatpush1.bf16.msra.mxu0 %v2134
    %3160 = vmatprep.subr.bf16.mxu0 %v2143
    %3161 = vmatpush1.bf16.msra.mxu0 %v2142
    %3162 = vmatprep.subr.bf16.mxu0 %v2151
    %3163 = vmatpush1.bf16.msra.mxu0 %v2150
    %3164 = vmatprep.subr.bf16.mxu0 %v2159
    %3165 = vmatpush1.bf16.msra.mxu0 %v2158
    %3166 = vmatprep.subr.bf16.mxu0 %v2167
    %3167 = vmatpush1.bf16.msra.mxu0 %v2166
    %3168 = vmatprep.subr.bf16.mxu0 %v2175
    %3169 = vmatpush1.bf16.msra.mxu0 %v2174
    %3170 = vmatprep.subr.bf16.mxu0 %v2183
    %3171 = vmatpush1.bf16.msra.mxu0 %v2182
    %3172 = vmatprep.subr.bf16.mxu0 %v2191
    %3173 = vmatpush1.bf16.msra.mxu0 %v2190
    %3174 = vmatprep.subr.bf16.mxu0 %v2199
    %3175 = vmatpush1.bf16.msra.mxu0 %v2198
    %3176 = vmatprep.subr.bf16.mxu0 %v2207
    %3177 = vmatpush1.bf16.msra.mxu0 %v2206
    %3178 = vmatprep.subr.bf16.mxu0 %v2215
    %3179 = vmatpush1.bf16.msra.mxu0 %v2214
    %3180 = vmatprep.subr.bf16.mxu0 %v2223
    %3181 = vmatpush1.bf16.msra.mxu0 %v2222
    %3182 = vmatprep.subr.bf16.mxu0 %v2231
    %3183 = vmatpush1.bf16.msra.mxu0 %v2230
    %3184 = vmatprep.subr.bf16.mxu0 %v2239
    %3185 = vmatpush1.bf16.msra.mxu0 %v2238
    %3186 = vmatprep.subr.bf16.mxu0 %v2247
    %3187 = vmatpush1.bf16.msra.mxu0 %v2246
    %3188 = vmatprep.subr.bf16.mxu0 %v2255
    %3189 = vmatpush1.bf16.msra.mxu0 %v2254
    %3190 = vmatprep.mubr.bf16.mxu0 %v583
    %3191 = vmatmul.mubr.bf16.gmra.mrb[0].mxu0 %v582
    %v3192 = vpop.f32.mrb[0].mxu0
    %v3193 = vadd.f32 0.0, %v3192
    %v3194 = vpop.f32.mrb[0].mxu0
    %v3195 = vadd.f32 0.0, %v3194
    %v3196 = vpop.f32.mrb[0].mxu0
    %v3197 = vpop.f32.mrb[0].mxu0
    %3198 = vdwg.mxu0
    %3199 = vmatprep.subr.bf16.mxu0 %v2263
    %3200 = vmatpush1.bf16.msra.mxu0 %v2262
    %3201 = vmatprep.subr.bf16.mxu0 %v2271
    %3202 = vmatpush1.bf16.msra.mxu0 %v2270
    %3203 = vmatprep.subr.bf16.mxu0 %v2279
    %3204 = vmatpush1.bf16.msra.mxu0 %v2278
    %3205 = vmatprep.subr.bf16.mxu0 %v2287
    %3206 = vmatpush1.bf16.msra.mxu0 %v2286
    %3207 = vmatprep.subr.bf16.mxu0 %v2295
    %3208 = vmatpush1.bf16.msra.mxu0 %v2294
    %3209 = vmatprep.subr.bf16.mxu0 %v2303
    %3210 = vmatpush1.bf16.msra.mxu0 %v2302
    %3211 = vmatprep.subr.bf16.mxu0 %v2311
    %3212 = vmatpush1.bf16.msra.mxu0 %v2310
    %3213 = vmatprep.subr.bf16.mxu0 %v2319
    %3214 = vmatpush1.bf16.msra.mxu0 %v2318
    %3215 = vmatprep.subr.bf16.mxu0 %v2327
    %3216 = vmatpush1.bf16.msra.mxu0 %v2326
    %3217 = vmatprep.subr.bf16.mxu0 %v2335
    %3218 = vmatpush1.bf16.msra.mxu0 %v2334
    %3219 = vmatprep.subr.bf16.mxu0 %v2343
    %3220 = vmatpush1.bf16.msra.mxu0 %v2342
    %3221 = vmatprep.subr.bf16.mxu0 %v2351
    %3222 = vmatpush1.bf16.msra.mxu0 %v2350
    %3223 = vmatprep.subr.bf16.mxu0 %v2359
    %3224 = vmatpush1.bf16.msra.mxu0 %v2358
    %3225 = vmatprep.subr.bf16.mxu0 %v2367
    %3226 = vmatpush1.bf16.msra.mxu0 %v2366
    %3227 = vmatprep.subr.bf16.mxu0 %v2375
    %3228 = vmatpush1.bf16.msra.mxu0 %v2374
    %3229 = vmatprep.subr.bf16.mxu0 %v2383
    %3230 = vmatpush1.bf16.msra.mxu0 %v2382
    %3231 = vmatprep.mubr.bf16.mxu0 %v585
    %3232 = vmatmul.mubr.bf16.gmra.mrb[0].mxu0 %v584
    %v3233 = vpop.f32.mrb[0].mxu0
    %v3234 = vadd.f32 %v3193, %v3233
    %v3235 = vpop.f32.mrb[0].mxu0
    %v3236 = vadd.f32 %v3195, %v3235
    %v3237 = vpop.f32.mrb[0].mxu0
    %v3238 = vpop.f32.mrb[0].mxu0
    %3239 = vdwg.mxu0
    %3240 = vmatprep.subr.bf16.mxu0 %v2391
    %3241 = vmatpush1.bf16.msra.mxu0 %v2390
    %3242 = vmatprep.subr.bf16.mxu0 %v2399
    %3243 = vmatpush1.bf16.msra.mxu0 %v2398
    %3244 = vmatprep.subr.bf16.mxu0 %v2407
    %3245 = vmatpush1.bf16.msra.mxu0 %v2406
    %3246 = vmatprep.subr.bf16.mxu0 %v2415
    %3247 = vmatpush1.bf16.msra.mxu0 %v2414
    %3248 = vmatprep.subr.bf16.mxu0 %v2423
    %3249 = vmatpush1.bf16.msra.mxu0 %v2422
    %3250 = vmatprep.subr.bf16.mxu0 %v2431
    %3251 = vmatpush1.bf16.msra.mxu0 %v2430
    %3252 = vmatprep.subr.bf16.mxu0 %v2439
    %3253 = vmatpush1.bf16.msra.mxu0 %v2438
    %3254 = vmatprep.subr.bf16.mxu0 %v2447
    %3255 = vmatpush1.bf16.msra.mxu0 %v2446
    %3256 = vmatprep.subr.bf16.mxu0 %v2455
    %3257 = vmatpush1.bf16.msra.mxu0 %v2454
    %3258 = vmatprep.subr.bf16.mxu0 %v2463
    %3259 = vmatpush1.bf16.msra.mxu0 %v2462
    %3260 = vmatprep.subr.bf16.mxu0 %v2471
    %3261 = vmatpush1.bf16.msra.mxu0 %v2470
    %3262 = vmatprep.subr.bf16.mxu0 %v2479
    %3263 = vmatpush1.bf16.msra.mxu0 %v2478
    %3264 = vmatprep.subr.bf16.mxu0 %v2487
    %3265 = vmatpush1.bf16.msra.mxu0 %v2486
    %3266 = vmatprep.subr.bf16.mxu0 %v2495
    %3267 = vmatpush1.bf16.msra.mxu0 %v2494
    %3268 = vmatprep.subr.bf16.mxu0 %v2503
    %3269 = vmatpush1.bf16.msra.mxu0 %v2502
    %3270 = vmatprep.subr.bf16.mxu0 %v2511
    %3271 = vmatpush1.bf16.msra.mxu0 %v2510
    %3272 = vmatprep.mubr.bf16.mxu0 %v587
    %3273 = vmatmul.mubr.bf16.gmra.mrb[0].mxu0 %v586
    %v3274 = vpop.f32.mrb[0].mxu0
    %v3275 = vadd.f32 %v3234, %v3274
    %v3276 = vpop.f32.mrb[0].mxu0
    %v3277 = vadd.f32 %v3236, %v3276
    %v3278 = vpop.f32.mrb[0].mxu0
    %v3279 = vpop.f32.mrb[0].mxu0
    %3280 = vdwg.mxu0
    %3281 = vmatprep.subr.bf16.mxu0 %v2519
    %3282 = vmatpush1.bf16.msra.mxu0 %v2518
    %3283 = vmatprep.subr.bf16.mxu0 %v2527
    %3284 = vmatpush1.bf16.msra.mxu0 %v2526
    %3285 = vmatprep.subr.bf16.mxu0 %v2535
    %3286 = vmatpush1.bf16.msra.mxu0 %v2534
    %3287 = vmatprep.subr.bf16.mxu0 %v2543
    %3288 = vmatpush1.bf16.msra.mxu0 %v2542
    %3289 = vmatprep.subr.bf16.mxu0 %v2551
    %3290 = vmatpush1.bf16.msra.mxu0 %v2550
    %3291 = vmatprep.subr.bf16.mxu0 %v2559
    %3292 = vmatpush1.bf16.msra.mxu0 %v2558
    %3293 = vmatprep.subr.bf16.mxu0 %v2567
    %3294 = vmatpush1.bf16.msra.mxu0 %v2566
    %3295 = vmatprep.subr.bf16.mxu0 %v2575
    %3296 = vmatpush1.bf16.msra.mxu0 %v2574
    %3297 = vmatprep.subr.bf16.mxu0 %v2583
    %3298 = vmatpush1.bf16.msra.mxu0 %v2582
    %3299 = vmatprep.subr.bf16.mxu0 %v2591
    %3300 = vmatpush1.bf16.msra.mxu0 %v2590
    %3301 = vmatprep.subr.bf16.mxu0 %v2599
    %3302 = vmatpush1.bf16.msra.mxu0 %v2598
    %3303 = vmatprep.subr.bf16.mxu0 %v2607
    %3304 = vmatpush1.bf16.msra.mxu0 %v2606
    %3305 = vmatprep.subr.bf16.mxu0 %v2615
    %3306 = vmatpush1.bf16.msra.mxu0 %v2614
    %3307 = vmatprep.subr.bf16.mxu0 %v2623
    %3308 = vmatpush1.bf16.msra.mxu0 %v2622
    %3309 = vmatprep.subr.bf16.mxu0 %v2631
    %3310 = vmatpush1.bf16.msra.mxu0 %v2630
    %3311 = vmatprep.subr.bf16.mxu0 %v2639
    %3312 = vmatpush1.bf16.msra.mxu0 %v2638
    %3313 = vmatprep.mubr.bf16.mxu0 %v589
    %3314 = vmatmul.mubr.bf16.gmra.mrb[0].mxu0 %v588
    %v3315 = vpop.f32.mrb[0].mxu0
    %v3316 = vadd.f32 %v3275, %v3315
    %v3317 = vpop.f32.mrb[0].mxu0
    %v3318 = vadd.f32 %v3277, %v3317
    %v3319 = vpop.f32.mrb[0].mxu0
    %v3320 = vpop.f32.mrb[0].mxu0
    %3321 = vdwg.mxu0
    %3322 = vmatprep.subr.bf16.mxu0 %v2137
    %3323 = vmatpush1.bf16.msra.mxu0 %v2136
    %3324 = vmatprep.subr.bf16.mxu0 %v2145
    %3325 = vmatpush1.bf16.msra.mxu0 %v2144
    %3326 = vmatprep.subr.bf16.mxu0 %v2153
    %3327 = vmatpush1.bf16.msra.mxu0 %v2152
    %3328 = vmatprep.subr.bf16.mxu0 %v2161
    %3329 = vmatpush1.bf16.msra.mxu0 %v2160
    %3330 = vmatprep.subr.bf16.mxu0 %v2169
    %3331 = vmatpush1.bf16.msra.mxu0 %v2168
    %3332 = vmatprep.subr.bf16.mxu0 %v2177
    %3333 = vmatpush1.bf16.msra.mxu0 %v2176
    %3334 = vmatprep.subr.bf16.mxu0 %v2185
    %3335 = vmatpush1.bf16.msra.mxu0 %v2184
    %3336 = vmatprep.subr.bf16.mxu0 %v2193
    %3337 = vmatpush1.bf16.msra.mxu0 %v2192
    %3338 = vmatprep.subr.bf16.mxu0 %v2201
    %3339 = vmatpush1.bf16.msra.mxu0 %v2200
    %3340 = vmatprep.subr.bf16.mxu0 %v2209
    %3341 = vmatpush1.bf16.msra.mxu0 %v2208
    %3342 = vmatprep.subr.bf16.mxu0 %v2217
    %3343 = vmatpush1.bf16.msra.mxu0 %v2216
    %3344 = vmatprep.subr.bf16.mxu0 %v2225
    %3345 = vmatpush1.bf16.msra.mxu0 %v2224
    %3346 = vmatprep.subr.bf16.mxu0 %v2233
    %3347 = vmatpush1.bf16.msra.mxu0 %v2232
    %3348 = vmatprep.subr.bf16.mxu0 %v2241
    %3349 = vmatpush1.bf16.msra.mxu0 %v2240
    %3350 = vmatprep.subr.bf16.mxu0 %v2249
    %3351 = vmatpush1.bf16.msra.mxu0 %v2248
    %3352 = vmatprep.subr.bf16.mxu0 %v2257
    %3353 = vmatpush1.bf16.msra.mxu0 %v2256
    %3354 = vmatprep.mubr.bf16.mxu0 %v583
    %3355 = vmatmul.mubr.bf16.gmra.mrb[0].mxu0 %v582
    %v3356 = vpop.f32.mrb[0].mxu0
    %v3357 = vadd.f32 0.0, %v3356
    %v3358 = vpop.f32.mrb[0].mxu0
    %v3359 = vadd.f32 0.0, %v3358
    %v3360 = vpop.f32.mrb[0].mxu0
    %v3361 = vpop.f32.mrb[0].mxu0
    %3362 = vdwg.mxu0
    %3363 = vmatprep.subr.bf16.mxu0 %v2265
    %3364 = vmatpush1.bf16.msra.mxu0 %v2264
    %3365 = vmatprep.subr.bf16.mxu0 %v2273
    %3366 = vmatpush1.bf16.msra.mxu0 %v2272
    %3367 = vmatprep.subr.bf16.mxu0 %v2281
    %3368 = vmatpush1.bf16.msra.mxu0 %v2280
    %3369 = vmatprep.subr.bf16.mxu0 %v2289
    %3370 = vmatpush1.bf16.msra.mxu0 %v2288
    %3371 = vmatprep.subr.bf16.mxu0 %v2297
    %3372 = vmatpush1.bf16.msra.mxu0 %v2296
    %3373 = vmatprep.subr.bf16.mxu0 %v2305
    %3374 = vmatpush1.bf16.msra.mxu0 %v2304
    %3375 = vmatprep.subr.bf16.mxu0 %v2313
    %3376 = vmatpush1.bf16.msra.mxu0 %v2312
    %3377 = vmatprep.subr.bf16.mxu0 %v2321
    %3378 = vmatpush1.bf16.msra.mxu0 %v2320
    %3379 = vmatprep.subr.bf16.mxu0 %v2329
    %3380 = vmatpush1.bf16.msra.mxu0 %v2328
    %3381 = vmatprep.subr.bf16.mxu0 %v2337
    %3382 = vmatpush1.bf16.msra.mxu0 %v2336
    %3383 = vmatprep.subr.bf16.mxu0 %v2345
    %3384 = vmatpush1.bf16.msra.mxu0 %v2344
    %3385 = vmatprep.subr.bf16.mxu0 %v2353
    %3386 = vmatpush1.bf16.msra.mxu0 %v2352
    %3387 = vmatprep.subr.bf16.mxu0 %v2361
    %3388 = vmatpush1.bf16.msra.mxu0 %v2360
    %3389 = vmatprep.subr.bf16.mxu0 %v2369
    %3390 = vmatpush1.bf16.msra.mxu0 %v2368
    %3391 = vmatprep.subr.bf16.mxu0 %v2377
    %3392 = vmatpush1.bf16.msra.mxu0 %v2376
    %3393 = vmatprep.subr.bf16.mxu0 %v2385
    %3394 = vmatpush1.bf16.msra.mxu0 %v2384
    %3395 = vmatprep.mubr.bf16.mxu0 %v585
    %3396 = vmatmul.mubr.bf16.gmra.mrb[0].mxu0 %v584
    %v3397 = vpop.f32.mrb[0].mxu0
    %v3398 = vadd.f32 %v3357, %v3397
    %v3399 = vpop.f32.mrb[0].mxu0
    %v3400 = vadd.f32 %v3359, %v3399
    %v3401 = vpop.f32.mrb[0].mxu0
    %v3402 = vpop.f32.mrb[0].mxu0
    %3403 = vdwg.mxu0
    %3404 = vmatprep.subr.bf16.mxu0 %v2393
    %3405 = vmatpush1.bf16.msra.mxu0 %v2392
    %3406 = vmatprep.subr.bf16.mxu0 %v2401
    %3407 = vmatpush1.bf16.msra.mxu0 %v2400
    %3408 = vmatprep.subr.bf16.mxu0 %v2409
    %3409 = vmatpush1.bf16.msra.mxu0 %v2408
    %3410 = vmatprep.subr.bf16.mxu0 %v2417
    %3411 = vmatpush1.bf16.msra.mxu0 %v2416
    %3412 = vmatprep.subr.bf16.mxu0 %v2425
    %3413 = vmatpush1.bf16.msra.mxu0 %v2424
    %3414 = vmatprep.subr.bf16.mxu0 %v2433
    %3415 = vmatpush1.bf16.msra.mxu0 %v2432
    %3416 = vmatprep.subr.bf16.mxu0 %v2441
    %3417 = vmatpush1.bf16.msra.mxu0 %v2440
    %3418 = vmatprep.subr.bf16.mxu0 %v2449
    %3419 = vmatpush1.bf16.msra.mxu0 %v2448
    %3420 = vmatprep.subr.bf16.mxu0 %v2457
    %3421 = vmatpush1.bf16.msra.mxu0 %v2456
    %3422 = vmatprep.subr.bf16.mxu0 %v2465
    %3423 = vmatpush1.bf16.msra.mxu0 %v2464
    %3424 = vmatprep.subr.bf16.mxu0 %v2473
    %3425 = vmatpush1.bf16.msra.mxu0 %v2472
    %3426 = vmatprep.subr.bf16.mxu0 %v2481
    %3427 = vmatpush1.bf16.msra.mxu0 %v2480
    %3428 = vmatprep.subr.bf16.mxu0 %v2489
    %3429 = vmatpush1.bf16.msra.mxu0 %v2488
    %3430 = vmatprep.subr.bf16.mxu0 %v2497
    %3431 = vmatpush1.bf16.msra.mxu0 %v2496
    %3432 = vmatprep.subr.bf16.mxu0 %v2505
    %3433 = vmatpush1.bf16.msra.mxu0 %v2504
    %3434 = vmatprep.subr.bf16.mxu0 %v2513
    %3435 = vmatpush1.bf16.msra.mxu0 %v2512
    %3436 = vmatprep.mubr.bf16.mxu0 %v587
    %3437 = vmatmul.mubr.bf16.gmra.mrb[0].mxu0 %v586
    %v3438 = vpop.f32.mrb[0].mxu0
    %v3439 = vadd.f32 %v3398, %v3438
    %v3440 = vpop.f32.mrb[0].mxu0
    %v3441 = vadd.f32 %v3400, %v3440
    %v3442 = vpop.f32.mrb[0].mxu0
    %v3443 = vpop.f32.mrb[0].mxu0
    %3444 = vdwg.mxu0
    %3445 = vmatprep.subr.bf16.mxu0 %v2521
    %3446 = vmatpush1.bf16.msra.mxu0 %v2520
    %3447 = vmatprep.subr.bf16.mxu0 %v2529
    %3448 = vmatpush1.bf16.msra.mxu0 %v2528
    %3449 = vmatprep.subr.bf16.mxu0 %v2537
    %3450 = vmatpush1.bf16.msra.mxu0 %v2536
    %3451 = vmatprep.subr.bf16.mxu0 %v2545
    %3452 = vmatpush1.bf16.msra.mxu0 %v2544
    %3453 = vmatprep.subr.bf16.mxu0 %v2553
    %3454 = vmatpush1.bf16.msra.mxu0 %v2552
    %3455 = vmatprep.subr.bf16.mxu0 %v2561
    %3456 = vmatpush1.bf16.msra.mxu0 %v2560
    %3457 = vmatprep.subr.bf16.mxu0 %v2569
    %3458 = vmatpush1.bf16.msra.mxu0 %v2568
    %3459 = vmatprep.subr.bf16.mxu0 %v2577
    %3460 = vmatpush1.bf16.msra.mxu0 %v2576
    %3461 = vmatprep.subr.bf16.mxu0 %v2585
    %3462 = vmatpush1.bf16.msra.mxu0 %v2584
    %3463 = vmatprep.subr.bf16.mxu0 %v2593
    %3464 = vmatpush1.bf16.msra.mxu0 %v2592
    %3465 = vmatprep.subr.bf16.mxu0 %v2601
    %3466 = vmatpush1.bf16.msra.mxu0 %v2600
    %3467 = vmatprep.subr.bf16.mxu0 %v2609
    %3468 = vmatpush1.bf16.msra.mxu0 %v2608
    %3469 = vmatprep.subr.bf16.mxu0 %v2617
    %3470 = vmatpush1.bf16.msra.mxu0 %v2616
    %3471 = vmatprep.subr.bf16.mxu0 %v2625
    %3472 = vmatpush1.bf16.msra.mxu0 %v2624
    %3473 = vmatprep.subr.bf16.mxu0 %v2633
    %3474 = vmatpush1.bf16.msra.mxu0 %v2632
    %3475 = vmatprep.subr.bf16.mxu0 %v2641
    %3476 = vmatpush1.bf16.msra.mxu0 %v2640
    %3477 = vmatprep.mubr.bf16.mxu0 %v589
    %3478 = vmatmul.mubr.bf16.gmra.mrb[0].mxu0 %v588
    %v3479 = vpop.f32.mrb[0].mxu0
    %v3480 = vadd.f32 %v3439, %v3479
    %v3481 = vpop.f32.mrb[0].mxu0
    %v3482 = vadd.f32 %v3441, %v3481
    %v3483 = vpop.f32.mrb[0].mxu0
    %v3484 = vpop.f32.mrb[0].mxu0
    %3485 = vdwg.mxu0
    %3486 = vmatprep.subr.bf16.mxu0 %v2139
    %3487 = vmatpush1.bf16.msra.mxu0 %v2138
    %3488 = vmatprep.subr.bf16.mxu0 %v2147
    %3489 = vmatpush1.bf16.msra.mxu0 %v2146
    %3490 = vmatprep.subr.bf16.mxu0 %v2155
    %3491 = vmatpush1.bf16.msra.mxu0 %v2154
    %3492 = vmatprep.subr.bf16.mxu0 %v2163
    %3493 = vmatpush1.bf16.msra.mxu0 %v2162
    %3494 = vmatprep.subr.bf16.mxu0 %v2171
    %3495 = vmatpush1.bf16.msra.mxu0 %v2170
    %3496 = vmatprep.subr.bf16.mxu0 %v2179
    %3497 = vmatpush1.bf16.msra.mxu0 %v2178
    %3498 = vmatprep.subr.bf16.mxu0 %v2187
    %3499 = vmatpush1.bf16.msra.mxu0 %v2186
    %3500 = vmatprep.subr.bf16.mxu0 %v2195
    %3501 = vmatpush1.bf16.msra.mxu0 %v2194
    %3502 = vmatprep.subr.bf16.mxu0 %v2203
    %3503 = vmatpush1.bf16.msra.mxu0 %v2202
    %3504 = vmatprep.subr.bf16.mxu0 %v2211
    %3505 = vmatpush1.bf16.msra.mxu0 %v2210
    %3506 = vmatprep.subr.bf16.mxu0 %v2219
    %3507 = vmatpush1.bf16.msra.mxu0 %v2218
    %3508 = vmatprep.subr.bf16.mxu0 %v2227
    %3509 = vmatpush1.bf16.msra.mxu0 %v2226
    %3510 = vmatprep.subr.bf16.mxu0 %v2235
    %3511 = vmatpush1.bf16.msra.mxu0 %v2234
    %3512 = vmatprep.subr.bf16.mxu0 %v2243
    %3513 = vmatpush1.bf16.msra.mxu0 %v2242
    %3514 = vmatprep.subr.bf16.mxu0 %v2251
    %3515 = vmatpush1.bf16.msra.mxu0 %v2250
    %3516 = vmatprep.subr.bf16.mxu0 %v2259
    %3517 = vmatpush1.bf16.msra.mxu0 %v2258
    %3518 = vmatprep.mubr.bf16.mxu0 %v583
    %3519 = vmatmul.mubr.bf16.gmra.mrb[0].mxu0 %v582
    %v3520 = vpop.f32.mrb[0].mxu0
    %v3521 = vadd.f32 0.0, %v3520
    %v3522 = vpop.f32.mrb[0].mxu0
    %v3523 = vadd.f32 0.0, %v3522
    %v3524 = vpop.f32.mrb[0].mxu0
    %v3525 = vpop.f32.mrb[0].mxu0
    %3526 = vdwg.mxu0
    %3527 = vmatprep.subr.bf16.mxu0 %v2267
    %3528 = vmatpush1.bf16.msra.mxu0 %v2266
    %3529 = vmatprep.subr.bf16.mxu0 %v2275
    %3530 = vmatpush1.bf16.msra.mxu0 %v2274
    %3531 = vmatprep.subr.bf16.mxu0 %v2283
    %3532 = vmatpush1.bf16.msra.mxu0 %v2282
    %3533 = vmatprep.subr.bf16.mxu0 %v2291
    %3534 = vmatpush1.bf16.msra.mxu0 %v2290
    %3535 = vmatprep.subr.bf16.mxu0 %v2299
    %3536 = vmatpush1.bf16.msra.mxu0 %v2298
    %3537 = vmatprep.subr.bf16.mxu0 %v2307
    %3538 = vmatpush1.bf16.msra.mxu0 %v2306
    %3539 = vmatprep.subr.bf16.mxu0 %v2315
    %3540 = vmatpush1.bf16.msra.mxu0 %v2314
    %3541 = vmatprep.subr.bf16.mxu0 %v2323
    %3542 = vmatpush1.bf16.msra.mxu0 %v2322
    %3543 = vmatprep.subr.bf16.mxu0 %v2331
    %3544 = vmatpush1.bf16.msra.mxu0 %v2330
    %3545 = vmatprep.subr.bf16.mxu0 %v2339
    %3546 = vmatpush1.bf16.msra.mxu0 %v2338
    %3547 = vmatprep.subr.bf16.mxu0 %v2347
    %3548 = vmatpush1.bf16.msra.mxu0 %v2346
    %3549 = vmatprep.subr.bf16.mxu0 %v2355
    %3550 = vmatpush1.bf16.msra.mxu0 %v2354
    %3551 = vmatprep.subr.bf16.mxu0 %v2363
    %3552 = vmatpush1.bf16.msra.mxu0 %v2362
    %3553 = vmatprep.subr.bf16.mxu0 %v2371
    %3554 = vmatpush1.bf16.msra.mxu0 %v2370
    %3555 = vmatprep.subr.bf16.mxu0 %v2379
    %3556 = vmatpush1.bf16.msra.mxu0 %v2378
    %3557 = vmatprep.subr.bf16.mxu0 %v2387
    %3558 = vmatpush1.bf16.msra.mxu0 %v2386
    %3559 = vmatprep.mubr.bf16.mxu0 %v585
    %3560 = vmatmul.mubr.bf16.gmra.mrb[0].mxu0 %v584
    %v3561 = vpop.f32.mrb[0].mxu0
    %v3562 = vadd.f32 %v3521, %v3561
    %v3563 = vpop.f32.mrb[0].mxu0
    %v3564 = vadd.f32 %v3523, %v3563
    %v3565 = vpop.f32.mrb[0].mxu0
    %v3566 = vpop.f32.mrb[0].mxu0
    %3567 = vdwg.mxu0
    %3568 = vmatprep.subr.bf16.mxu0 %v2395
    %3569 = vmatpush1.bf16.msra.mxu0 %v2394
    %3570 = vmatprep.subr.bf16.mxu0 %v2403
    %3571 = vmatpush1.bf16.msra.mxu0 %v2402
    %3572 = vmatprep.subr.bf16.mxu0 %v2411
    %3573 = vmatpush1.bf16.msra.mxu0 %v2410
    %3574 = vmatprep.subr.bf16.mxu0 %v2419
    %3575 = vmatpush1.bf16.msra.mxu0 %v2418
    %3576 = vmatprep.subr.bf16.mxu0 %v2427
    %3577 = vmatpush1.bf16.msra.mxu0 %v2426
    %3578 = vmatprep.subr.bf16.mxu0 %v2435
    %3579 = vmatpush1.bf16.msra.mxu0 %v2434
    %3580 = vmatprep.subr.bf16.mxu0 %v2443
    %3581 = vmatpush1.bf16.msra.mxu0 %v2442
    %3582 = vmatprep.subr.bf16.mxu0 %v2451
    %3583 = vmatpush1.bf16.msra.mxu0 %v2450
    %3584 = vmatprep.subr.bf16.mxu0 %v2459
    %3585 = vmatpush1.bf16.msra.mxu0 %v2458
    %3586 = vmatprep.subr.bf16.mxu0 %v2467
    %3587 = vmatpush1.bf16.msra.mxu0 %v2466
    %3588 = vmatprep.subr.bf16.mxu0 %v2475
    %3589 = vmatpush1.bf16.msra.mxu0 %v2474
    %3590 = vmatprep.subr.bf16.mxu0 %v2483
    %3591 = vmatpush1.bf16.msra.mxu0 %v2482
    %3592 = vmatprep.subr.bf16.mxu0 %v2491
    %3593 = vmatpush1.bf16.msra.mxu0 %v2490
    %3594 = vmatprep.subr.bf16.mxu0 %v2499
    %3595 = vmatpush1.bf16.msra.mxu0 %v2498
    %3596 = vmatprep.subr.bf16.mxu0 %v2507
    %3597 = vmatpush1.bf16.msra.mxu0 %v2506
    %3598 = vmatprep.subr.bf16.mxu0 %v2515
    %3599 = vmatpush1.bf16.msra.mxu0 %v2514
    %3600 = vmatprep.mubr.bf16.mxu0 %v587
    %3601 = vmatmul.mubr.bf16.gmra.mrb[0].mxu0 %v586
    %v3602 = vpop.f32.mrb[0].mxu0
    %v3603 = vadd.f32 %v3562, %v3602
    %v3604 = vpop.f32.mrb[0].mxu0
    %v3605 = vadd.f32 %v3564, %v3604
    %v3606 = vpop.f32.mrb[0].mxu0
    %v3607 = vpop.f32.mrb[0].mxu0
    %3608 = vdwg.mxu0
    %3609 = vmatprep.subr.bf16.mxu0 %v2523
    %3610 = vmatpush1.bf16.msra.mxu0 %v2522
    %3611 = vmatprep.subr.bf16.mxu0 %v2531
    %3612 = vmatpush1.bf16.msra.mxu0 %v2530
    %3613 = vmatprep.subr.bf16.mxu0 %v2539
    %3614 = vmatpush1.bf16.msra.mxu0 %v2538
    %3615 = vmatprep.subr.bf16.mxu0 %v2547
    %3616 = vmatpush1.bf16.msra.mxu0 %v2546
    %3617 = vmatprep.subr.bf16.mxu0 %v2555
    %3618 = vmatpush1.bf16.msra.mxu0 %v2554
    %3619 = vmatprep.subr.bf16.mxu0 %v2563
    %3620 = vmatpush1.bf16.msra.mxu0 %v2562
    %3621 = vmatprep.subr.bf16.mxu0 %v2571
    %3622 = vmatpush1.bf16.msra.mxu0 %v2570
    %3623 = vmatprep.subr.bf16.mxu0 %v2579
    %3624 = vmatpush1.bf16.msra.mxu0 %v2578
    %3625 = vmatprep.subr.bf16.mxu0 %v2587
    %3626 = vmatpush1.bf16.msra.mxu0 %v2586
    %3627 = vmatprep.subr.bf16.mxu0 %v2595
    %3628 = vmatpush1.bf16.msra.mxu0 %v2594
    %3629 = vmatprep.subr.bf16.mxu0 %v2603
    %3630 = vmatpush1.bf16.msra.mxu0 %v2602
    %3631 = vmatprep.subr.bf16.mxu0 %v2611
    %3632 = vmatpush1.bf16.msra.mxu0 %v2610
    %3633 = vmatprep.subr.bf16.mxu0 %v2619
    %3634 = vmatpush1.bf16.msra.mxu0 %v2618
    %3635 = vmatprep.subr.bf16.mxu0 %v2627
    %3636 = vmatpush1.bf16.msra.mxu0 %v2626
    %3637 = vmatprep.subr.bf16.mxu0 %v2635
    %3638 = vmatpush1.bf16.msra.mxu0 %v2634
    %3639 = vmatprep.subr.bf16.mxu0 %v2643
    %3640 = vmatpush1.bf16.msra.mxu0 %v2642
    %3641 = vmatprep.mubr.bf16.mxu0 %v589
    %3642 = vmatmul.mubr.bf16.gmra.mrb[0].mxu0 %v588
    %v3643 = vpop.f32.mrb[0].mxu0
    %v3644 = vadd.f32 %v3603, %v3643
    %v3645 = vpop.f32.mrb[0].mxu0
    %v3646 = vadd.f32 %v3605, %v3645
    %v3647 = vpop.f32.mrb[0].mxu0
    %v3648 = vpop.f32.mrb[0].mxu0
    %3649 = vdwg.mxu0
    %3650 = vmatprep.subr.bf16.mxu0 %v2141
    %3651 = vmatpush1.bf16.msra.mxu0 %v2140
    %3652 = vmatprep.subr.bf16.mxu0 %v2149
    %3653 = vmatpush1.bf16.msra.mxu0 %v2148
    %3654 = vmatprep.subr.bf16.mxu0 %v2157
    %3655 = vmatpush1.bf16.msra.mxu0 %v2156
    %3656 = vmatprep.subr.bf16.mxu0 %v2165
    %3657 = vmatpush1.bf16.msra.mxu0 %v2164
    %3658 = vmatprep.subr.bf16.mxu0 %v2173
    %3659 = vmatpush1.bf16.msra.mxu0 %v2172
    %3660 = vmatprep.subr.bf16.mxu0 %v2181
    %3661 = vmatpush1.bf16.msra.mxu0 %v2180
    %3662 = vmatprep.subr.bf16.mxu0 %v2189
    %3663 = vmatpush1.bf16.msra.mxu0 %v2188
    %3664 = vmatprep.subr.bf16.mxu0 %v2197
    %3665 = vmatpush1.bf16.msra.mxu0 %v2196
    %3666 = vmatprep.subr.bf16.mxu0 %v2205
    %3667 = vmatpush1.bf16.msra.mxu0 %v2204
    %3668 = vmatprep.subr.bf16.mxu0 %v2213
    %3669 = vmatpush1.bf16.msra.mxu0 %v2212
    %3670 = vmatprep.subr.bf16.mxu0 %v2221
    %3671 = vmatpush1.bf16.msra.mxu0 %v2220
    %3672 = vmatprep.subr.bf16.mxu0 %v2229
    %3673 = vmatpush1.bf16.msra.mxu0 %v2228
    %3674 = vmatprep.subr.bf16.mxu0 %v2237
    %3675 = vmatpush1.bf16.msra.mxu0 %v2236
    %3676 = vmatprep.subr.bf16.mxu0 %v2245
    %3677 = vmatpush1.bf16.msra.mxu0 %v2244
    %3678 = vmatprep.subr.bf16.mxu0 %v2253
    %3679 = vmatpush1.bf16.msra.mxu0 %v2252
    %3680 = vmatprep.subr.bf16.mxu0 %v2261
    %3681 = vmatpush1.bf16.msra.mxu0 %v2260
    %3682 = vmatprep.mubr.bf16.mxu0 %v583
    %3683 = vmatmul.mubr.bf16.gmra.mrb[0].mxu0 %v582
    %v3684 = vpop.f32.mrb[0].mxu0
    %v3685 = vadd.f32 0.0, %v3684
    %v3686 = vpop.f32.mrb[0].mxu0
    %v3687 = vadd.f32 0.0, %v3686
    %v3688 = vpop.f32.mrb[0].mxu0
    %v3689 = vpop.f32.mrb[0].mxu0
    %3690 = vdwg.mxu0
    %3691 = vmatprep.subr.bf16.mxu0 %v2269
    %3692 = vmatpush1.bf16.msra.mxu0 %v2268
    %3693 = vmatprep.subr.bf16.mxu0 %v2277
    %3694 = vmatpush1.bf16.msra.mxu0 %v2276
    %3695 = vmatprep.subr.bf16.mxu0 %v2285
    %3696 = vmatpush1.bf16.msra.mxu0 %v2284
    %3697 = vmatprep.subr.bf16.mxu0 %v2293
    %3698 = vmatpush1.bf16.msra.mxu0 %v2292
    %3699 = vmatprep.subr.bf16.mxu0 %v2301
    %3700 = vmatpush1.bf16.msra.mxu0 %v2300
    %3701 = vmatprep.subr.bf16.mxu0 %v2309
    %3702 = vmatpush1.bf16.msra.mxu0 %v2308
    %3703 = vmatprep.subr.bf16.mxu0 %v2317
    %3704 = vmatpush1.bf16.msra.mxu0 %v2316
    %3705 = vmatprep.subr.bf16.mxu0 %v2325
    %3706 = vmatpush1.bf16.msra.mxu0 %v2324
    %3707 = vmatprep.subr.bf16.mxu0 %v2333
    %3708 = vmatpush1.bf16.msra.mxu0 %v2332
    %3709 = vmatprep.subr.bf16.mxu0 %v2341
    %3710 = vmatpush1.bf16.msra.mxu0 %v2340
    %3711 = vmatprep.subr.bf16.mxu0 %v2349
    %3712 = vmatpush1.bf16.msra.mxu0 %v2348
    %3713 = vmatprep.subr.bf16.mxu0 %v2357
    %3714 = vmatpush1.bf16.msra.mxu0 %v2356
    %3715 = vmatprep.subr.bf16.mxu0 %v2365
    %3716 = vmatpush1.bf16.msra.mxu0 %v2364
    %3717 = vmatprep.subr.bf16.mxu0 %v2373
    %3718 = vmatpush1.bf16.msra.mxu0 %v2372
    %3719 = vmatprep.subr.bf16.mxu0 %v2381
    %3720 = vmatpush1.bf16.msra.mxu0 %v2380
    %3721 = vmatprep.subr.bf16.mxu0 %v2389
    %3722 = vmatpush1.bf16.msra.mxu0 %v2388
    %3723 = vmatprep.mubr.bf16.mxu0 %v585
    %3724 = vmatmul.mubr.bf16.gmra.mrb[0].mxu0 %v584
    %v3725 = vpop.f32.mrb[0].mxu0
    %v3726 = vadd.f32 %v3685, %v3725
    %v3727 = vpop.f32.mrb[0].mxu0
    %v3728 = vadd.f32 %v3687, %v3727
    %v3729 = vpop.f32.mrb[0].mxu0
    %v3730 = vpop.f32.mrb[0].mxu0
    %3731 = vdwg.mxu0
    %3732 = vmatprep.subr.bf16.mxu0 %v2397
    %3733 = vmatpush1.bf16.msra.mxu0 %v2396
    %3734 = vmatprep.subr.bf16.mxu0 %v2405
    %3735 = vmatpush1.bf16.msra.mxu0 %v2404
    %3736 = vmatprep.subr.bf16.mxu0 %v2413
    %3737 = vmatpush1.bf16.msra.mxu0 %v2412
    %3738 = vmatprep.subr.bf16.mxu0 %v2421
    %3739 = vmatpush1.bf16.msra.mxu0 %v2420
    %3740 = vmatprep.subr.bf16.mxu0 %v2429
    %3741 = vmatpush1.bf16.msra.mxu0 %v2428
    %3742 = vmatprep.subr.bf16.mxu0 %v2437
    %3743 = vmatpush1.bf16.msra.mxu0 %v2436
    %3744 = vmatprep.subr.bf16.mxu0 %v2445
    %3745 = vmatpush1.bf16.msra.mxu0 %v2444
    %3746 = vmatprep.subr.bf16.mxu0 %v2453
    %3747 = vmatpush1.bf16.msra.mxu0 %v2452
    %3748 = vmatprep.subr.bf16.mxu0 %v2461
    %3749 = vmatpush1.bf16.msra.mxu0 %v2460
    %3750 = vmatprep.subr.bf16.mxu0 %v2469
    %3751 = vmatpush1.bf16.msra.mxu0 %v2468
    %3752 = vmatprep.subr.bf16.mxu0 %v2477
    %3753 = vmatpush1.bf16.msra.mxu0 %v2476
    %3754 = vmatprep.subr.bf16.mxu0 %v2485
    %3755 = vmatpush1.bf16.msra.mxu0 %v2484
    %3756 = vmatprep.subr.bf16.mxu0 %v2493
    %3757 = vmatpush1.bf16.msra.mxu0 %v2492
    %3758 = vmatprep.subr.bf16.mxu0 %v2501
    %3759 = vmatpush1.bf16.msra.mxu0 %v2500
    %3760 = vmatprep.subr.bf16.mxu0 %v2509
    %3761 = vmatpush1.bf16.msra.mxu0 %v2508
    %3762 = vmatprep.subr.bf16.mxu0 %v2517
    %3763 = vmatpush1.bf16.msra.mxu0 %v2516
    %3764 = vmatprep.mubr.bf16.mxu0 %v587
    %3765 = vmatmul.mubr.bf16.gmra.mrb[0].mxu0 %v586
    %v3766 = vpop.f32.mrb[0].mxu0
    %v3767 = vadd.f32 %v3726, %v3766
    %v3768 = vpop.f32.mrb[0].mxu0
    %v3769 = vadd.f32 %v3728, %v3768
    %v3770 = vpop.f32.mrb[0].mxu0
    %v3771 = vpop.f32.mrb[0].mxu0
    %3772 = vdwg.mxu0
    %3773 = vmatprep.subr.bf16.mxu0 %v2525
    %3774 = vmatpush1.bf16.msra.mxu0 %v2524
    %3775 = vmatprep.subr.bf16.mxu0 %v2533
    %3776 = vmatpush1.bf16.msra.mxu0 %v2532
    %3777 = vmatprep.subr.bf16.mxu0 %v2541
    %3778 = vmatpush1.bf16.msra.mxu0 %v2540
    %3779 = vmatprep.subr.bf16.mxu0 %v2549
    %3780 = vmatpush1.bf16.msra.mxu0 %v2548
    %3781 = vmatprep.subr.bf16.mxu0 %v2557
    %3782 = vmatpush1.bf16.msra.mxu0 %v2556
    %3783 = vmatprep.subr.bf16.mxu0 %v2565
    %3784 = vmatpush1.bf16.msra.mxu0 %v2564
    %3785 = vmatprep.subr.bf16.mxu0 %v2573
    %3786 = vmatpush1.bf16.msra.mxu0 %v2572
    %3787 = vmatprep.subr.bf16.mxu0 %v2581
    %3788 = vmatpush1.bf16.msra.mxu0 %v2580
    %3789 = vmatprep.subr.bf16.mxu0 %v2589
    %3790 = vmatpush1.bf16.msra.mxu0 %v2588
    %3791 = vmatprep.subr.bf16.mxu0 %v2597
    %3792 = vmatpush1.bf16.msra.mxu0 %v2596
    %3793 = vmatprep.subr.bf16.mxu0 %v2605
    %3794 = vmatpush1.bf16.msra.mxu0 %v2604
    %3795 = vmatprep.subr.bf16.mxu0 %v2613
    %3796 = vmatpush1.bf16.msra.mxu0 %v2612
    %3797 = vmatprep.subr.bf16.mxu0 %v2621
    %3798 = vmatpush1.bf16.msra.mxu0 %v2620
    %3799 = vmatprep.subr.bf16.mxu0 %v2629
    %3800 = vmatpush1.bf16.msra.mxu0 %v2628
    %3801 = vmatprep.subr.bf16.mxu0 %v2637
    %3802 = vmatpush1.bf16.msra.mxu0 %v2636
    %3803 = vmatprep.subr.bf16.mxu0 %v2645
    %3804 = vmatpush1.bf16.msra.mxu0 %v2644
    %3805 = vmatprep.mubr.bf16.mxu0 %v589
    %3806 = vmatmul.mubr.bf16.gmra.mrb[0].mxu0 %v588
    %v3807 = vpop.f32.mrb[0].mxu0
    %v3808 = vadd.f32 %v3767, %v3807
    %v3809 = vpop.f32.mrb[0].mxu0
    %v3810 = vadd.f32 %v3769, %v3809
    %v3811 = vpop.f32.mrb[0].mxu0
    %v3812 = vpop.f32.mrb[0].mxu0
    %3813 = vdwg.mxu0
    %v3814 = vmul.f32 %v3316, 0.01
    %v3815 = vmul.f32 %v3318, 0.01
    %v3816 = vmul.f32 %v3480, 0.01
    %v3817 = vmul.f32 %v3482, 0.01
    %v3818 = vmul.f32 %v3644, 0.01
    %v3819 = vmul.f32 %v3646, 0.01
    %v3820 = vmul.f32 %v3808, 0.01
    %v3821 = vmul.f32 %v3810, 0.01
    %v3822 = vmax.f32 %v3316, %v3814
    %v3823 = vmax.f32 %v3318, %v3815
    %v3824 = vmax.f32 %v3480, %v3816
    %v3825 = vmax.f32 %v3482, %v3817
    %v3826 = vmax.f32 %v3644, %v3818
    %v3827 = vmax.f32 %v3646, %v3819
    %v3828 = vmax.f32 %v3808, %v3820
    %v3829 = vmax.f32 %v3810, %v3821
    %v3830 = vpack.c.bf16 %v3822, %v3822
    %v3831 = vpack.c.bf16 %v3823, %v3823
    %v3832 = vpack.c.bf16 %v3824, %v3824
    %v3833 = vpack.c.bf16 %v3825, %v3825
    %v3834 = vpack.c.bf16 %v3826, %v3826
    %v3835 = vpack.c.bf16 %v3827, %v3827
    %v3836 = vpack.c.bf16 %v3828, %v3828
    %v3837 = vpack.c.bf16 %v3829, %v3829
    %v3838 = vld [vmem:[#allocation7] sm:$0xff]
    %v3839 = vld [vmem:[#allocation7 + $0x8] sm:$0xff]
    %v3840 = vld [vmem:[#allocation7 + $0x10] sm:$0xff]
    %v3841 = vld [vmem:[#allocation7 + $0x18] sm:$0xff]
    %v3842 = vld [vmem:[#allocation7 + $0x20] sm:$0xff]
    %v3843 = vld [vmem:[#allocation7 + $0x28] sm:$0xff]
    %v3844 = vld [vmem:[#allocation7 + $0x30] sm:$0xff]
    %v3845 = vld [vmem:[#allocation7 + $0x38] sm:$0xff]
    %v3846 = vld [vmem:[#allocation7 + $0x40] sm:$0xff]
    %v3847 = vld [vmem:[#allocation7 + $0x48] sm:$0xff]
    %v3848 = vld [vmem:[#allocation7 + $0x50] sm:$0xff]
    %v3849 = vld [vmem:[#allocation7 + $0x58] sm:$0xff]
    %v3850 = vld [vmem:[#allocation7 + $0x60] sm:$0xff]
    %v3851 = vld [vmem:[#allocation7 + $0x68] sm:$0xff]
    %v3852 = vld [vmem:[#allocation7 + $0x70] sm:$0xff]
    %v3853 = vld [vmem:[#allocation7 + $0x78] sm:$0xff]
    %v3854 = vld [vmem:[#allocation7 + $0x80] sm:$0xff]
    %v3855 = vld [vmem:[#allocation7 + $0x88] sm:$0xff]
    %v3856 = vld [vmem:[#allocation7 + $0x90] sm:$0xff]
    %v3857 = vld [vmem:[#allocation7 + $0x98] sm:$0xff]
    %v3858 = vld [vmem:[#allocation7 + $0xa0] sm:$0xff]
    %v3859 = vld [vmem:[#allocation7 + $0xa8] sm:$0xff]
    %v3860 = vld [vmem:[#allocation7 + $0xb0] sm:$0xff]
    %v3861 = vld [vmem:[#allocation7 + $0xb8] sm:$0xff]
    %v3862 = vld [vmem:[#allocation7 + $0xc0] sm:$0xff]
    %v3863 = vld [vmem:[#allocation7 + $0xc8] sm:$0xff]
    %v3864 = vld [vmem:[#allocation7 + $0xd0] sm:$0xff]
    %v3865 = vld [vmem:[#allocation7 + $0xd8] sm:$0xff]
    %v3866 = vld [vmem:[#allocation7 + $0xe0] sm:$0xff]
    %v3867 = vld [vmem:[#allocation7 + $0xe8] sm:$0xff]
    %v3868 = vld [vmem:[#allocation7 + $0xf0] sm:$0xff]
    %v3869 = vld [vmem:[#allocation7 + $0xf8] sm:$0xff]
    %v3870 = vld [vmem:[#allocation7 + $0x100] sm:$0xff]
    %v3871 = vld [vmem:[#allocation7 + $0x108] sm:$0xff]
    %v3872 = vld [vmem:[#allocation7 + $0x110] sm:$0xff]
    %v3873 = vld [vmem:[#allocation7 + $0x118] sm:$0xff]
    %v3874 = vld [vmem:[#allocation7 + $0x120] sm:$0xff]
    %v3875 = vld [vmem:[#allocation7 + $0x128] sm:$0xff]
    %v3876 = vld [vmem:[#allocation7 + $0x130] sm:$0xff]
    %v3877 = vld [vmem:[#allocation7 + $0x138] sm:$0xff]
    %v3878 = vld [vmem:[#allocation7 + $0x140] sm:$0xff]
    %v3879 = vld [vmem:[#allocation7 + $0x148] sm:$0xff]
    %v3880 = vld [vmem:[#allocation7 + $0x150] sm:$0xff]
    %v3881 = vld [vmem:[#allocation7 + $0x158] sm:$0xff]
    %v3882 = vld [vmem:[#allocation7 + $0x160] sm:$0xff]
    %v3883 = vld [vmem:[#allocation7 + $0x168] sm:$0xff]
    %v3884 = vld [vmem:[#allocation7 + $0x170] sm:$0xff]
    %v3885 = vld [vmem:[#allocation7 + $0x178] sm:$0xff]
    %v3886 = vld [vmem:[#allocation7 + $0x180] sm:$0xff]
    %v3887 = vld [vmem:[#allocation7 + $0x188] sm:$0xff]
    %v3888 = vld [vmem:[#allocation7 + $0x190] sm:$0xff]
    %v3889 = vld [vmem:[#allocation7 + $0x198] sm:$0xff]
    %v3890 = vld [vmem:[#allocation7 + $0x1a0] sm:$0xff]
    %v3891 = vld [vmem:[#allocation7 + $0x1a8] sm:$0xff]
    %v3892 = vld [vmem:[#allocation7 + $0x1b0] sm:$0xff]
    %v3893 = vld [vmem:[#allocation7 + $0x1b8] sm:$0xff]
    %v3894 = vld [vmem:[#allocation7 + $0x1c0] sm:$0xff]
    %v3895 = vld [vmem:[#allocation7 + $0x1c8] sm:$0xff]
    %v3896 = vld [vmem:[#allocation7 + $0x1d0] sm:$0xff]
    %v3897 = vld [vmem:[#allocation7 + $0x1d8] sm:$0xff]
    %v3898 = vld [vmem:[#allocation7 + $0x1e0] sm:$0xff]
    %v3899 = vld [vmem:[#allocation7 + $0x1e8] sm:$0xff]
    %v3900 = vld [vmem:[#allocation7 + $0x1f0] sm:$0xff]
    %v3901 = vld [vmem:[#allocation7 + $0x1f8] sm:$0xff]
    %v3902 = vld [vmem:[#allocation7 + $0x200] sm:$0xff]
    %v3903 = vld [vmem:[#allocation7 + $0x208] sm:$0xff]
    %v3904 = vld [vmem:[#allocation7 + $0x210] sm:$0xff]
    %v3905 = vld [vmem:[#allocation7 + $0x218] sm:$0xff]
    %v3906 = vld [vmem:[#allocation7 + $0x220] sm:$0xff]
    %v3907 = vld [vmem:[#allocation7 + $0x228] sm:$0xff]
    %v3908 = vld [vmem:[#allocation7 + $0x230] sm:$0xff]
    %v3909 = vld [vmem:[#allocation7 + $0x238] sm:$0xff]
    %v3910 = vld [vmem:[#allocation7 + $0x240] sm:$0xff]
    %v3911 = vld [vmem:[#allocation7 + $0x248] sm:$0xff]
    %v3912 = vld [vmem:[#allocation7 + $0x250] sm:$0xff]
    %v3913 = vld [vmem:[#allocation7 + $0x258] sm:$0xff]
    %v3914 = vld [vmem:[#allocation7 + $0x260] sm:$0xff]
    %v3915 = vld [vmem:[#allocation7 + $0x268] sm:$0xff]
    %v3916 = vld [vmem:[#allocation7 + $0x270] sm:$0xff]
    %v3917 = vld [vmem:[#allocation7 + $0x278] sm:$0xff]
    %v3918 = vld [vmem:[#allocation7 + $0x280] sm:$0xff]
    %v3919 = vld [vmem:[#allocation7 + $0x288] sm:$0xff]
    %v3920 = vld [vmem:[#allocation7 + $0x290] sm:$0xff]
    %v3921 = vld [vmem:[#allocation7 + $0x298] sm:$0xff]
    %v3922 = vld [vmem:[#allocation7 + $0x2a0] sm:$0xff]
    %v3923 = vld [vmem:[#allocation7 + $0x2a8] sm:$0xff]
    %v3924 = vld [vmem:[#allocation7 + $0x2b0] sm:$0xff]
    %v3925 = vld [vmem:[#allocation7 + $0x2b8] sm:$0xff]
    %v3926 = vld [vmem:[#allocation7 + $0x2c0] sm:$0xff]
    %v3927 = vld [vmem:[#allocation7 + $0x2c8] sm:$0xff]
    %v3928 = vld [vmem:[#allocation7 + $0x2d0] sm:$0xff]
    %v3929 = vld [vmem:[#allocation7 + $0x2d8] sm:$0xff]
    %v3930 = vld [vmem:[#allocation7 + $0x2e0] sm:$0xff]
    %v3931 = vld [vmem:[#allocation7 + $0x2e8] sm:$0xff]
    %v3932 = vld [vmem:[#allocation7 + $0x2f0] sm:$0xff]
    %v3933 = vld [vmem:[#allocation7 + $0x2f8] sm:$0xff]
    %v3934 = vld [vmem:[#allocation7 + $0x300] sm:$0xff]
    %v3935 = vld [vmem:[#allocation7 + $0x308] sm:$0xff]
    %v3936 = vld [vmem:[#allocation7 + $0x310] sm:$0xff]
    %v3937 = vld [vmem:[#allocation7 + $0x318] sm:$0xff]
    %v3938 = vld [vmem:[#allocation7 + $0x320] sm:$0xff]
    %v3939 = vld [vmem:[#allocation7 + $0x328] sm:$0xff]
    %v3940 = vld [vmem:[#allocation7 + $0x330] sm:$0xff]
    %v3941 = vld [vmem:[#allocation7 + $0x338] sm:$0xff]
    %v3942 = vld [vmem:[#allocation7 + $0x340] sm:$0xff]
    %v3943 = vld [vmem:[#allocation7 + $0x348] sm:$0xff]
    %v3944 = vld [vmem:[#allocation7 + $0x350] sm:$0xff]
    %v3945 = vld [vmem:[#allocation7 + $0x358] sm:$0xff]
    %v3946 = vld [vmem:[#allocation7 + $0x360] sm:$0xff]
    %v3947 = vld [vmem:[#allocation7 + $0x368] sm:$0xff]
    %v3948 = vld [vmem:[#allocation7 + $0x370] sm:$0xff]
    %v3949 = vld [vmem:[#allocation7 + $0x378] sm:$0xff]
    %v3950 = vld [vmem:[#allocation7 + $0x380] sm:$0xff]
    %v3951 = vld [vmem:[#allocation7 + $0x388] sm:$0xff]
    %v3952 = vld [vmem:[#allocation7 + $0x390] sm:$0xff]
    %v3953 = vld [vmem:[#allocation7 + $0x398] sm:$0xff]
    %v3954 = vld [vmem:[#allocation7 + $0x3a0] sm:$0xff]
    %v3955 = vld [vmem:[#allocation7 + $0x3a8] sm:$0xff]
    %v3956 = vld [vmem:[#allocation7 + $0x3b0] sm:$0xff]
    %v3957 = vld [vmem:[#allocation7 + $0x3b8] sm:$0xff]
    %v3958 = vld [vmem:[#allocation7 + $0x3c0] sm:$0xff]
    %v3959 = vld [vmem:[#allocation7 + $0x3c8] sm:$0xff]
    %v3960 = vld [vmem:[#allocation7 + $0x3d0] sm:$0xff]
    %v3961 = vld [vmem:[#allocation7 + $0x3d8] sm:$0xff]
    %v3962 = vld [vmem:[#allocation7 + $0x3e0] sm:$0xff]
    %v3963 = vld [vmem:[#allocation7 + $0x3e8] sm:$0xff]
    %v3964 = vld [vmem:[#allocation7 + $0x3f0] sm:$0xff]
    %v3965 = vld [vmem:[#allocation7 + $0x3f8] sm:$0xff]
    %v3966 = vld [vmem:[#allocation7 + $0x400] sm:$0xff]
    %v3967 = vld [vmem:[#allocation7 + $0x408] sm:$0xff]
    %v3968 = vld [vmem:[#allocation7 + $0x410] sm:$0xff]
    %v3969 = vld [vmem:[#allocation7 + $0x418] sm:$0xff]
    %v3970 = vld [vmem:[#allocation7 + $0x420] sm:$0xff]
    %v3971 = vld [vmem:[#allocation7 + $0x428] sm:$0xff]
    %v3972 = vld [vmem:[#allocation7 + $0x430] sm:$0xff]
    %v3973 = vld [vmem:[#allocation7 + $0x438] sm:$0xff]
    %v3974 = vld [vmem:[#allocation7 + $0x440] sm:$0xff]
    %v3975 = vld [vmem:[#allocation7 + $0x448] sm:$0xff]
    %v3976 = vld [vmem:[#allocation7 + $0x450] sm:$0xff]
    %v3977 = vld [vmem:[#allocation7 + $0x458] sm:$0xff]
    %v3978 = vld [vmem:[#allocation7 + $0x460] sm:$0xff]
    %v3979 = vld [vmem:[#allocation7 + $0x468] sm:$0xff]
    %v3980 = vld [vmem:[#allocation7 + $0x470] sm:$0xff]
    %v3981 = vld [vmem:[#allocation7 + $0x478] sm:$0xff]
    %v3982 = vld [vmem:[#allocation7 + $0x480] sm:$0xff]
    %v3983 = vld [vmem:[#allocation7 + $0x488] sm:$0xff]
    %v3984 = vld [vmem:[#allocation7 + $0x490] sm:$0xff]
    %v3985 = vld [vmem:[#allocation7 + $0x498] sm:$0xff]
    %v3986 = vld [vmem:[#allocation7 + $0x4a0] sm:$0xff]
    %v3987 = vld [vmem:[#allocation7 + $0x4a8] sm:$0xff]
    %v3988 = vld [vmem:[#allocation7 + $0x4b0] sm:$0xff]
    %v3989 = vld [vmem:[#allocation7 + $0x4b8] sm:$0xff]
    %v3990 = vld [vmem:[#allocation7 + $0x4c0] sm:$0xff]
    %v3991 = vld [vmem:[#allocation7 + $0x4c8] sm:$0xff]
    %v3992 = vld [vmem:[#allocation7 + $0x4d0] sm:$0xff]
    %v3993 = vld [vmem:[#allocation7 + $0x4d8] sm:$0xff]
    %v3994 = vld [vmem:[#allocation7 + $0x4e0] sm:$0xff]
    %v3995 = vld [vmem:[#allocation7 + $0x4e8] sm:$0xff]
    %v3996 = vld [vmem:[#allocation7 + $0x4f0] sm:$0xff]
    %v3997 = vld [vmem:[#allocation7 + $0x4f8] sm:$0xff]
    %v3998 = vld [vmem:[#allocation7 + $0x500] sm:$0xff]
    %v3999 = vld [vmem:[#allocation7 + $0x508] sm:$0xff]
    %v4000 = vld [vmem:[#allocation7 + $0x510] sm:$0xff]
    %v4001 = vld [vmem:[#allocation7 + $0x518] sm:$0xff]
    %v4002 = vld [vmem:[#allocation7 + $0x520] sm:$0xff]
    %v4003 = vld [vmem:[#allocation7 + $0x528] sm:$0xff]
    %v4004 = vld [vmem:[#allocation7 + $0x530] sm:$0xff]
    %v4005 = vld [vmem:[#allocation7 + $0x538] sm:$0xff]
    %v4006 = vld [vmem:[#allocation7 + $0x540] sm:$0xff]
    %v4007 = vld [vmem:[#allocation7 + $0x548] sm:$0xff]
    %v4008 = vld [vmem:[#allocation7 + $0x550] sm:$0xff]
    %v4009 = vld [vmem:[#allocation7 + $0x558] sm:$0xff]
    %v4010 = vld [vmem:[#allocation7 + $0x560] sm:$0xff]
    %v4011 = vld [vmem:[#allocation7 + $0x568] sm:$0xff]
    %v4012 = vld [vmem:[#allocation7 + $0x570] sm:$0xff]
    %v4013 = vld [vmem:[#allocation7 + $0x578] sm:$0xff]
    %v4014 = vld [vmem:[#allocation7 + $0x580] sm:$0xff]
    %v4015 = vld [vmem:[#allocation7 + $0x588] sm:$0xff]
    %v4016 = vld [vmem:[#allocation7 + $0x590] sm:$0xff]
    %v4017 = vld [vmem:[#allocation7 + $0x598] sm:$0xff]
    %v4018 = vld [vmem:[#allocation7 + $0x5a0] sm:$0xff]
    %v4019 = vld [vmem:[#allocation7 + $0x5a8] sm:$0xff]
    %v4020 = vld [vmem:[#allocation7 + $0x5b0] sm:$0xff]
    %v4021 = vld [vmem:[#allocation7 + $0x5b8] sm:$0xff]
    %v4022 = vld [vmem:[#allocation7 + $0x5c0] sm:$0xff]
    %v4023 = vld [vmem:[#allocation7 + $0x5c8] sm:$0xff]
    %v4024 = vld [vmem:[#allocation7 + $0x5d0] sm:$0xff]
    %v4025 = vld [vmem:[#allocation7 + $0x5d8] sm:$0xff]
    %v4026 = vld [vmem:[#allocation7 + $0x5e0] sm:$0xff]
    %v4027 = vld [vmem:[#allocation7 + $0x5e8] sm:$0xff]
    %v4028 = vld [vmem:[#allocation7 + $0x5f0] sm:$0xff]
    %v4029 = vld [vmem:[#allocation7 + $0x5f8] sm:$0xff]
    %v4030 = vld [vmem:[#allocation7 + $0x600] sm:$0xff]
    %v4031 = vld [vmem:[#allocation7 + $0x608] sm:$0xff]
    %v4032 = vld [vmem:[#allocation7 + $0x610] sm:$0xff]
    %v4033 = vld [vmem:[#allocation7 + $0x618] sm:$0xff]
    %v4034 = vld [vmem:[#allocation7 + $0x620] sm:$0xff]
    %v4035 = vld [vmem:[#allocation7 + $0x628] sm:$0xff]
    %v4036 = vld [vmem:[#allocation7 + $0x630] sm:$0xff]
    %v4037 = vld [vmem:[#allocation7 + $0x638] sm:$0xff]
    %v4038 = vld [vmem:[#allocation7 + $0x640] sm:$0xff]
    %v4039 = vld [vmem:[#allocation7 + $0x648] sm:$0xff]
    %v4040 = vld [vmem:[#allocation7 + $0x650] sm:$0xff]
    %v4041 = vld [vmem:[#allocation7 + $0x658] sm:$0xff]
    %v4042 = vld [vmem:[#allocation7 + $0x660] sm:$0xff]
    %v4043 = vld [vmem:[#allocation7 + $0x668] sm:$0xff]
    %v4044 = vld [vmem:[#allocation7 + $0x670] sm:$0xff]
    %v4045 = vld [vmem:[#allocation7 + $0x678] sm:$0xff]
    %v4046 = vld [vmem:[#allocation7 + $0x680] sm:$0xff]
    %v4047 = vld [vmem:[#allocation7 + $0x688] sm:$0xff]
    %v4048 = vld [vmem:[#allocation7 + $0x690] sm:$0xff]
    %v4049 = vld [vmem:[#allocation7 + $0x698] sm:$0xff]
    %v4050 = vld [vmem:[#allocation7 + $0x6a0] sm:$0xff]
    %v4051 = vld [vmem:[#allocation7 + $0x6a8] sm:$0xff]
    %v4052 = vld [vmem:[#allocation7 + $0x6b0] sm:$0xff]
    %v4053 = vld [vmem:[#allocation7 + $0x6b8] sm:$0xff]
    %v4054 = vld [vmem:[#allocation7 + $0x6c0] sm:$0xff]
    %v4055 = vld [vmem:[#allocation7 + $0x6c8] sm:$0xff]
    %v4056 = vld [vmem:[#allocation7 + $0x6d0] sm:$0xff]
    %v4057 = vld [vmem:[#allocation7 + $0x6d8] sm:$0xff]
    %v4058 = vld [vmem:[#allocation7 + $0x6e0] sm:$0xff]
    %v4059 = vld [vmem:[#allocation7 + $0x6e8] sm:$0xff]
    %v4060 = vld [vmem:[#allocation7 + $0x6f0] sm:$0xff]
    %v4061 = vld [vmem:[#allocation7 + $0x6f8] sm:$0xff]
    %v4062 = vld [vmem:[#allocation7 + $0x700] sm:$0xff]
    %v4063 = vld [vmem:[#allocation7 + $0x708] sm:$0xff]
    %v4064 = vld [vmem:[#allocation7 + $0x710] sm:$0xff]
    %v4065 = vld [vmem:[#allocation7 + $0x718] sm:$0xff]
    %v4066 = vld [vmem:[#allocation7 + $0x720] sm:$0xff]
    %v4067 = vld [vmem:[#allocation7 + $0x728] sm:$0xff]
    %v4068 = vld [vmem:[#allocation7 + $0x730] sm:$0xff]
    %v4069 = vld [vmem:[#allocation7 + $0x738] sm:$0xff]
    %v4070 = vld [vmem:[#allocation7 + $0x740] sm:$0xff]
    %v4071 = vld [vmem:[#allocation7 + $0x748] sm:$0xff]
    %v4072 = vld [vmem:[#allocation7 + $0x750] sm:$0xff]
    %v4073 = vld [vmem:[#allocation7 + $0x758] sm:$0xff]
    %v4074 = vld [vmem:[#allocation7 + $0x760] sm:$0xff]
    %v4075 = vld [vmem:[#allocation7 + $0x768] sm:$0xff]
    %v4076 = vld [vmem:[#allocation7 + $0x770] sm:$0xff]
    %v4077 = vld [vmem:[#allocation7 + $0x778] sm:$0xff]
    %v4078 = vld [vmem:[#allocation7 + $0x780] sm:$0xff]
    %v4079 = vld [vmem:[#allocation7 + $0x788] sm:$0xff]
    %v4080 = vld [vmem:[#allocation7 + $0x790] sm:$0xff]
    %v4081 = vld [vmem:[#allocation7 + $0x798] sm:$0xff]
    %v4082 = vld [vmem:[#allocation7 + $0x7a0] sm:$0xff]
    %v4083 = vld [vmem:[#allocation7 + $0x7a8] sm:$0xff]
    %v4084 = vld [vmem:[#allocation7 + $0x7b0] sm:$0xff]
    %v4085 = vld [vmem:[#allocation7 + $0x7b8] sm:$0xff]
    %v4086 = vld [vmem:[#allocation7 + $0x7c0] sm:$0xff]
    %v4087 = vld [vmem:[#allocation7 + $0x7c8] sm:$0xff]
    %v4088 = vld [vmem:[#allocation7 + $0x7d0] sm:$0xff]
    %v4089 = vld [vmem:[#allocation7 + $0x7d8] sm:$0xff]
    %v4090 = vld [vmem:[#allocation7 + $0x7e0] sm:$0xff]
    %v4091 = vld [vmem:[#allocation7 + $0x7e8] sm:$0xff]
    %v4092 = vld [vmem:[#allocation7 + $0x7f0] sm:$0xff]
    %v4093 = vld [vmem:[#allocation7 + $0x7f8] sm:$0xff]
    %v4094 = vld [vmem:[#allocation7 + $0x800] sm:$0xff]
    %v4095 = vld [vmem:[#allocation7 + $0x808] sm:$0xff]
    %v4096 = vld [vmem:[#allocation7 + $0x810] sm:$0xff]
    %v4097 = vld [vmem:[#allocation7 + $0x818] sm:$0xff]
    %v4098 = vld [vmem:[#allocation7 + $0x820] sm:$0xff]
    %v4099 = vld [vmem:[#allocation7 + $0x828] sm:$0xff]
    %v4100 = vld [vmem:[#allocation7 + $0x830] sm:$0xff]
    %v4101 = vld [vmem:[#allocation7 + $0x838] sm:$0xff]
    %v4102 = vld [vmem:[#allocation7 + $0x840] sm:$0xff]
    %v4103 = vld [vmem:[#allocation7 + $0x848] sm:$0xff]
    %v4104 = vld [vmem:[#allocation7 + $0x850] sm:$0xff]
    %v4105 = vld [vmem:[#allocation7 + $0x858] sm:$0xff]
    %v4106 = vld [vmem:[#allocation7 + $0x860] sm:$0xff]
    %v4107 = vld [vmem:[#allocation7 + $0x868] sm:$0xff]
    %v4108 = vld [vmem:[#allocation7 + $0x870] sm:$0xff]
    %v4109 = vld [vmem:[#allocation7 + $0x878] sm:$0xff]
    %v4110 = vld [vmem:[#allocation7 + $0x880] sm:$0xff]
    %v4111 = vld [vmem:[#allocation7 + $0x888] sm:$0xff]
    %v4112 = vld [vmem:[#allocation7 + $0x890] sm:$0xff]
    %v4113 = vld [vmem:[#allocation7 + $0x898] sm:$0xff]
    %v4114 = vld [vmem:[#allocation7 + $0x8a0] sm:$0xff]
    %v4115 = vld [vmem:[#allocation7 + $0x8a8] sm:$0xff]
    %v4116 = vld [vmem:[#allocation7 + $0x8b0] sm:$0xff]
    %v4117 = vld [vmem:[#allocation7 + $0x8b8] sm:$0xff]
    %v4118 = vld [vmem:[#allocation7 + $0x8c0] sm:$0xff]
    %v4119 = vld [vmem:[#allocation7 + $0x8c8] sm:$0xff]
    %v4120 = vld [vmem:[#allocation7 + $0x8d0] sm:$0xff]
    %v4121 = vld [vmem:[#allocation7 + $0x8d8] sm:$0xff]
    %v4122 = vld [vmem:[#allocation7 + $0x8e0] sm:$0xff]
    %v4123 = vld [vmem:[#allocation7 + $0x8e8] sm:$0xff]
    %v4124 = vld [vmem:[#allocation7 + $0x8f0] sm:$0xff]
    %v4125 = vld [vmem:[#allocation7 + $0x8f8] sm:$0xff]
    %v4126 = vld [vmem:[#allocation7 + $0x900] sm:$0xff]
    %v4127 = vld [vmem:[#allocation7 + $0x908] sm:$0xff]
    %v4128 = vld [vmem:[#allocation7 + $0x910] sm:$0xff]
    %v4129 = vld [vmem:[#allocation7 + $0x918] sm:$0xff]
    %v4130 = vld [vmem:[#allocation7 + $0x920] sm:$0xff]
    %v4131 = vld [vmem:[#allocation7 + $0x928] sm:$0xff]
    %v4132 = vld [vmem:[#allocation7 + $0x930] sm:$0xff]
    %v4133 = vld [vmem:[#allocation7 + $0x938] sm:$0xff]
    %v4134 = vld [vmem:[#allocation7 + $0x940] sm:$0xff]
    %v4135 = vld [vmem:[#allocation7 + $0x948] sm:$0xff]
    %v4136 = vld [vmem:[#allocation7 + $0x950] sm:$0xff]
    %v4137 = vld [vmem:[#allocation7 + $0x958] sm:$0xff]
    %v4138 = vld [vmem:[#allocation7 + $0x960] sm:$0xff]
    %v4139 = vld [vmem:[#allocation7 + $0x968] sm:$0xff]
    %v4140 = vld [vmem:[#allocation7 + $0x970] sm:$0xff]
    %v4141 = vld [vmem:[#allocation7 + $0x978] sm:$0xff]
    %v4142 = vld [vmem:[#allocation7 + $0x980] sm:$0xff]
    %v4143 = vld [vmem:[#allocation7 + $0x988] sm:$0xff]
    %v4144 = vld [vmem:[#allocation7 + $0x990] sm:$0xff]
    %v4145 = vld [vmem:[#allocation7 + $0x998] sm:$0xff]
    %v4146 = vld [vmem:[#allocation7 + $0x9a0] sm:$0xff]
    %v4147 = vld [vmem:[#allocation7 + $0x9a8] sm:$0xff]
    %v4148 = vld [vmem:[#allocation7 + $0x9b0] sm:$0xff]
    %v4149 = vld [vmem:[#allocation7 + $0x9b8] sm:$0xff]
    %v4150 = vld [vmem:[#allocation7 + $0x9c0] sm:$0xff]
    %v4151 = vld [vmem:[#allocation7 + $0x9c8] sm:$0xff]
    %v4152 = vld [vmem:[#allocation7 + $0x9d0] sm:$0xff]
    %v4153 = vld [vmem:[#allocation7 + $0x9d8] sm:$0xff]
    %v4154 = vld [vmem:[#allocation7 + $0x9e0] sm:$0xff]
    %v4155 = vld [vmem:[#allocation7 + $0x9e8] sm:$0xff]
    %v4156 = vld [vmem:[#allocation7 + $0x9f0] sm:$0xff]
    %v4157 = vld [vmem:[#allocation7 + $0x9f8] sm:$0xff]
    %v4158 = vld [vmem:[#allocation7 + $0xa00] sm:$0xff]
    %v4159 = vld [vmem:[#allocation7 + $0xa08] sm:$0xff]
    %v4160 = vld [vmem:[#allocation7 + $0xa10] sm:$0xff]
    %v4161 = vld [vmem:[#allocation7 + $0xa18] sm:$0xff]
    %v4162 = vld [vmem:[#allocation7 + $0xa20] sm:$0xff]
    %v4163 = vld [vmem:[#allocation7 + $0xa28] sm:$0xff]
    %v4164 = vld [vmem:[#allocation7 + $0xa30] sm:$0xff]
    %v4165 = vld [vmem:[#allocation7 + $0xa38] sm:$0xff]
    %v4166 = vld [vmem:[#allocation7 + $0xa40] sm:$0xff]
    %v4167 = vld [vmem:[#allocation7 + $0xa48] sm:$0xff]
    %v4168 = vld [vmem:[#allocation7 + $0xa50] sm:$0xff]
    %v4169 = vld [vmem:[#allocation7 + $0xa58] sm:$0xff]
    %v4170 = vld [vmem:[#allocation7 + $0xa60] sm:$0xff]
    %v4171 = vld [vmem:[#allocation7 + $0xa68] sm:$0xff]
    %v4172 = vld [vmem:[#allocation7 + $0xa70] sm:$0xff]
    %v4173 = vld [vmem:[#allocation7 + $0xa78] sm:$0xff]
    %v4174 = vld [vmem:[#allocation7 + $0xa80] sm:$0xff]
    %v4175 = vld [vmem:[#allocation7 + $0xa88] sm:$0xff]
    %v4176 = vld [vmem:[#allocation7 + $0xa90] sm:$0xff]
    %v4177 = vld [vmem:[#allocation7 + $0xa98] sm:$0xff]
    %v4178 = vld [vmem:[#allocation7 + $0xaa0] sm:$0xff]
    %v4179 = vld [vmem:[#allocation7 + $0xaa8] sm:$0xff]
    %v4180 = vld [vmem:[#allocation7 + $0xab0] sm:$0xff]
    %v4181 = vld [vmem:[#allocation7 + $0xab8] sm:$0xff]
    %v4182 = vld [vmem:[#allocation7 + $0xac0] sm:$0xff]
    %v4183 = vld [vmem:[#allocation7 + $0xac8] sm:$0xff]
    %v4184 = vld [vmem:[#allocation7 + $0xad0] sm:$0xff]
    %v4185 = vld [vmem:[#allocation7 + $0xad8] sm:$0xff]
    %v4186 = vld [vmem:[#allocation7 + $0xae0] sm:$0xff]
    %v4187 = vld [vmem:[#allocation7 + $0xae8] sm:$0xff]
    %v4188 = vld [vmem:[#allocation7 + $0xaf0] sm:$0xff]
    %v4189 = vld [vmem:[#allocation7 + $0xaf8] sm:$0xff]
    %v4190 = vld [vmem:[#allocation7 + $0xb00] sm:$0xff]
    %v4191 = vld [vmem:[#allocation7 + $0xb08] sm:$0xff]
    %v4192 = vld [vmem:[#allocation7 + $0xb10] sm:$0xff]
    %v4193 = vld [vmem:[#allocation7 + $0xb18] sm:$0xff]
    %v4194 = vld [vmem:[#allocation7 + $0xb20] sm:$0xff]
    %v4195 = vld [vmem:[#allocation7 + $0xb28] sm:$0xff]
    %v4196 = vld [vmem:[#allocation7 + $0xb30] sm:$0xff]
    %v4197 = vld [vmem:[#allocation7 + $0xb38] sm:$0xff]
    %v4198 = vld [vmem:[#allocation7 + $0xb40] sm:$0xff]
    %v4199 = vld [vmem:[#allocation7 + $0xb48] sm:$0xff]
    %v4200 = vld [vmem:[#allocation7 + $0xb50] sm:$0xff]
    %v4201 = vld [vmem:[#allocation7 + $0xb58] sm:$0xff]
    %v4202 = vld [vmem:[#allocation7 + $0xb60] sm:$0xff]
    %v4203 = vld [vmem:[#allocation7 + $0xb68] sm:$0xff]
    %v4204 = vld [vmem:[#allocation7 + $0xb70] sm:$0xff]
    %v4205 = vld [vmem:[#allocation7 + $0xb78] sm:$0xff]
    %v4206 = vld [vmem:[#allocation7 + $0xb80] sm:$0xff]
    %v4207 = vld [vmem:[#allocation7 + $0xb88] sm:$0xff]
    %v4208 = vld [vmem:[#allocation7 + $0xb90] sm:$0xff]
    %v4209 = vld [vmem:[#allocation7 + $0xb98] sm:$0xff]
    %v4210 = vld [vmem:[#allocation7 + $0xba0] sm:$0xff]
    %v4211 = vld [vmem:[#allocation7 + $0xba8] sm:$0xff]
    %v4212 = vld [vmem:[#allocation7 + $0xbb0] sm:$0xff]
    %v4213 = vld [vmem:[#allocation7 + $0xbb8] sm:$0xff]
    %v4214 = vld [vmem:[#allocation7 + $0xbc0] sm:$0xff]
    %v4215 = vld [vmem:[#allocation7 + $0xbc8] sm:$0xff]
    %v4216 = vld [vmem:[#allocation7 + $0xbd0] sm:$0xff]
    %v4217 = vld [vmem:[#allocation7 + $0xbd8] sm:$0xff]
    %v4218 = vld [vmem:[#allocation7 + $0xbe0] sm:$0xff]
    %v4219 = vld [vmem:[#allocation7 + $0xbe8] sm:$0xff]
    %v4220 = vld [vmem:[#allocation7 + $0xbf0] sm:$0xff]
    %v4221 = vld [vmem:[#allocation7 + $0xbf8] sm:$0xff]
    %v4222 = vld [vmem:[#allocation7 + $0xc00] sm:$0xff]
    %v4223 = vld [vmem:[#allocation7 + $0xc08] sm:$0xff]
    %v4224 = vld [vmem:[#allocation7 + $0xc10] sm:$0xff]
    %v4225 = vld [vmem:[#allocation7 + $0xc18] sm:$0xff]
    %v4226 = vld [vmem:[#allocation7 + $0xc20] sm:$0xff]
    %v4227 = vld [vmem:[#allocation7 + $0xc28] sm:$0xff]
    %v4228 = vld [vmem:[#allocation7 + $0xc30] sm:$0xff]
    %v4229 = vld [vmem:[#allocation7 + $0xc38] sm:$0xff]
    %v4230 = vld [vmem:[#allocation7 + $0xc40] sm:$0xff]
    %v4231 = vld [vmem:[#allocation7 + $0xc48] sm:$0xff]
    %v4232 = vld [vmem:[#allocation7 + $0xc50] sm:$0xff]
    %v4233 = vld [vmem:[#allocation7 + $0xc58] sm:$0xff]
    %v4234 = vld [vmem:[#allocation7 + $0xc60] sm:$0xff]
    %v4235 = vld [vmem:[#allocation7 + $0xc68] sm:$0xff]
    %v4236 = vld [vmem:[#allocation7 + $0xc70] sm:$0xff]
    %v4237 = vld [vmem:[#allocation7 + $0xc78] sm:$0xff]
    %v4238 = vld [vmem:[#allocation7 + $0xc80] sm:$0xff]
    %v4239 = vld [vmem:[#allocation7 + $0xc88] sm:$0xff]
    %v4240 = vld [vmem:[#allocation7 + $0xc90] sm:$0xff]
    %v4241 = vld [vmem:[#allocation7 + $0xc98] sm:$0xff]
    %v4242 = vld [vmem:[#allocation7 + $0xca0] sm:$0xff]
    %v4243 = vld [vmem:[#allocation7 + $0xca8] sm:$0xff]
    %v4244 = vld [vmem:[#allocation7 + $0xcb0] sm:$0xff]
    %v4245 = vld [vmem:[#allocation7 + $0xcb8] sm:$0xff]
    %v4246 = vld [vmem:[#allocation7 + $0xcc0] sm:$0xff]
    %v4247 = vld [vmem:[#allocation7 + $0xcc8] sm:$0xff]
    %v4248 = vld [vmem:[#allocation7 + $0xcd0] sm:$0xff]
    %v4249 = vld [vmem:[#allocation7 + $0xcd8] sm:$0xff]
    %v4250 = vld [vmem:[#allocation7 + $0xce0] sm:$0xff]
    %v4251 = vld [vmem:[#allocation7 + $0xce8] sm:$0xff]
    %v4252 = vld [vmem:[#allocation7 + $0xcf0] sm:$0xff]
    %v4253 = vld [vmem:[#allocation7 + $0xcf8] sm:$0xff]
    %v4254 = vld [vmem:[#allocation7 + $0xd00] sm:$0xff]
    %v4255 = vld [vmem:[#allocation7 + $0xd08] sm:$0xff]
    %v4256 = vld [vmem:[#allocation7 + $0xd10] sm:$0xff]
    %v4257 = vld [vmem:[#allocation7 + $0xd18] sm:$0xff]
    %v4258 = vld [vmem:[#allocation7 + $0xd20] sm:$0xff]
    %v4259 = vld [vmem:[#allocation7 + $0xd28] sm:$0xff]
    %v4260 = vld [vmem:[#allocation7 + $0xd30] sm:$0xff]
    %v4261 = vld [vmem:[#allocation7 + $0xd38] sm:$0xff]
    %v4262 = vld [vmem:[#allocation7 + $0xd40] sm:$0xff]
    %v4263 = vld [vmem:[#allocation7 + $0xd48] sm:$0xff]
    %v4264 = vld [vmem:[#allocation7 + $0xd50] sm:$0xff]
    %v4265 = vld [vmem:[#allocation7 + $0xd58] sm:$0xff]
    %v4266 = vld [vmem:[#allocation7 + $0xd60] sm:$0xff]
    %v4267 = vld [vmem:[#allocation7 + $0xd68] sm:$0xff]
    %v4268 = vld [vmem:[#allocation7 + $0xd70] sm:$0xff]
    %v4269 = vld [vmem:[#allocation7 + $0xd78] sm:$0xff]
    %v4270 = vld [vmem:[#allocation7 + $0xd80] sm:$0xff]
    %v4271 = vld [vmem:[#allocation7 + $0xd88] sm:$0xff]
    %v4272 = vld [vmem:[#allocation7 + $0xd90] sm:$0xff]
    %v4273 = vld [vmem:[#allocation7 + $0xd98] sm:$0xff]
    %v4274 = vld [vmem:[#allocation7 + $0xda0] sm:$0xff]
    %v4275 = vld [vmem:[#allocation7 + $0xda8] sm:$0xff]
    %v4276 = vld [vmem:[#allocation7 + $0xdb0] sm:$0xff]
    %v4277 = vld [vmem:[#allocation7 + $0xdb8] sm:$0xff]
    %v4278 = vld [vmem:[#allocation7 + $0xdc0] sm:$0xff]
    %v4279 = vld [vmem:[#allocation7 + $0xdc8] sm:$0xff]
    %v4280 = vld [vmem:[#allocation7 + $0xdd0] sm:$0xff]
    %v4281 = vld [vmem:[#allocation7 + $0xdd8] sm:$0xff]
    %v4282 = vld [vmem:[#allocation7 + $0xde0] sm:$0xff]
    %v4283 = vld [vmem:[#allocation7 + $0xde8] sm:$0xff]
    %v4284 = vld [vmem:[#allocation7 + $0xdf0] sm:$0xff]
    %v4285 = vld [vmem:[#allocation7 + $0xdf8] sm:$0xff]
    %v4286 = vld [vmem:[#allocation7 + $0xe00] sm:$0xff]
    %v4287 = vld [vmem:[#allocation7 + $0xe08] sm:$0xff]
    %v4288 = vld [vmem:[#allocation7 + $0xe10] sm:$0xff]
    %v4289 = vld [vmem:[#allocation7 + $0xe18] sm:$0xff]
    %v4290 = vld [vmem:[#allocation7 + $0xe20] sm:$0xff]
    %v4291 = vld [vmem:[#allocation7 + $0xe28] sm:$0xff]
    %v4292 = vld [vmem:[#allocation7 + $0xe30] sm:$0xff]
    %v4293 = vld [vmem:[#allocation7 + $0xe38] sm:$0xff]
    %v4294 = vld [vmem:[#allocation7 + $0xe40] sm:$0xff]
    %v4295 = vld [vmem:[#allocation7 + $0xe48] sm:$0xff]
    %v4296 = vld [vmem:[#allocation7 + $0xe50] sm:$0xff]
    %v4297 = vld [vmem:[#allocation7 + $0xe58] sm:$0xff]
    %v4298 = vld [vmem:[#allocation7 + $0xe60] sm:$0xff]
    %v4299 = vld [vmem:[#allocation7 + $0xe68] sm:$0xff]
    %v4300 = vld [vmem:[#allocation7 + $0xe70] sm:$0xff]
    %v4301 = vld [vmem:[#allocation7 + $0xe78] sm:$0xff]
    %v4302 = vld [vmem:[#allocation7 + $0xe80] sm:$0xff]
    %v4303 = vld [vmem:[#allocation7 + $0xe88] sm:$0xff]
    %v4304 = vld [vmem:[#allocation7 + $0xe90] sm:$0xff]
    %v4305 = vld [vmem:[#allocation7 + $0xe98] sm:$0xff]
    %v4306 = vld [vmem:[#allocation7 + $0xea0] sm:$0xff]
    %v4307 = vld [vmem:[#allocation7 + $0xea8] sm:$0xff]
    %v4308 = vld [vmem:[#allocation7 + $0xeb0] sm:$0xff]
    %v4309 = vld [vmem:[#allocation7 + $0xeb8] sm:$0xff]
    %v4310 = vld [vmem:[#allocation7 + $0xec0] sm:$0xff]
    %v4311 = vld [vmem:[#allocation7 + $0xec8] sm:$0xff]
    %v4312 = vld [vmem:[#allocation7 + $0xed0] sm:$0xff]
    %v4313 = vld [vmem:[#allocation7 + $0xed8] sm:$0xff]
    %v4314 = vld [vmem:[#allocation7 + $0xee0] sm:$0xff]
    %v4315 = vld [vmem:[#allocation7 + $0xee8] sm:$0xff]
    %v4316 = vld [vmem:[#allocation7 + $0xef0] sm:$0xff]
    %v4317 = vld [vmem:[#allocation7 + $0xef8] sm:$0xff]
    %v4318 = vld [vmem:[#allocation7 + $0xf00] sm:$0xff]
    %v4319 = vld [vmem:[#allocation7 + $0xf08] sm:$0xff]
    %v4320 = vld [vmem:[#allocation7 + $0xf10] sm:$0xff]
    %v4321 = vld [vmem:[#allocation7 + $0xf18] sm:$0xff]
    %v4322 = vld [vmem:[#allocation7 + $0xf20] sm:$0xff]
    %v4323 = vld [vmem:[#allocation7 + $0xf28] sm:$0xff]
    %v4324 = vld [vmem:[#allocation7 + $0xf30] sm:$0xff]
    %v4325 = vld [vmem:[#allocation7 + $0xf38] sm:$0xff]
    %v4326 = vld [vmem:[#allocation7 + $0xf40] sm:$0xff]
    %v4327 = vld [vmem:[#allocation7 + $0xf48] sm:$0xff]
    %v4328 = vld [vmem:[#allocation7 + $0xf50] sm:$0xff]
    %v4329 = vld [vmem:[#allocation7 + $0xf58] sm:$0xff]
    %v4330 = vld [vmem:[#allocation7 + $0xf60] sm:$0xff]
    %v4331 = vld [vmem:[#allocation7 + $0xf68] sm:$0xff]
    %v4332 = vld [vmem:[#allocation7 + $0xf70] sm:$0xff]
    %v4333 = vld [vmem:[#allocation7 + $0xf78] sm:$0xff]
    %v4334 = vld [vmem:[#allocation7 + $0xf80] sm:$0xff]
    %v4335 = vld [vmem:[#allocation7 + $0xf88] sm:$0xff]
    %v4336 = vld [vmem:[#allocation7 + $0xf90] sm:$0xff]
    %v4337 = vld [vmem:[#allocation7 + $0xf98] sm:$0xff]
    %v4338 = vld [vmem:[#allocation7 + $0xfa0] sm:$0xff]
    %v4339 = vld [vmem:[#allocation7 + $0xfa8] sm:$0xff]
    %v4340 = vld [vmem:[#allocation7 + $0xfb0] sm:$0xff]
    %v4341 = vld [vmem:[#allocation7 + $0xfb8] sm:$0xff]
    %v4342 = vld [vmem:[#allocation7 + $0xfc0] sm:$0xff]
    %v4343 = vld [vmem:[#allocation7 + $0xfc8] sm:$0xff]
    %v4344 = vld [vmem:[#allocation7 + $0xfd0] sm:$0xff]
    %v4345 = vld [vmem:[#allocation7 + $0xfd8] sm:$0xff]
    %v4346 = vld [vmem:[#allocation7 + $0xfe0] sm:$0xff]
    %v4347 = vld [vmem:[#allocation7 + $0xfe8] sm:$0xff]
    %v4348 = vld [vmem:[#allocation7 + $0xff0] sm:$0xff]
    %v4349 = vld [vmem:[#allocation7 + $0xff8] sm:$0xff]
    %v4862 = vunpack.c.l.b16 %v3838
    %v4863 = vunpack.c.h.b16 %v3838
    %v4864 = vunpack.c.l.b16 %v3839
    %v4865 = vunpack.c.h.b16 %v3839
    %v4866 = vunpack.c.l.b16 %v3840
    %v4867 = vunpack.c.h.b16 %v3840
    %v4868 = vunpack.c.l.b16 %v3841
    %v4869 = vunpack.c.h.b16 %v3841
    %v4870 = vunpack.c.l.b16 %v3842
    %v4871 = vunpack.c.h.b16 %v3842
    %v4872 = vunpack.c.l.b16 %v3843
    %v4873 = vunpack.c.h.b16 %v3843
    %v4874 = vunpack.c.l.b16 %v3844
    %v4875 = vunpack.c.h.b16 %v3844
    %v4876 = vunpack.c.l.b16 %v3845
    %v4877 = vunpack.c.h.b16 %v3845
    %v4878 = vunpack.c.l.b16 %v3846
    %v4879 = vunpack.c.h.b16 %v3846
    %v4880 = vunpack.c.l.b16 %v3847
    %v4881 = vunpack.c.h.b16 %v3847
    %v4882 = vunpack.c.l.b16 %v3848
    %v4883 = vunpack.c.h.b16 %v3848
    %v4884 = vunpack.c.l.b16 %v3849
    %v4885 = vunpack.c.h.b16 %v3849
    %v4886 = vunpack.c.l.b16 %v3850
    %v4887 = vunpack.c.h.b16 %v3850
    %v4888 = vunpack.c.l.b16 %v3851
    %v4889 = vunpack.c.h.b16 %v3851
    %v4890 = vunpack.c.l.b16 %v3852
    %v4891 = vunpack.c.h.b16 %v3852
    %v4892 = vunpack.c.l.b16 %v3853
    %v4893 = vunpack.c.h.b16 %v3853
    %v4894 = vunpack.c.l.b16 %v3854
    %v4895 = vunpack.c.h.b16 %v3854
    %v4896 = vunpack.c.l.b16 %v3855
    %v4897 = vunpack.c.h.b16 %v3855
    %v4898 = vunpack.c.l.b16 %v3856
    %v4899 = vunpack.c.h.b16 %v3856
    %v4900 = vunpack.c.l.b16 %v3857
    %v4901 = vunpack.c.h.b16 %v3857
    %v4902 = vunpack.c.l.b16 %v3858
    %v4903 = vunpack.c.h.b16 %v3858
    %v4904 = vunpack.c.l.b16 %v3859
    %v4905 = vunpack.c.h.b16 %v3859
    %v4906 = vunpack.c.l.b16 %v3860
    %v4907 = vunpack.c.h.b16 %v3860
    %v4908 = vunpack.c.l.b16 %v3861
    %v4909 = vunpack.c.h.b16 %v3861
    %v4910 = vunpack.c.l.b16 %v3862
    %v4911 = vunpack.c.h.b16 %v3862
    %v4912 = vunpack.c.l.b16 %v3863
    %v4913 = vunpack.c.h.b16 %v3863
    %v4914 = vunpack.c.l.b16 %v3864
    %v4915 = vunpack.c.h.b16 %v3864
    %v4916 = vunpack.c.l.b16 %v3865
    %v4917 = vunpack.c.h.b16 %v3865
    %v4918 = vunpack.c.l.b16 %v3866
    %v4919 = vunpack.c.h.b16 %v3866
    %v4920 = vunpack.c.l.b16 %v3867
    %v4921 = vunpack.c.h.b16 %v3867
    %v4922 = vunpack.c.l.b16 %v3868
    %v4923 = vunpack.c.h.b16 %v3868
    %v4924 = vunpack.c.l.b16 %v3869
    %v4925 = vunpack.c.h.b16 %v3869
    %v4926 = vunpack.c.l.b16 %v3870
    %v4927 = vunpack.c.h.b16 %v3870
    %v4928 = vunpack.c.l.b16 %v3871
    %v4929 = vunpack.c.h.b16 %v3871
    %v4930 = vunpack.c.l.b16 %v3872
    %v4931 = vunpack.c.h.b16 %v3872
    %v4932 = vunpack.c.l.b16 %v3873
    %v4933 = vunpack.c.h.b16 %v3873
    %v4934 = vunpack.c.l.b16 %v3874
    %v4935 = vunpack.c.h.b16 %v3874
    %v4936 = vunpack.c.l.b16 %v3875
    %v4937 = vunpack.c.h.b16 %v3875
    %v4938 = vunpack.c.l.b16 %v3876
    %v4939 = vunpack.c.h.b16 %v3876
    %v4940 = vunpack.c.l.b16 %v3877
    %v4941 = vunpack.c.h.b16 %v3877
    %v4942 = vunpack.c.l.b16 %v3878
    %v4943 = vunpack.c.h.b16 %v3878
    %v4944 = vunpack.c.l.b16 %v3879
    %v4945 = vunpack.c.h.b16 %v3879
    %v4946 = vunpack.c.l.b16 %v3880
    %v4947 = vunpack.c.h.b16 %v3880
    %v4948 = vunpack.c.l.b16 %v3881
    %v4949 = vunpack.c.h.b16 %v3881
    %v4950 = vunpack.c.l.b16 %v3882
    %v4951 = vunpack.c.h.b16 %v3882
    %v4952 = vunpack.c.l.b16 %v3883
    %v4953 = vunpack.c.h.b16 %v3883
    %v4954 = vunpack.c.l.b16 %v3884
    %v4955 = vunpack.c.h.b16 %v3884
    %v4956 = vunpack.c.l.b16 %v3885
    %v4957 = vunpack.c.h.b16 %v3885
    %v4958 = vunpack.c.l.b16 %v3886
    %v4959 = vunpack.c.h.b16 %v3886
    %v4960 = vunpack.c.l.b16 %v3887
    %v4961 = vunpack.c.h.b16 %v3887
    %v4962 = vunpack.c.l.b16 %v3888
    %v4963 = vunpack.c.h.b16 %v3888
    %v4964 = vunpack.c.l.b16 %v3889
    %v4965 = vunpack.c.h.b16 %v3889
    %v4966 = vunpack.c.l.b16 %v3890
    %v4967 = vunpack.c.h.b16 %v3890
    %v4968 = vunpack.c.l.b16 %v3891
    %v4969 = vunpack.c.h.b16 %v3891
    %v4970 = vunpack.c.l.b16 %v3892
    %v4971 = vunpack.c.h.b16 %v3892
    %v4972 = vunpack.c.l.b16 %v3893
    %v4973 = vunpack.c.h.b16 %v3893
    %v4974 = vunpack.c.l.b16 %v3894
    %v4975 = vunpack.c.h.b16 %v3894
    %v4976 = vunpack.c.l.b16 %v3895
    %v4977 = vunpack.c.h.b16 %v3895
    %v4978 = vunpack.c.l.b16 %v3896
    %v4979 = vunpack.c.h.b16 %v3896
    %v4980 = vunpack.c.l.b16 %v3897
    %v4981 = vunpack.c.h.b16 %v3897
    %v4982 = vunpack.c.l.b16 %v3898
    %v4983 = vunpack.c.h.b16 %v3898
    %v4984 = vunpack.c.l.b16 %v3899
    %v4985 = vunpack.c.h.b16 %v3899
    %v4986 = vunpack.c.l.b16 %v3900
    %v4987 = vunpack.c.h.b16 %v3900
    %v4988 = vunpack.c.l.b16 %v3901
    %v4989 = vunpack.c.h.b16 %v3901
    %v4990 = vunpack.c.l.b16 %v3902
    %v4991 = vunpack.c.h.b16 %v3902
    %v4992 = vunpack.c.l.b16 %v3903
    %v4993 = vunpack.c.h.b16 %v3903
    %v4994 = vunpack.c.l.b16 %v3904
    %v4995 = vunpack.c.h.b16 %v3904
    %v4996 = vunpack.c.l.b16 %v3905
    %v4997 = vunpack.c.h.b16 %v3905
    %v4998 = vunpack.c.l.b16 %v3906
    %v4999 = vunpack.c.h.b16 %v3906
    %v5000 = vunpack.c.l.b16 %v3907
    %v5001 = vunpack.c.h.b16 %v3907
    %v5002 = vunpack.c.l.b16 %v3908
    %v5003 = vunpack.c.h.b16 %v3908
    %v5004 = vunpack.c.l.b16 %v3909
    %v5005 = vunpack.c.h.b16 %v3909
    %v5006 = vunpack.c.l.b16 %v3910
    %v5007 = vunpack.c.h.b16 %v3910
    %v5008 = vunpack.c.l.b16 %v3911
    %v5009 = vunpack.c.h.b16 %v3911
    %v5010 = vunpack.c.l.b16 %v3912
    %v5011 = vunpack.c.h.b16 %v3912
    %v5012 = vunpack.c.l.b16 %v3913
    %v5013 = vunpack.c.h.b16 %v3913
    %v5014 = vunpack.c.l.b16 %v3914
    %v5015 = vunpack.c.h.b16 %v3914
    %v5016 = vunpack.c.l.b16 %v3915
    %v5017 = vunpack.c.h.b16 %v3915
    %v5018 = vunpack.c.l.b16 %v3916
    %v5019 = vunpack.c.h.b16 %v3916
    %v5020 = vunpack.c.l.b16 %v3917
    %v5021 = vunpack.c.h.b16 %v3917
    %v5022 = vunpack.c.l.b16 %v3918
    %v5023 = vunpack.c.h.b16 %v3918
    %v5024 = vunpack.c.l.b16 %v3919
    %v5025 = vunpack.c.h.b16 %v3919
    %v5026 = vunpack.c.l.b16 %v3920
    %v5027 = vunpack.c.h.b16 %v3920
    %v5028 = vunpack.c.l.b16 %v3921
    %v5029 = vunpack.c.h.b16 %v3921
    %v5030 = vunpack.c.l.b16 %v3922
    %v5031 = vunpack.c.h.b16 %v3922
    %v5032 = vunpack.c.l.b16 %v3923
    %v5033 = vunpack.c.h.b16 %v3923
    %v5034 = vunpack.c.l.b16 %v3924
    %v5035 = vunpack.c.h.b16 %v3924
    %v5036 = vunpack.c.l.b16 %v3925
    %v5037 = vunpack.c.h.b16 %v3925
    %v5038 = vunpack.c.l.b16 %v3926
    %v5039 = vunpack.c.h.b16 %v3926
    %v5040 = vunpack.c.l.b16 %v3927
    %v5041 = vunpack.c.h.b16 %v3927
    %v5042 = vunpack.c.l.b16 %v3928
    %v5043 = vunpack.c.h.b16 %v3928
    %v5044 = vunpack.c.l.b16 %v3929
    %v5045 = vunpack.c.h.b16 %v3929
    %v5046 = vunpack.c.l.b16 %v3930
    %v5047 = vunpack.c.h.b16 %v3930
    %v5048 = vunpack.c.l.b16 %v3931
    %v5049 = vunpack.c.h.b16 %v3931
    %v5050 = vunpack.c.l.b16 %v3932
    %v5051 = vunpack.c.h.b16 %v3932
    %v5052 = vunpack.c.l.b16 %v3933
    %v5053 = vunpack.c.h.b16 %v3933
    %v5054 = vunpack.c.l.b16 %v3934
    %v5055 = vunpack.c.h.b16 %v3934
    %v5056 = vunpack.c.l.b16 %v3935
    %v5057 = vunpack.c.h.b16 %v3935
    %v5058 = vunpack.c.l.b16 %v3936
    %v5059 = vunpack.c.h.b16 %v3936
    %v5060 = vunpack.c.l.b16 %v3937
    %v5061 = vunpack.c.h.b16 %v3937
    %v5062 = vunpack.c.l.b16 %v3938
    %v5063 = vunpack.c.h.b16 %v3938
    %v5064 = vunpack.c.l.b16 %v3939
    %v5065 = vunpack.c.h.b16 %v3939
    %v5066 = vunpack.c.l.b16 %v3940
    %v5067 = vunpack.c.h.b16 %v3940
    %v5068 = vunpack.c.l.b16 %v3941
    %v5069 = vunpack.c.h.b16 %v3941
    %v5070 = vunpack.c.l.b16 %v3942
    %v5071 = vunpack.c.h.b16 %v3942
    %v5072 = vunpack.c.l.b16 %v3943
    %v5073 = vunpack.c.h.b16 %v3943
    %v5074 = vunpack.c.l.b16 %v3944
    %v5075 = vunpack.c.h.b16 %v3944
    %v5076 = vunpack.c.l.b16 %v3945
    %v5077 = vunpack.c.h.b16 %v3945
    %v5078 = vunpack.c.l.b16 %v3946
    %v5079 = vunpack.c.h.b16 %v3946
    %v5080 = vunpack.c.l.b16 %v3947
    %v5081 = vunpack.c.h.b16 %v3947
    %v5082 = vunpack.c.l.b16 %v3948
    %v5083 = vunpack.c.h.b16 %v3948
    %v5084 = vunpack.c.l.b16 %v3949
    %v5085 = vunpack.c.h.b16 %v3949
    %v5086 = vunpack.c.l.b16 %v3950
    %v5087 = vunpack.c.h.b16 %v3950
    %v5088 = vunpack.c.l.b16 %v3951
    %v5089 = vunpack.c.h.b16 %v3951
    %v5090 = vunpack.c.l.b16 %v3952
    %v5091 = vunpack.c.h.b16 %v3952
    %v5092 = vunpack.c.l.b16 %v3953
    %v5093 = vunpack.c.h.b16 %v3953
    %v5094 = vunpack.c.l.b16 %v3954
    %v5095 = vunpack.c.h.b16 %v3954
    %v5096 = vunpack.c.l.b16 %v3955
    %v5097 = vunpack.c.h.b16 %v3955
    %v5098 = vunpack.c.l.b16 %v3956
    %v5099 = vunpack.c.h.b16 %v3956
    %v5100 = vunpack.c.l.b16 %v3957
    %v5101 = vunpack.c.h.b16 %v3957
    %v5102 = vunpack.c.l.b16 %v3958
    %v5103 = vunpack.c.h.b16 %v3958
    %v5104 = vunpack.c.l.b16 %v3959
    %v5105 = vunpack.c.h.b16 %v3959
    %v5106 = vunpack.c.l.b16 %v3960
    %v5107 = vunpack.c.h.b16 %v3960
    %v5108 = vunpack.c.l.b16 %v3961
    %v5109 = vunpack.c.h.b16 %v3961
    %v5110 = vunpack.c.l.b16 %v3962
    %v5111 = vunpack.c.h.b16 %v3962
    %v5112 = vunpack.c.l.b16 %v3963
    %v5113 = vunpack.c.h.b16 %v3963
    %v5114 = vunpack.c.l.b16 %v3964
    %v5115 = vunpack.c.h.b16 %v3964
    %v5116 = vunpack.c.l.b16 %v3965
    %v5117 = vunpack.c.h.b16 %v3965
    %v5118 = vunpack.c.l.b16 %v3966
    %v5119 = vunpack.c.h.b16 %v3966
    %v5120 = vunpack.c.l.b16 %v3967
    %v5121 = vunpack.c.h.b16 %v3967
    %v5122 = vunpack.c.l.b16 %v3968
    %v5123 = vunpack.c.h.b16 %v3968
    %v5124 = vunpack.c.l.b16 %v3969
    %v5125 = vunpack.c.h.b16 %v3969
    %v5126 = vunpack.c.l.b16 %v3970
    %v5127 = vunpack.c.h.b16 %v3970
    %v5128 = vunpack.c.l.b16 %v3971
    %v5129 = vunpack.c.h.b16 %v3971
    %v5130 = vunpack.c.l.b16 %v3972
    %v5131 = vunpack.c.h.b16 %v3972
    %v5132 = vunpack.c.l.b16 %v3973
    %v5133 = vunpack.c.h.b16 %v3973
    %v5134 = vunpack.c.l.b16 %v3974
    %v5135 = vunpack.c.h.b16 %v3974
    %v5136 = vunpack.c.l.b16 %v3975
    %v5137 = vunpack.c.h.b16 %v3975
    %v5138 = vunpack.c.l.b16 %v3976
    %v5139 = vunpack.c.h.b16 %v3976
    %v5140 = vunpack.c.l.b16 %v3977
    %v5141 = vunpack.c.h.b16 %v3977
    %v5142 = vunpack.c.l.b16 %v3978
    %v5143 = vunpack.c.h.b16 %v3978
    %v5144 = vunpack.c.l.b16 %v3979
    %v5145 = vunpack.c.h.b16 %v3979
    %v5146 = vunpack.c.l.b16 %v3980
    %v5147 = vunpack.c.h.b16 %v3980
    %v5148 = vunpack.c.l.b16 %v3981
    %v5149 = vunpack.c.h.b16 %v3981
    %v5150 = vunpack.c.l.b16 %v3982
    %v5151 = vunpack.c.h.b16 %v3982
    %v5152 = vunpack.c.l.b16 %v3983
    %v5153 = vunpack.c.h.b16 %v3983
    %v5154 = vunpack.c.l.b16 %v3984
    %v5155 = vunpack.c.h.b16 %v3984
    %v5156 = vunpack.c.l.b16 %v3985
    %v5157 = vunpack.c.h.b16 %v3985
    %v5158 = vunpack.c.l.b16 %v3986
    %v5159 = vunpack.c.h.b16 %v3986
    %v5160 = vunpack.c.l.b16 %v3987
    %v5161 = vunpack.c.h.b16 %v3987
    %v5162 = vunpack.c.l.b16 %v3988
    %v5163 = vunpack.c.h.b16 %v3988
    %v5164 = vunpack.c.l.b16 %v3989
    %v5165 = vunpack.c.h.b16 %v3989
    %v5166 = vunpack.c.l.b16 %v3990
    %v5167 = vunpack.c.h.b16 %v3990
    %v5168 = vunpack.c.l.b16 %v3991
    %v5169 = vunpack.c.h.b16 %v3991
    %v5170 = vunpack.c.l.b16 %v3992
    %v5171 = vunpack.c.h.b16 %v3992
    %v5172 = vunpack.c.l.b16 %v3993
    %v5173 = vunpack.c.h.b16 %v3993
    %v5174 = vunpack.c.l.b16 %v3994
    %v5175 = vunpack.c.h.b16 %v3994
    %v5176 = vunpack.c.l.b16 %v3995
    %v5177 = vunpack.c.h.b16 %v3995
    %v5178 = vunpack.c.l.b16 %v3996
    %v5179 = vunpack.c.h.b16 %v3996
    %v5180 = vunpack.c.l.b16 %v3997
    %v5181 = vunpack.c.h.b16 %v3997
    %v5182 = vunpack.c.l.b16 %v3998
    %v5183 = vunpack.c.h.b16 %v3998
    %v5184 = vunpack.c.l.b16 %v3999
    %v5185 = vunpack.c.h.b16 %v3999
    %v5186 = vunpack.c.l.b16 %v4000
    %v5187 = vunpack.c.h.b16 %v4000
    %v5188 = vunpack.c.l.b16 %v4001
    %v5189 = vunpack.c.h.b16 %v4001
    %v5190 = vunpack.c.l.b16 %v4002
    %v5191 = vunpack.c.h.b16 %v4002
    %v5192 = vunpack.c.l.b16 %v4003
    %v5193 = vunpack.c.h.b16 %v4003
    %v5194 = vunpack.c.l.b16 %v4004
    %v5195 = vunpack.c.h.b16 %v4004
    %v5196 = vunpack.c.l.b16 %v4005
    %v5197 = vunpack.c.h.b16 %v4005
    %v5198 = vunpack.c.l.b16 %v4006
    %v5199 = vunpack.c.h.b16 %v4006
    %v5200 = vunpack.c.l.b16 %v4007
    %v5201 = vunpack.c.h.b16 %v4007
    %v5202 = vunpack.c.l.b16 %v4008
    %v5203 = vunpack.c.h.b16 %v4008
    %v5204 = vunpack.c.l.b16 %v4009
    %v5205 = vunpack.c.h.b16 %v4009
    %v5206 = vunpack.c.l.b16 %v4010
    %v5207 = vunpack.c.h.b16 %v4010
    %v5208 = vunpack.c.l.b16 %v4011
    %v5209 = vunpack.c.h.b16 %v4011
    %v5210 = vunpack.c.l.b16 %v4012
    %v5211 = vunpack.c.h.b16 %v4012
    %v5212 = vunpack.c.l.b16 %v4013
    %v5213 = vunpack.c.h.b16 %v4013
    %v5214 = vunpack.c.l.b16 %v4014
    %v5215 = vunpack.c.h.b16 %v4014
    %v5216 = vunpack.c.l.b16 %v4015
    %v5217 = vunpack.c.h.b16 %v4015
    %v5218 = vunpack.c.l.b16 %v4016
    %v5219 = vunpack.c.h.b16 %v4016
    %v5220 = vunpack.c.l.b16 %v4017
    %v5221 = vunpack.c.h.b16 %v4017
    %v5222 = vunpack.c.l.b16 %v4018
    %v5223 = vunpack.c.h.b16 %v4018
    %v5224 = vunpack.c.l.b16 %v4019
    %v5225 = vunpack.c.h.b16 %v4019
    %v5226 = vunpack.c.l.b16 %v4020
    %v5227 = vunpack.c.h.b16 %v4020
    %v5228 = vunpack.c.l.b16 %v4021
    %v5229 = vunpack.c.h.b16 %v4021
    %v5230 = vunpack.c.l.b16 %v4022
    %v5231 = vunpack.c.h.b16 %v4022
    %v5232 = vunpack.c.l.b16 %v4023
    %v5233 = vunpack.c.h.b16 %v4023
    %v5234 = vunpack.c.l.b16 %v4024
    %v5235 = vunpack.c.h.b16 %v4024
    %v5236 = vunpack.c.l.b16 %v4025
    %v5237 = vunpack.c.h.b16 %v4025
    %v5238 = vunpack.c.l.b16 %v4026
    %v5239 = vunpack.c.h.b16 %v4026
    %v5240 = vunpack.c.l.b16 %v4027
    %v5241 = vunpack.c.h.b16 %v4027
    %v5242 = vunpack.c.l.b16 %v4028
    %v5243 = vunpack.c.h.b16 %v4028
    %v5244 = vunpack.c.l.b16 %v4029
    %v5245 = vunpack.c.h.b16 %v4029
    %v5246 = vunpack.c.l.b16 %v4030
    %v5247 = vunpack.c.h.b16 %v4030
    %v5248 = vunpack.c.l.b16 %v4031
    %v5249 = vunpack.c.h.b16 %v4031
    %v5250 = vunpack.c.l.b16 %v4032
    %v5251 = vunpack.c.h.b16 %v4032
    %v5252 = vunpack.c.l.b16 %v4033
    %v5253 = vunpack.c.h.b16 %v4033
    %v5254 = vunpack.c.l.b16 %v4034
    %v5255 = vunpack.c.h.b16 %v4034
    %v5256 = vunpack.c.l.b16 %v4035
    %v5257 = vunpack.c.h.b16 %v4035
    %v5258 = vunpack.c.l.b16 %v4036
    %v5259 = vunpack.c.h.b16 %v4036
    %v5260 = vunpack.c.l.b16 %v4037
    %v5261 = vunpack.c.h.b16 %v4037
    %v5262 = vunpack.c.l.b16 %v4038
    %v5263 = vunpack.c.h.b16 %v4038
    %v5264 = vunpack.c.l.b16 %v4039
    %v5265 = vunpack.c.h.b16 %v4039
    %v5266 = vunpack.c.l.b16 %v4040
    %v5267 = vunpack.c.h.b16 %v4040
    %v5268 = vunpack.c.l.b16 %v4041
    %v5269 = vunpack.c.h.b16 %v4041
    %v5270 = vunpack.c.l.b16 %v4042
    %v5271 = vunpack.c.h.b16 %v4042
    %v5272 = vunpack.c.l.b16 %v4043
    %v5273 = vunpack.c.h.b16 %v4043
    %v5274 = vunpack.c.l.b16 %v4044
    %v5275 = vunpack.c.h.b16 %v4044
    %v5276 = vunpack.c.l.b16 %v4045
    %v5277 = vunpack.c.h.b16 %v4045
    %v5278 = vunpack.c.l.b16 %v4046
    %v5279 = vunpack.c.h.b16 %v4046
    %v5280 = vunpack.c.l.b16 %v4047
    %v5281 = vunpack.c.h.b16 %v4047
    %v5282 = vunpack.c.l.b16 %v4048
    %v5283 = vunpack.c.h.b16 %v4048
    %v5284 = vunpack.c.l.b16 %v4049
    %v5285 = vunpack.c.h.b16 %v4049
    %v5286 = vunpack.c.l.b16 %v4050
    %v5287 = vunpack.c.h.b16 %v4050
    %v5288 = vunpack.c.l.b16 %v4051
    %v5289 = vunpack.c.h.b16 %v4051
    %v5290 = vunpack.c.l.b16 %v4052
    %v5291 = vunpack.c.h.b16 %v4052
    %v5292 = vunpack.c.l.b16 %v4053
    %v5293 = vunpack.c.h.b16 %v4053
    %v5294 = vunpack.c.l.b16 %v4054
    %v5295 = vunpack.c.h.b16 %v4054
    %v5296 = vunpack.c.l.b16 %v4055
    %v5297 = vunpack.c.h.b16 %v4055
    %v5298 = vunpack.c.l.b16 %v4056
    %v5299 = vunpack.c.h.b16 %v4056
    %v5300 = vunpack.c.l.b16 %v4057
    %v5301 = vunpack.c.h.b16 %v4057
    %v5302 = vunpack.c.l.b16 %v4058
    %v5303 = vunpack.c.h.b16 %v4058
    %v5304 = vunpack.c.l.b16 %v4059
    %v5305 = vunpack.c.h.b16 %v4059
    %v5306 = vunpack.c.l.b16 %v4060
    %v5307 = vunpack.c.h.b16 %v4060
    %v5308 = vunpack.c.l.b16 %v4061
    %v5309 = vunpack.c.h.b16 %v4061
    %v5310 = vunpack.c.l.b16 %v4062
    %v5311 = vunpack.c.h.b16 %v4062
    %v5312 = vunpack.c.l.b16 %v4063
    %v5313 = vunpack.c.h.b16 %v4063
    %v5314 = vunpack.c.l.b16 %v4064
    %v5315 = vunpack.c.h.b16 %v4064
    %v5316 = vunpack.c.l.b16 %v4065
    %v5317 = vunpack.c.h.b16 %v4065
    %v5318 = vunpack.c.l.b16 %v4066
    %v5319 = vunpack.c.h.b16 %v4066
    %v5320 = vunpack.c.l.b16 %v4067
    %v5321 = vunpack.c.h.b16 %v4067
    %v5322 = vunpack.c.l.b16 %v4068
    %v5323 = vunpack.c.h.b16 %v4068
    %v5324 = vunpack.c.l.b16 %v4069
    %v5325 = vunpack.c.h.b16 %v4069
    %v5326 = vunpack.c.l.b16 %v4070
    %v5327 = vunpack.c.h.b16 %v4070
    %v5328 = vunpack.c.l.b16 %v4071
    %v5329 = vunpack.c.h.b16 %v4071
    %v5330 = vunpack.c.l.b16 %v4072
    %v5331 = vunpack.c.h.b16 %v4072
    %v5332 = vunpack.c.l.b16 %v4073
    %v5333 = vunpack.c.h.b16 %v4073
    %v5334 = vunpack.c.l.b16 %v4074
    %v5335 = vunpack.c.h.b16 %v4074
    %v5336 = vunpack.c.l.b16 %v4075
    %v5337 = vunpack.c.h.b16 %v4075
    %v5338 = vunpack.c.l.b16 %v4076
    %v5339 = vunpack.c.h.b16 %v4076
    %v5340 = vunpack.c.l.b16 %v4077
    %v5341 = vunpack.c.h.b16 %v4077
    %v5342 = vunpack.c.l.b16 %v4078
    %v5343 = vunpack.c.h.b16 %v4078
    %v5344 = vunpack.c.l.b16 %v4079
    %v5345 = vunpack.c.h.b16 %v4079
    %v5346 = vunpack.c.l.b16 %v4080
    %v5347 = vunpack.c.h.b16 %v4080
    %v5348 = vunpack.c.l.b16 %v4081
    %v5349 = vunpack.c.h.b16 %v4081
    %v5350 = vunpack.c.l.b16 %v4082
    %v5351 = vunpack.c.h.b16 %v4082
    %v5352 = vunpack.c.l.b16 %v4083
    %v5353 = vunpack.c.h.b16 %v4083
    %v5354 = vunpack.c.l.b16 %v4084
    %v5355 = vunpack.c.h.b16 %v4084
    %v5356 = vunpack.c.l.b16 %v4085
    %v5357 = vunpack.c.h.b16 %v4085
    %v5358 = vunpack.c.l.b16 %v4086
    %v5359 = vunpack.c.h.b16 %v4086
    %v5360 = vunpack.c.l.b16 %v4087
    %v5361 = vunpack.c.h.b16 %v4087
    %v5362 = vunpack.c.l.b16 %v4088
    %v5363 = vunpack.c.h.b16 %v4088
    %v5364 = vunpack.c.l.b16 %v4089
    %v5365 = vunpack.c.h.b16 %v4089
    %v5366 = vunpack.c.l.b16 %v4090
    %v5367 = vunpack.c.h.b16 %v4090
    %v5368 = vunpack.c.l.b16 %v4091
    %v5369 = vunpack.c.h.b16 %v4091
    %v5370 = vunpack.c.l.b16 %v4092
    %v5371 = vunpack.c.h.b16 %v4092
    %v5372 = vunpack.c.l.b16 %v4093
    %v5373 = vunpack.c.h.b16 %v4093
    %v5374 = vunpack.c.l.b16 %v4094
    %v5375 = vunpack.c.h.b16 %v4094
    %v5376 = vunpack.c.l.b16 %v4095
    %v5377 = vunpack.c.h.b16 %v4095
    %v5378 = vunpack.c.l.b16 %v4096
    %v5379 = vunpack.c.h.b16 %v4096
    %v5380 = vunpack.c.l.b16 %v4097
    %v5381 = vunpack.c.h.b16 %v4097
    %v5382 = vunpack.c.l.b16 %v4098
    %v5383 = vunpack.c.h.b16 %v4098
    %v5384 = vunpack.c.l.b16 %v4099
    %v5385 = vunpack.c.h.b16 %v4099
    %v5386 = vunpack.c.l.b16 %v4100
    %v5387 = vunpack.c.h.b16 %v4100
    %v5388 = vunpack.c.l.b16 %v4101
    %v5389 = vunpack.c.h.b16 %v4101
    %v5390 = vunpack.c.l.b16 %v4102
    %v5391 = vunpack.c.h.b16 %v4102
    %v5392 = vunpack.c.l.b16 %v4103
    %v5393 = vunpack.c.h.b16 %v4103
    %v5394 = vunpack.c.l.b16 %v4104
    %v5395 = vunpack.c.h.b16 %v4104
    %v5396 = vunpack.c.l.b16 %v4105
    %v5397 = vunpack.c.h.b16 %v4105
    %v5398 = vunpack.c.l.b16 %v4106
    %v5399 = vunpack.c.h.b16 %v4106
    %v5400 = vunpack.c.l.b16 %v4107
    %v5401 = vunpack.c.h.b16 %v4107
    %v5402 = vunpack.c.l.b16 %v4108
    %v5403 = vunpack.c.h.b16 %v4108
    %v5404 = vunpack.c.l.b16 %v4109
    %v5405 = vunpack.c.h.b16 %v4109
    %v5406 = vunpack.c.l.b16 %v4110
    %v5407 = vunpack.c.h.b16 %v4110
    %v5408 = vunpack.c.l.b16 %v4111
    %v5409 = vunpack.c.h.b16 %v4111
    %v5410 = vunpack.c.l.b16 %v4112
    %v5411 = vunpack.c.h.b16 %v4112
    %v5412 = vunpack.c.l.b16 %v4113
    %v5413 = vunpack.c.h.b16 %v4113
    %v5414 = vunpack.c.l.b16 %v4114
    %v5415 = vunpack.c.h.b16 %v4114
    %v5416 = vunpack.c.l.b16 %v4115
    %v5417 = vunpack.c.h.b16 %v4115
    %v5418 = vunpack.c.l.b16 %v4116
    %v5419 = vunpack.c.h.b16 %v4116
    %v5420 = vunpack.c.l.b16 %v4117
    %v5421 = vunpack.c.h.b16 %v4117
    %v5422 = vunpack.c.l.b16 %v4118
    %v5423 = vunpack.c.h.b16 %v4118
    %v5424 = vunpack.c.l.b16 %v4119
    %v5425 = vunpack.c.h.b16 %v4119
    %v5426 = vunpack.c.l.b16 %v4120
    %v5427 = vunpack.c.h.b16 %v4120
    %v5428 = vunpack.c.l.b16 %v4121
    %v5429 = vunpack.c.h.b16 %v4121
    %v5430 = vunpack.c.l.b16 %v4122
    %v5431 = vunpack.c.h.b16 %v4122
    %v5432 = vunpack.c.l.b16 %v4123
    %v5433 = vunpack.c.h.b16 %v4123
    %v5434 = vunpack.c.l.b16 %v4124
    %v5435 = vunpack.c.h.b16 %v4124
    %v5436 = vunpack.c.l.b16 %v4125
    %v5437 = vunpack.c.h.b16 %v4125
    %v5438 = vunpack.c.l.b16 %v4126
    %v5439 = vunpack.c.h.b16 %v4126
    %v5440 = vunpack.c.l.b16 %v4127
    %v5441 = vunpack.c.h.b16 %v4127
    %v5442 = vunpack.c.l.b16 %v4128
    %v5443 = vunpack.c.h.b16 %v4128
    %v5444 = vunpack.c.l.b16 %v4129
    %v5445 = vunpack.c.h.b16 %v4129
    %v5446 = vunpack.c.l.b16 %v4130
    %v5447 = vunpack.c.h.b16 %v4130
    %v5448 = vunpack.c.l.b16 %v4131
    %v5449 = vunpack.c.h.b16 %v4131
    %v5450 = vunpack.c.l.b16 %v4132
    %v5451 = vunpack.c.h.b16 %v4132
    %v5452 = vunpack.c.l.b16 %v4133
    %v5453 = vunpack.c.h.b16 %v4133
    %v5454 = vunpack.c.l.b16 %v4134
    %v5455 = vunpack.c.h.b16 %v4134
    %v5456 = vunpack.c.l.b16 %v4135
    %v5457 = vunpack.c.h.b16 %v4135
    %v5458 = vunpack.c.l.b16 %v4136
    %v5459 = vunpack.c.h.b16 %v4136
    %v5460 = vunpack.c.l.b16 %v4137
    %v5461 = vunpack.c.h.b16 %v4137
    %v5462 = vunpack.c.l.b16 %v4138
    %v5463 = vunpack.c.h.b16 %v4138
    %v5464 = vunpack.c.l.b16 %v4139
    %v5465 = vunpack.c.h.b16 %v4139
    %v5466 = vunpack.c.l.b16 %v4140
    %v5467 = vunpack.c.h.b16 %v4140
    %v5468 = vunpack.c.l.b16 %v4141
    %v5469 = vunpack.c.h.b16 %v4141
    %v5470 = vunpack.c.l.b16 %v4142
    %v5471 = vunpack.c.h.b16 %v4142
    %v5472 = vunpack.c.l.b16 %v4143
    %v5473 = vunpack.c.h.b16 %v4143
    %v5474 = vunpack.c.l.b16 %v4144
    %v5475 = vunpack.c.h.b16 %v4144
    %v5476 = vunpack.c.l.b16 %v4145
    %v5477 = vunpack.c.h.b16 %v4145
    %v5478 = vunpack.c.l.b16 %v4146
    %v5479 = vunpack.c.h.b16 %v4146
    %v5480 = vunpack.c.l.b16 %v4147
    %v5481 = vunpack.c.h.b16 %v4147
    %v5482 = vunpack.c.l.b16 %v4148
    %v5483 = vunpack.c.h.b16 %v4148
    %v5484 = vunpack.c.l.b16 %v4149
    %v5485 = vunpack.c.h.b16 %v4149
    %v5486 = vunpack.c.l.b16 %v4150
    %v5487 = vunpack.c.h.b16 %v4150
    %v5488 = vunpack.c.l.b16 %v4151
    %v5489 = vunpack.c.h.b16 %v4151
    %v5490 = vunpack.c.l.b16 %v4152
    %v5491 = vunpack.c.h.b16 %v4152
    %v5492 = vunpack.c.l.b16 %v4153
    %v5493 = vunpack.c.h.b16 %v4153
    %v5494 = vunpack.c.l.b16 %v4154
    %v5495 = vunpack.c.h.b16 %v4154
    %v5496 = vunpack.c.l.b16 %v4155
    %v5497 = vunpack.c.h.b16 %v4155
    %v5498 = vunpack.c.l.b16 %v4156
    %v5499 = vunpack.c.h.b16 %v4156
    %v5500 = vunpack.c.l.b16 %v4157
    %v5501 = vunpack.c.h.b16 %v4157
    %v5502 = vunpack.c.l.b16 %v4158
    %v5503 = vunpack.c.h.b16 %v4158
    %v5504 = vunpack.c.l.b16 %v4159
    %v5505 = vunpack.c.h.b16 %v4159
    %v5506 = vunpack.c.l.b16 %v4160
    %v5507 = vunpack.c.h.b16 %v4160
    %v5508 = vunpack.c.l.b16 %v4161
    %v5509 = vunpack.c.h.b16 %v4161
    %v5510 = vunpack.c.l.b16 %v4162
    %v5511 = vunpack.c.h.b16 %v4162
    %v5512 = vunpack.c.l.b16 %v4163
    %v5513 = vunpack.c.h.b16 %v4163
    %v5514 = vunpack.c.l.b16 %v4164
    %v5515 = vunpack.c.h.b16 %v4164
    %v5516 = vunpack.c.l.b16 %v4165
    %v5517 = vunpack.c.h.b16 %v4165
    %v5518 = vunpack.c.l.b16 %v4166
    %v5519 = vunpack.c.h.b16 %v4166
    %v5520 = vunpack.c.l.b16 %v4167
    %v5521 = vunpack.c.h.b16 %v4167
    %v5522 = vunpack.c.l.b16 %v4168
    %v5523 = vunpack.c.h.b16 %v4168
    %v5524 = vunpack.c.l.b16 %v4169
    %v5525 = vunpack.c.h.b16 %v4169
    %v5526 = vunpack.c.l.b16 %v4170
    %v5527 = vunpack.c.h.b16 %v4170
    %v5528 = vunpack.c.l.b16 %v4171
    %v5529 = vunpack.c.h.b16 %v4171
    %v5530 = vunpack.c.l.b16 %v4172
    %v5531 = vunpack.c.h.b16 %v4172
    %v5532 = vunpack.c.l.b16 %v4173
    %v5533 = vunpack.c.h.b16 %v4173
    %v5534 = vunpack.c.l.b16 %v4174
    %v5535 = vunpack.c.h.b16 %v4174
    %v5536 = vunpack.c.l.b16 %v4175
    %v5537 = vunpack.c.h.b16 %v4175
    %v5538 = vunpack.c.l.b16 %v4176
    %v5539 = vunpack.c.h.b16 %v4176
    %v5540 = vunpack.c.l.b16 %v4177
    %v5541 = vunpack.c.h.b16 %v4177
    %v5542 = vunpack.c.l.b16 %v4178
    %v5543 = vunpack.c.h.b16 %v4178
    %v5544 = vunpack.c.l.b16 %v4179
    %v5545 = vunpack.c.h.b16 %v4179
    %v5546 = vunpack.c.l.b16 %v4180
    %v5547 = vunpack.c.h.b16 %v4180
    %v5548 = vunpack.c.l.b16 %v4181
    %v5549 = vunpack.c.h.b16 %v4181
    %v5550 = vunpack.c.l.b16 %v4182
    %v5551 = vunpack.c.h.b16 %v4182
    %v5552 = vunpack.c.l.b16 %v4183
    %v5553 = vunpack.c.h.b16 %v4183
    %v5554 = vunpack.c.l.b16 %v4184
    %v5555 = vunpack.c.h.b16 %v4184
    %v5556 = vunpack.c.l.b16 %v4185
    %v5557 = vunpack.c.h.b16 %v4185
    %v5558 = vunpack.c.l.b16 %v4186
    %v5559 = vunpack.c.h.b16 %v4186
    %v5560 = vunpack.c.l.b16 %v4187
    %v5561 = vunpack.c.h.b16 %v4187
    %v5562 = vunpack.c.l.b16 %v4188
    %v5563 = vunpack.c.h.b16 %v4188
    %v5564 = vunpack.c.l.b16 %v4189
    %v5565 = vunpack.c.h.b16 %v4189
    %v5566 = vunpack.c.l.b16 %v4190
    %v5567 = vunpack.c.h.b16 %v4190
    %v5568 = vunpack.c.l.b16 %v4191
    %v5569 = vunpack.c.h.b16 %v4191
    %v5570 = vunpack.c.l.b16 %v4192
    %v5571 = vunpack.c.h.b16 %v4192
    %v5572 = vunpack.c.l.b16 %v4193
    %v5573 = vunpack.c.h.b16 %v4193
    %v5574 = vunpack.c.l.b16 %v4194
    %v5575 = vunpack.c.h.b16 %v4194
    %v5576 = vunpack.c.l.b16 %v4195
    %v5577 = vunpack.c.h.b16 %v4195
    %v5578 = vunpack.c.l.b16 %v4196
    %v5579 = vunpack.c.h.b16 %v4196
    %v5580 = vunpack.c.l.b16 %v4197
    %v5581 = vunpack.c.h.b16 %v4197
    %v5582 = vunpack.c.l.b16 %v4198
    %v5583 = vunpack.c.h.b16 %v4198
    %v5584 = vunpack.c.l.b16 %v4199
    %v5585 = vunpack.c.h.b16 %v4199
    %v5586 = vunpack.c.l.b16 %v4200
    %v5587 = vunpack.c.h.b16 %v4200
    %v5588 = vunpack.c.l.b16 %v4201
    %v5589 = vunpack.c.h.b16 %v4201
    %v5590 = vunpack.c.l.b16 %v4202
    %v5591 = vunpack.c.h.b16 %v4202
    %v5592 = vunpack.c.l.b16 %v4203
    %v5593 = vunpack.c.h.b16 %v4203
    %v5594 = vunpack.c.l.b16 %v4204
    %v5595 = vunpack.c.h.b16 %v4204
    %v5596 = vunpack.c.l.b16 %v4205
    %v5597 = vunpack.c.h.b16 %v4205
    %v5598 = vunpack.c.l.b16 %v4206
    %v5599 = vunpack.c.h.b16 %v4206
    %v5600 = vunpack.c.l.b16 %v4207
    %v5601 = vunpack.c.h.b16 %v4207
    %v5602 = vunpack.c.l.b16 %v4208
    %v5603 = vunpack.c.h.b16 %v4208
    %v5604 = vunpack.c.l.b16 %v4209
    %v5605 = vunpack.c.h.b16 %v4209
    %v5606 = vunpack.c.l.b16 %v4210
    %v5607 = vunpack.c.h.b16 %v4210
    %v5608 = vunpack.c.l.b16 %v4211
    %v5609 = vunpack.c.h.b16 %v4211
    %v5610 = vunpack.c.l.b16 %v4212
    %v5611 = vunpack.c.h.b16 %v4212
    %v5612 = vunpack.c.l.b16 %v4213
    %v5613 = vunpack.c.h.b16 %v4213
    %v5614 = vunpack.c.l.b16 %v4214
    %v5615 = vunpack.c.h.b16 %v4214
    %v5616 = vunpack.c.l.b16 %v4215
    %v5617 = vunpack.c.h.b16 %v4215
    %v5618 = vunpack.c.l.b16 %v4216
    %v5619 = vunpack.c.h.b16 %v4216
    %v5620 = vunpack.c.l.b16 %v4217
    %v5621 = vunpack.c.h.b16 %v4217
    %v5622 = vunpack.c.l.b16 %v4218
    %v5623 = vunpack.c.h.b16 %v4218
    %v5624 = vunpack.c.l.b16 %v4219
    %v5625 = vunpack.c.h.b16 %v4219
    %v5626 = vunpack.c.l.b16 %v4220
    %v5627 = vunpack.c.h.b16 %v4220
    %v5628 = vunpack.c.l.b16 %v4221
    %v5629 = vunpack.c.h.b16 %v4221
    %v5630 = vunpack.c.l.b16 %v4222
    %v5631 = vunpack.c.h.b16 %v4222
    %v5632 = vunpack.c.l.b16 %v4223
    %v5633 = vunpack.c.h.b16 %v4223
    %v5634 = vunpack.c.l.b16 %v4224
    %v5635 = vunpack.c.h.b16 %v4224
    %v5636 = vunpack.c.l.b16 %v4225
    %v5637 = vunpack.c.h.b16 %v4225
    %v5638 = vunpack.c.l.b16 %v4226
    %v5639 = vunpack.c.h.b16 %v4226
    %v5640 = vunpack.c.l.b16 %v4227
    %v5641 = vunpack.c.h.b16 %v4227
    %v5642 = vunpack.c.l.b16 %v4228
    %v5643 = vunpack.c.h.b16 %v4228
    %v5644 = vunpack.c.l.b16 %v4229
    %v5645 = vunpack.c.h.b16 %v4229
    %v5646 = vunpack.c.l.b16 %v4230
    %v5647 = vunpack.c.h.b16 %v4230
    %v5648 = vunpack.c.l.b16 %v4231
    %v5649 = vunpack.c.h.b16 %v4231
    %v5650 = vunpack.c.l.b16 %v4232
    %v5651 = vunpack.c.h.b16 %v4232
    %v5652 = vunpack.c.l.b16 %v4233
    %v5653 = vunpack.c.h.b16 %v4233
    %v5654 = vunpack.c.l.b16 %v4234
    %v5655 = vunpack.c.h.b16 %v4234
    %v5656 = vunpack.c.l.b16 %v4235
    %v5657 = vunpack.c.h.b16 %v4235
    %v5658 = vunpack.c.l.b16 %v4236
    %v5659 = vunpack.c.h.b16 %v4236
    %v5660 = vunpack.c.l.b16 %v4237
    %v5661 = vunpack.c.h.b16 %v4237
    %v5662 = vunpack.c.l.b16 %v4238
    %v5663 = vunpack.c.h.b16 %v4238
    %v5664 = vunpack.c.l.b16 %v4239
    %v5665 = vunpack.c.h.b16 %v4239
    %v5666 = vunpack.c.l.b16 %v4240
    %v5667 = vunpack.c.h.b16 %v4240
    %v5668 = vunpack.c.l.b16 %v4241
    %v5669 = vunpack.c.h.b16 %v4241
    %v5670 = vunpack.c.l.b16 %v4242
    %v5671 = vunpack.c.h.b16 %v4242
    %v5672 = vunpack.c.l.b16 %v4243
    %v5673 = vunpack.c.h.b16 %v4243
    %v5674 = vunpack.c.l.b16 %v4244
    %v5675 = vunpack.c.h.b16 %v4244
    %v5676 = vunpack.c.l.b16 %v4245
    %v5677 = vunpack.c.h.b16 %v4245
    %v5678 = vunpack.c.l.b16 %v4246
    %v5679 = vunpack.c.h.b16 %v4246
    %v5680 = vunpack.c.l.b16 %v4247
    %v5681 = vunpack.c.h.b16 %v4247
    %v5682 = vunpack.c.l.b16 %v4248
    %v5683 = vunpack.c.h.b16 %v4248
    %v5684 = vunpack.c.l.b16 %v4249
    %v5685 = vunpack.c.h.b16 %v4249
    %v5686 = vunpack.c.l.b16 %v4250
    %v5687 = vunpack.c.h.b16 %v4250
    %v5688 = vunpack.c.l.b16 %v4251
    %v5689 = vunpack.c.h.b16 %v4251
    %v5690 = vunpack.c.l.b16 %v4252
    %v5691 = vunpack.c.h.b16 %v4252
    %v5692 = vunpack.c.l.b16 %v4253
    %v5693 = vunpack.c.h.b16 %v4253
    %v5694 = vunpack.c.l.b16 %v4254
    %v5695 = vunpack.c.h.b16 %v4254
    %v5696 = vunpack.c.l.b16 %v4255
    %v5697 = vunpack.c.h.b16 %v4255
    %v5698 = vunpack.c.l.b16 %v4256
    %v5699 = vunpack.c.h.b16 %v4256
    %v5700 = vunpack.c.l.b16 %v4257
    %v5701 = vunpack.c.h.b16 %v4257
    %v5702 = vunpack.c.l.b16 %v4258
    %v5703 = vunpack.c.h.b16 %v4258
    %v5704 = vunpack.c.l.b16 %v4259
    %v5705 = vunpack.c.h.b16 %v4259
    %v5706 = vunpack.c.l.b16 %v4260
    %v5707 = vunpack.c.h.b16 %v4260
    %v5708 = vunpack.c.l.b16 %v4261
    %v5709 = vunpack.c.h.b16 %v4261
    %v5710 = vunpack.c.l.b16 %v4262
    %v5711 = vunpack.c.h.b16 %v4262
    %v5712 = vunpack.c.l.b16 %v4263
    %v5713 = vunpack.c.h.b16 %v4263
    %v5714 = vunpack.c.l.b16 %v4264
    %v5715 = vunpack.c.h.b16 %v4264
    %v5716 = vunpack.c.l.b16 %v4265
    %v5717 = vunpack.c.h.b16 %v4265
    %v5718 = vunpack.c.l.b16 %v4266
    %v5719 = vunpack.c.h.b16 %v4266
    %v5720 = vunpack.c.l.b16 %v4267
    %v5721 = vunpack.c.h.b16 %v4267
    %v5722 = vunpack.c.l.b16 %v4268
    %v5723 = vunpack.c.h.b16 %v4268
    %v5724 = vunpack.c.l.b16 %v4269
    %v5725 = vunpack.c.h.b16 %v4269
    %v5726 = vunpack.c.l.b16 %v4270
    %v5727 = vunpack.c.h.b16 %v4270
    %v5728 = vunpack.c.l.b16 %v4271
    %v5729 = vunpack.c.h.b16 %v4271
    %v5730 = vunpack.c.l.b16 %v4272
    %v5731 = vunpack.c.h.b16 %v4272
    %v5732 = vunpack.c.l.b16 %v4273
    %v5733 = vunpack.c.h.b16 %v4273
    %v5734 = vunpack.c.l.b16 %v4274
    %v5735 = vunpack.c.h.b16 %v4274
    %v5736 = vunpack.c.l.b16 %v4275
    %v5737 = vunpack.c.h.b16 %v4275
    %v5738 = vunpack.c.l.b16 %v4276
    %v5739 = vunpack.c.h.b16 %v4276
    %v5740 = vunpack.c.l.b16 %v4277
    %v5741 = vunpack.c.h.b16 %v4277
    %v5742 = vunpack.c.l.b16 %v4278
    %v5743 = vunpack.c.h.b16 %v4278
    %v5744 = vunpack.c.l.b16 %v4279
    %v5745 = vunpack.c.h.b16 %v4279
    %v5746 = vunpack.c.l.b16 %v4280
    %v5747 = vunpack.c.h.b16 %v4280
    %v5748 = vunpack.c.l.b16 %v4281
    %v5749 = vunpack.c.h.b16 %v4281
    %v5750 = vunpack.c.l.b16 %v4282
    %v5751 = vunpack.c.h.b16 %v4282
    %v5752 = vunpack.c.l.b16 %v4283
    %v5753 = vunpack.c.h.b16 %v4283
    %v5754 = vunpack.c.l.b16 %v4284
    %v5755 = vunpack.c.h.b16 %v4284
    %v5756 = vunpack.c.l.b16 %v4285
    %v5757 = vunpack.c.h.b16 %v4285
    %v5758 = vunpack.c.l.b16 %v4286
    %v5759 = vunpack.c.h.b16 %v4286
    %v5760 = vunpack.c.l.b16 %v4287
    %v5761 = vunpack.c.h.b16 %v4287
    %v5762 = vunpack.c.l.b16 %v4288
    %v5763 = vunpack.c.h.b16 %v4288
    %v5764 = vunpack.c.l.b16 %v4289
    %v5765 = vunpack.c.h.b16 %v4289
    %v5766 = vunpack.c.l.b16 %v4290
    %v5767 = vunpack.c.h.b16 %v4290
    %v5768 = vunpack.c.l.b16 %v4291
    %v5769 = vunpack.c.h.b16 %v4291
    %v5770 = vunpack.c.l.b16 %v4292
    %v5771 = vunpack.c.h.b16 %v4292
    %v5772 = vunpack.c.l.b16 %v4293
    %v5773 = vunpack.c.h.b16 %v4293
    %v5774 = vunpack.c.l.b16 %v4294
    %v5775 = vunpack.c.h.b16 %v4294
    %v5776 = vunpack.c.l.b16 %v4295
    %v5777 = vunpack.c.h.b16 %v4295
    %v5778 = vunpack.c.l.b16 %v4296
    %v5779 = vunpack.c.h.b16 %v4296
    %v5780 = vunpack.c.l.b16 %v4297
    %v5781 = vunpack.c.h.b16 %v4297
    %v5782 = vunpack.c.l.b16 %v4298
    %v5783 = vunpack.c.h.b16 %v4298
    %v5784 = vunpack.c.l.b16 %v4299
    %v5785 = vunpack.c.h.b16 %v4299
    %v5786 = vunpack.c.l.b16 %v4300
    %v5787 = vunpack.c.h.b16 %v4300
    %v5788 = vunpack.c.l.b16 %v4301
    %v5789 = vunpack.c.h.b16 %v4301
    %v5790 = vunpack.c.l.b16 %v4302
    %v5791 = vunpack.c.h.b16 %v4302
    %v5792 = vunpack.c.l.b16 %v4303
    %v5793 = vunpack.c.h.b16 %v4303
    %v5794 = vunpack.c.l.b16 %v4304
    %v5795 = vunpack.c.h.b16 %v4304
    %v5796 = vunpack.c.l.b16 %v4305
    %v5797 = vunpack.c.h.b16 %v4305
    %v5798 = vunpack.c.l.b16 %v4306
    %v5799 = vunpack.c.h.b16 %v4306
    %v5800 = vunpack.c.l.b16 %v4307
    %v5801 = vunpack.c.h.b16 %v4307
    %v5802 = vunpack.c.l.b16 %v4308
    %v5803 = vunpack.c.h.b16 %v4308
    %v5804 = vunpack.c.l.b16 %v4309
    %v5805 = vunpack.c.h.b16 %v4309
    %v5806 = vunpack.c.l.b16 %v4310
    %v5807 = vunpack.c.h.b16 %v4310
    %v5808 = vunpack.c.l.b16 %v4311
    %v5809 = vunpack.c.h.b16 %v4311
    %v5810 = vunpack.c.l.b16 %v4312
    %v5811 = vunpack.c.h.b16 %v4312
    %v5812 = vunpack.c.l.b16 %v4313
    %v5813 = vunpack.c.h.b16 %v4313
    %v5814 = vunpack.c.l.b16 %v4314
    %v5815 = vunpack.c.h.b16 %v4314
    %v5816 = vunpack.c.l.b16 %v4315
    %v5817 = vunpack.c.h.b16 %v4315
    %v5818 = vunpack.c.l.b16 %v4316
    %v5819 = vunpack.c.h.b16 %v4316
    %v5820 = vunpack.c.l.b16 %v4317
    %v5821 = vunpack.c.h.b16 %v4317
    %v5822 = vunpack.c.l.b16 %v4318
    %v5823 = vunpack.c.h.b16 %v4318
    %v5824 = vunpack.c.l.b16 %v4319
    %v5825 = vunpack.c.h.b16 %v4319
    %v5826 = vunpack.c.l.b16 %v4320
    %v5827 = vunpack.c.h.b16 %v4320
    %v5828 = vunpack.c.l.b16 %v4321
    %v5829 = vunpack.c.h.b16 %v4321
    %v5830 = vunpack.c.l.b16 %v4322
    %v5831 = vunpack.c.h.b16 %v4322
    %v5832 = vunpack.c.l.b16 %v4323
    %v5833 = vunpack.c.h.b16 %v4323
    %v5834 = vunpack.c.l.b16 %v4324
    %v5835 = vunpack.c.h.b16 %v4324
    %v5836 = vunpack.c.l.b16 %v4325
    %v5837 = vunpack.c.h.b16 %v4325
    %v5838 = vunpack.c.l.b16 %v4326
    %v5839 = vunpack.c.h.b16 %v4326
    %v5840 = vunpack.c.l.b16 %v4327
    %v5841 = vunpack.c.h.b16 %v4327
    %v5842 = vunpack.c.l.b16 %v4328
    %v5843 = vunpack.c.h.b16 %v4328
    %v5844 = vunpack.c.l.b16 %v4329
    %v5845 = vunpack.c.h.b16 %v4329
    %v5846 = vunpack.c.l.b16 %v4330
    %v5847 = vunpack.c.h.b16 %v4330
    %v5848 = vunpack.c.l.b16 %v4331
    %v5849 = vunpack.c.h.b16 %v4331
    %v5850 = vunpack.c.l.b16 %v4332
    %v5851 = vunpack.c.h.b16 %v4332
    %v5852 = vunpack.c.l.b16 %v4333
    %v5853 = vunpack.c.h.b16 %v4333
    %v5854 = vunpack.c.l.b16 %v4334
    %v5855 = vunpack.c.h.b16 %v4334
    %v5856 = vunpack.c.l.b16 %v4335
    %v5857 = vunpack.c.h.b16 %v4335
    %v5858 = vunpack.c.l.b16 %v4336
    %v5859 = vunpack.c.h.b16 %v4336
    %v5860 = vunpack.c.l.b16 %v4337
    %v5861 = vunpack.c.h.b16 %v4337
    %v5862 = vunpack.c.l.b16 %v4338
    %v5863 = vunpack.c.h.b16 %v4338
    %v5864 = vunpack.c.l.b16 %v4339
    %v5865 = vunpack.c.h.b16 %v4339
    %v5866 = vunpack.c.l.b16 %v4340
    %v5867 = vunpack.c.h.b16 %v4340
    %v5868 = vunpack.c.l.b16 %v4341
    %v5869 = vunpack.c.h.b16 %v4341
    %v5870 = vunpack.c.l.b16 %v4342
    %v5871 = vunpack.c.h.b16 %v4342
    %v5872 = vunpack.c.l.b16 %v4343
    %v5873 = vunpack.c.h.b16 %v4343
    %v5874 = vunpack.c.l.b16 %v4344
    %v5875 = vunpack.c.h.b16 %v4344
    %v5876 = vunpack.c.l.b16 %v4345
    %v5877 = vunpack.c.h.b16 %v4345
    %v5878 = vunpack.c.l.b16 %v4346
    %v5879 = vunpack.c.h.b16 %v4346
    %v5880 = vunpack.c.l.b16 %v4347
    %v5881 = vunpack.c.h.b16 %v4347
    %v5882 = vunpack.c.l.b16 %v4348
    %v5883 = vunpack.c.h.b16 %v4348
    %v5884 = vunpack.c.l.b16 %v4349
    %v5885 = vunpack.c.h.b16 %v4349
    %v5886 = vpack.c.b16 %v4870, %v4862
    %v5887 = vpack.c.b16 %v4871, %v4863
    %v5888 = vpack.c.b16 %v4872, %v4864
    %v5889 = vpack.c.b16 %v4873, %v4865
    %v5890 = vpack.c.b16 %v4874, %v4866
    %v5891 = vpack.c.b16 %v4875, %v4867
    %v5892 = vpack.c.b16 %v4876, %v4868
    %v5893 = vpack.c.b16 %v4877, %v4869
    %v5894 = vpack.c.b16 %v4886, %v4878
    %v5895 = vpack.c.b16 %v4887, %v4879
    %v5896 = vpack.c.b16 %v4888, %v4880
    %v5897 = vpack.c.b16 %v4889, %v4881
    %v5898 = vpack.c.b16 %v4890, %v4882
    %v5899 = vpack.c.b16 %v4891, %v4883
    %v5900 = vpack.c.b16 %v4892, %v4884
    %v5901 = vpack.c.b16 %v4893, %v4885
    %v5902 = vpack.c.b16 %v4902, %v4894
    %v5903 = vpack.c.b16 %v4903, %v4895
    %v5904 = vpack.c.b16 %v4904, %v4896
    %v5905 = vpack.c.b16 %v4905, %v4897
    %v5906 = vpack.c.b16 %v4906, %v4898
    %v5907 = vpack.c.b16 %v4907, %v4899
    %v5908 = vpack.c.b16 %v4908, %v4900
    %v5909 = vpack.c.b16 %v4909, %v4901
    %v5910 = vpack.c.b16 %v4918, %v4910
    %v5911 = vpack.c.b16 %v4919, %v4911
    %v5912 = vpack.c.b16 %v4920, %v4912
    %v5913 = vpack.c.b16 %v4921, %v4913
    %v5914 = vpack.c.b16 %v4922, %v4914
    %v5915 = vpack.c.b16 %v4923, %v4915
    %v5916 = vpack.c.b16 %v4924, %v4916
    %v5917 = vpack.c.b16 %v4925, %v4917
    %v5918 = vpack.c.b16 %v4934, %v4926
    %v5919 = vpack.c.b16 %v4935, %v4927
    %v5920 = vpack.c.b16 %v4936, %v4928
    %v5921 = vpack.c.b16 %v4937, %v4929
    %v5922 = vpack.c.b16 %v4938, %v4930
    %v5923 = vpack.c.b16 %v4939, %v4931
    %v5924 = vpack.c.b16 %v4940, %v4932
    %v5925 = vpack.c.b16 %v4941, %v4933
    %v5926 = vpack.c.b16 %v4950, %v4942
    %v5927 = vpack.c.b16 %v4951, %v4943
    %v5928 = vpack.c.b16 %v4952, %v4944
    %v5929 = vpack.c.b16 %v4953, %v4945
    %v5930 = vpack.c.b16 %v4954, %v4946
    %v5931 = vpack.c.b16 %v4955, %v4947
    %v5932 = vpack.c.b16 %v4956, %v4948
    %v5933 = vpack.c.b16 %v4957, %v4949
    %v5934 = vpack.c.b16 %v4966, %v4958
    %v5935 = vpack.c.b16 %v4967, %v4959
    %v5936 = vpack.c.b16 %v4968, %v4960
    %v5937 = vpack.c.b16 %v4969, %v4961
    %v5938 = vpack.c.b16 %v4970, %v4962
    %v5939 = vpack.c.b16 %v4971, %v4963
    %v5940 = vpack.c.b16 %v4972, %v4964
    %v5941 = vpack.c.b16 %v4973, %v4965
    %v5942 = vpack.c.b16 %v4982, %v4974
    %v5943 = vpack.c.b16 %v4983, %v4975
    %v5944 = vpack.c.b16 %v4984, %v4976
    %v5945 = vpack.c.b16 %v4985, %v4977
    %v5946 = vpack.c.b16 %v4986, %v4978
    %v5947 = vpack.c.b16 %v4987, %v4979
    %v5948 = vpack.c.b16 %v4988, %v4980
    %v5949 = vpack.c.b16 %v4989, %v4981
    %v5950 = vpack.c.b16 %v4998, %v4990
    %v5951 = vpack.c.b16 %v4999, %v4991
    %v5952 = vpack.c.b16 %v5000, %v4992
    %v5953 = vpack.c.b16 %v5001, %v4993
    %v5954 = vpack.c.b16 %v5002, %v4994
    %v5955 = vpack.c.b16 %v5003, %v4995
    %v5956 = vpack.c.b16 %v5004, %v4996
    %v5957 = vpack.c.b16 %v5005, %v4997
    %v5958 = vpack.c.b16 %v5014, %v5006
    %v5959 = vpack.c.b16 %v5015, %v5007
    %v5960 = vpack.c.b16 %v5016, %v5008
    %v5961 = vpack.c.b16 %v5017, %v5009
    %v5962 = vpack.c.b16 %v5018, %v5010
    %v5963 = vpack.c.b16 %v5019, %v5011
    %v5964 = vpack.c.b16 %v5020, %v5012
    %v5965 = vpack.c.b16 %v5021, %v5013
    %v5966 = vpack.c.b16 %v5030, %v5022
    %v5967 = vpack.c.b16 %v5031, %v5023
    %v5968 = vpack.c.b16 %v5032, %v5024
    %v5969 = vpack.c.b16 %v5033, %v5025
    %v5970 = vpack.c.b16 %v5034, %v5026
    %v5971 = vpack.c.b16 %v5035, %v5027
    %v5972 = vpack.c.b16 %v5036, %v5028
    %v5973 = vpack.c.b16 %v5037, %v5029
    %v5974 = vpack.c.b16 %v5046, %v5038
    %v5975 = vpack.c.b16 %v5047, %v5039
    %v5976 = vpack.c.b16 %v5048, %v5040
    %v5977 = vpack.c.b16 %v5049, %v5041
    %v5978 = vpack.c.b16 %v5050, %v5042
    %v5979 = vpack.c.b16 %v5051, %v5043
    %v5980 = vpack.c.b16 %v5052, %v5044
    %v5981 = vpack.c.b16 %v5053, %v5045
    %v5982 = vpack.c.b16 %v5062, %v5054
    %v5983 = vpack.c.b16 %v5063, %v5055
    %v5984 = vpack.c.b16 %v5064, %v5056
    %v5985 = vpack.c.b16 %v5065, %v5057
    %v5986 = vpack.c.b16 %v5066, %v5058
    %v5987 = vpack.c.b16 %v5067, %v5059
    %v5988 = vpack.c.b16 %v5068, %v5060
    %v5989 = vpack.c.b16 %v5069, %v5061
    %v5990 = vpack.c.b16 %v5078, %v5070
    %v5991 = vpack.c.b16 %v5079, %v5071
    %v5992 = vpack.c.b16 %v5080, %v5072
    %v5993 = vpack.c.b16 %v5081, %v5073
    %v5994 = vpack.c.b16 %v5082, %v5074
    %v5995 = vpack.c.b16 %v5083, %v5075
    %v5996 = vpack.c.b16 %v5084, %v5076
    %v5997 = vpack.c.b16 %v5085, %v5077
    %v5998 = vpack.c.b16 %v5094, %v5086
    %v5999 = vpack.c.b16 %v5095, %v5087
    %v6000 = vpack.c.b16 %v5096, %v5088
    %v6001 = vpack.c.b16 %v5097, %v5089
    %v6002 = vpack.c.b16 %v5098, %v5090
    %v6003 = vpack.c.b16 %v5099, %v5091
    %v6004 = vpack.c.b16 %v5100, %v5092
    %v6005 = vpack.c.b16 %v5101, %v5093
    %v6006 = vpack.c.b16 %v5110, %v5102
    %v6007 = vpack.c.b16 %v5111, %v5103
    %v6008 = vpack.c.b16 %v5112, %v5104
    %v6009 = vpack.c.b16 %v5113, %v5105
    %v6010 = vpack.c.b16 %v5114, %v5106
    %v6011 = vpack.c.b16 %v5115, %v5107
    %v6012 = vpack.c.b16 %v5116, %v5108
    %v6013 = vpack.c.b16 %v5117, %v5109
    %v6014 = vpack.c.b16 %v5126, %v5118
    %v6015 = vpack.c.b16 %v5127, %v5119
    %v6016 = vpack.c.b16 %v5128, %v5120
    %v6017 = vpack.c.b16 %v5129, %v5121
    %v6018 = vpack.c.b16 %v5130, %v5122
    %v6019 = vpack.c.b16 %v5131, %v5123
    %v6020 = vpack.c.b16 %v5132, %v5124
    %v6021 = vpack.c.b16 %v5133, %v5125
    %v6022 = vpack.c.b16 %v5142, %v5134
    %v6023 = vpack.c.b16 %v5143, %v5135
    %v6024 = vpack.c.b16 %v5144, %v5136
    %v6025 = vpack.c.b16 %v5145, %v5137
    %v6026 = vpack.c.b16 %v5146, %v5138
    %v6027 = vpack.c.b16 %v5147, %v5139
    %v6028 = vpack.c.b16 %v5148, %v5140
    %v6029 = vpack.c.b16 %v5149, %v5141
    %v6030 = vpack.c.b16 %v5158, %v5150
    %v6031 = vpack.c.b16 %v5159, %v5151
    %v6032 = vpack.c.b16 %v5160, %v5152
    %v6033 = vpack.c.b16 %v5161, %v5153
    %v6034 = vpack.c.b16 %v5162, %v5154
    %v6035 = vpack.c.b16 %v5163, %v5155
    %v6036 = vpack.c.b16 %v5164, %v5156
    %v6037 = vpack.c.b16 %v5165, %v5157
    %v6038 = vpack.c.b16 %v5174, %v5166
    %v6039 = vpack.c.b16 %v5175, %v5167
    %v6040 = vpack.c.b16 %v5176, %v5168
    %v6041 = vpack.c.b16 %v5177, %v5169
    %v6042 = vpack.c.b16 %v5178, %v5170
    %v6043 = vpack.c.b16 %v5179, %v5171
    %v6044 = vpack.c.b16 %v5180, %v5172
    %v6045 = vpack.c.b16 %v5181, %v5173
    %v6046 = vpack.c.b16 %v5190, %v5182
    %v6047 = vpack.c.b16 %v5191, %v5183
    %v6048 = vpack.c.b16 %v5192, %v5184
    %v6049 = vpack.c.b16 %v5193, %v5185
    %v6050 = vpack.c.b16 %v5194, %v5186
    %v6051 = vpack.c.b16 %v5195, %v5187
    %v6052 = vpack.c.b16 %v5196, %v5188
    %v6053 = vpack.c.b16 %v5197, %v5189
    %v6054 = vpack.c.b16 %v5206, %v5198
    %v6055 = vpack.c.b16 %v5207, %v5199
    %v6056 = vpack.c.b16 %v5208, %v5200
    %v6057 = vpack.c.b16 %v5209, %v5201
    %v6058 = vpack.c.b16 %v5210, %v5202
    %v6059 = vpack.c.b16 %v5211, %v5203
    %v6060 = vpack.c.b16 %v5212, %v5204
    %v6061 = vpack.c.b16 %v5213, %v5205
    %v6062 = vpack.c.b16 %v5222, %v5214
    %v6063 = vpack.c.b16 %v5223, %v5215
    %v6064 = vpack.c.b16 %v5224, %v5216
    %v6065 = vpack.c.b16 %v5225, %v5217
    %v6066 = vpack.c.b16 %v5226, %v5218
    %v6067 = vpack.c.b16 %v5227, %v5219
    %v6068 = vpack.c.b16 %v5228, %v5220
    %v6069 = vpack.c.b16 %v5229, %v5221
    %v6070 = vpack.c.b16 %v5238, %v5230
    %v6071 = vpack.c.b16 %v5239, %v5231
    %v6072 = vpack.c.b16 %v5240, %v5232
    %v6073 = vpack.c.b16 %v5241, %v5233
    %v6074 = vpack.c.b16 %v5242, %v5234
    %v6075 = vpack.c.b16 %v5243, %v5235
    %v6076 = vpack.c.b16 %v5244, %v5236
    %v6077 = vpack.c.b16 %v5245, %v5237
    %v6078 = vpack.c.b16 %v5254, %v5246
    %v6079 = vpack.c.b16 %v5255, %v5247
    %v6080 = vpack.c.b16 %v5256, %v5248
    %v6081 = vpack.c.b16 %v5257, %v5249
    %v6082 = vpack.c.b16 %v5258, %v5250
    %v6083 = vpack.c.b16 %v5259, %v5251
    %v6084 = vpack.c.b16 %v5260, %v5252
    %v6085 = vpack.c.b16 %v5261, %v5253
    %v6086 = vpack.c.b16 %v5270, %v5262
    %v6087 = vpack.c.b16 %v5271, %v5263
    %v6088 = vpack.c.b16 %v5272, %v5264
    %v6089 = vpack.c.b16 %v5273, %v5265
    %v6090 = vpack.c.b16 %v5274, %v5266
    %v6091 = vpack.c.b16 %v5275, %v5267
    %v6092 = vpack.c.b16 %v5276, %v5268
    %v6093 = vpack.c.b16 %v5277, %v5269
    %v6094 = vpack.c.b16 %v5286, %v5278
    %v6095 = vpack.c.b16 %v5287, %v5279
    %v6096 = vpack.c.b16 %v5288, %v5280
    %v6097 = vpack.c.b16 %v5289, %v5281
    %v6098 = vpack.c.b16 %v5290, %v5282
    %v6099 = vpack.c.b16 %v5291, %v5283
    %v6100 = vpack.c.b16 %v5292, %v5284
    %v6101 = vpack.c.b16 %v5293, %v5285
    %v6102 = vpack.c.b16 %v5302, %v5294
    %v6103 = vpack.c.b16 %v5303, %v5295
    %v6104 = vpack.c.b16 %v5304, %v5296
    %v6105 = vpack.c.b16 %v5305, %v5297
    %v6106 = vpack.c.b16 %v5306, %v5298
    %v6107 = vpack.c.b16 %v5307, %v5299
    %v6108 = vpack.c.b16 %v5308, %v5300
    %v6109 = vpack.c.b16 %v5309, %v5301
    %v6110 = vpack.c.b16 %v5318, %v5310
    %v6111 = vpack.c.b16 %v5319, %v5311
    %v6112 = vpack.c.b16 %v5320, %v5312
    %v6113 = vpack.c.b16 %v5321, %v5313
    %v6114 = vpack.c.b16 %v5322, %v5314
    %v6115 = vpack.c.b16 %v5323, %v5315
    %v6116 = vpack.c.b16 %v5324, %v5316
    %v6117 = vpack.c.b16 %v5325, %v5317
    %v6118 = vpack.c.b16 %v5334, %v5326
    %v6119 = vpack.c.b16 %v5335, %v5327
    %v6120 = vpack.c.b16 %v5336, %v5328
    %v6121 = vpack.c.b16 %v5337, %v5329
    %v6122 = vpack.c.b16 %v5338, %v5330
    %v6123 = vpack.c.b16 %v5339, %v5331
    %v6124 = vpack.c.b16 %v5340, %v5332
    %v6125 = vpack.c.b16 %v5341, %v5333
    %v6126 = vpack.c.b16 %v5350, %v5342
    %v6127 = vpack.c.b16 %v5351, %v5343
    %v6128 = vpack.c.b16 %v5352, %v5344
    %v6129 = vpack.c.b16 %v5353, %v5345
    %v6130 = vpack.c.b16 %v5354, %v5346
    %v6131 = vpack.c.b16 %v5355, %v5347
    %v6132 = vpack.c.b16 %v5356, %v5348
    %v6133 = vpack.c.b16 %v5357, %v5349
    %v6134 = vpack.c.b16 %v5366, %v5358
    %v6135 = vpack.c.b16 %v5367, %v5359
    %v6136 = vpack.c.b16 %v5368, %v5360
    %v6137 = vpack.c.b16 %v5369, %v5361
    %v6138 = vpack.c.b16 %v5370, %v5362
    %v6139 = vpack.c.b16 %v5371, %v5363
    %v6140 = vpack.c.b16 %v5372, %v5364
    %v6141 = vpack.c.b16 %v5373, %v5365
    %v6142 = vpack.c.b16 %v5382, %v5374
    %v6143 = vpack.c.b16 %v5383, %v5375
    %v6144 = vpack.c.b16 %v5384, %v5376
    %v6145 = vpack.c.b16 %v5385, %v5377
    %v6146 = vpack.c.b16 %v5386, %v5378
    %v6147 = vpack.c.b16 %v5387, %v5379
    %v6148 = vpack.c.b16 %v5388, %v5380
    %v6149 = vpack.c.b16 %v5389, %v5381
    %v6150 = vpack.c.b16 %v5398, %v5390
    %v6151 = vpack.c.b16 %v5399, %v5391
    %v6152 = vpack.c.b16 %v5400, %v5392
    %v6153 = vpack.c.b16 %v5401, %v5393
    %v6154 = vpack.c.b16 %v5402, %v5394
    %v6155 = vpack.c.b16 %v5403, %v5395
    %v6156 = vpack.c.b16 %v5404, %v5396
    %v6157 = vpack.c.b16 %v5405, %v5397
    %v6158 = vpack.c.b16 %v5414, %v5406
    %v6159 = vpack.c.b16 %v5415, %v5407
    %v6160 = vpack.c.b16 %v5416, %v5408
    %v6161 = vpack.c.b16 %v5417, %v5409
    %v6162 = vpack.c.b16 %v5418, %v5410
    %v6163 = vpack.c.b16 %v5419, %v5411
    %v6164 = vpack.c.b16 %v5420, %v5412
    %v6165 = vpack.c.b16 %v5421, %v5413
    %v6166 = vpack.c.b16 %v5430, %v5422
    %v6167 = vpack.c.b16 %v5431, %v5423
    %v6168 = vpack.c.b16 %v5432, %v5424
    %v6169 = vpack.c.b16 %v5433, %v5425
    %v6170 = vpack.c.b16 %v5434, %v5426
    %v6171 = vpack.c.b16 %v5435, %v5427
    %v6172 = vpack.c.b16 %v5436, %v5428
    %v6173 = vpack.c.b16 %v5437, %v5429
    %v6174 = vpack.c.b16 %v5446, %v5438
    %v6175 = vpack.c.b16 %v5447, %v5439
    %v6176 = vpack.c.b16 %v5448, %v5440
    %v6177 = vpack.c.b16 %v5449, %v5441
    %v6178 = vpack.c.b16 %v5450, %v5442
    %v6179 = vpack.c.b16 %v5451, %v5443
    %v6180 = vpack.c.b16 %v5452, %v5444
    %v6181 = vpack.c.b16 %v5453, %v5445
    %v6182 = vpack.c.b16 %v5462, %v5454
    %v6183 = vpack.c.b16 %v5463, %v5455
    %v6184 = vpack.c.b16 %v5464, %v5456
    %v6185 = vpack.c.b16 %v5465, %v5457
    %v6186 = vpack.c.b16 %v5466, %v5458
    %v6187 = vpack.c.b16 %v5467, %v5459
    %v6188 = vpack.c.b16 %v5468, %v5460
    %v6189 = vpack.c.b16 %v5469, %v5461
    %v6190 = vpack.c.b16 %v5478, %v5470
    %v6191 = vpack.c.b16 %v5479, %v5471
    %v6192 = vpack.c.b16 %v5480, %v5472
    %v6193 = vpack.c.b16 %v5481, %v5473
    %v6194 = vpack.c.b16 %v5482, %v5474
    %v6195 = vpack.c.b16 %v5483, %v5475
    %v6196 = vpack.c.b16 %v5484, %v5476
    %v6197 = vpack.c.b16 %v5485, %v5477
    %v6198 = vpack.c.b16 %v5494, %v5486
    %v6199 = vpack.c.b16 %v5495, %v5487
    %v6200 = vpack.c.b16 %v5496, %v5488
    %v6201 = vpack.c.b16 %v5497, %v5489
    %v6202 = vpack.c.b16 %v5498, %v5490
    %v6203 = vpack.c.b16 %v5499, %v5491
    %v6204 = vpack.c.b16 %v5500, %v5492
    %v6205 = vpack.c.b16 %v5501, %v5493
    %v6206 = vpack.c.b16 %v5510, %v5502
    %v6207 = vpack.c.b16 %v5511, %v5503
    %v6208 = vpack.c.b16 %v5512, %v5504
    %v6209 = vpack.c.b16 %v5513, %v5505
    %v6210 = vpack.c.b16 %v5514, %v5506
    %v6211 = vpack.c.b16 %v5515, %v5507
    %v6212 = vpack.c.b16 %v5516, %v5508
    %v6213 = vpack.c.b16 %v5517, %v5509
    %v6214 = vpack.c.b16 %v5526, %v5518
    %v6215 = vpack.c.b16 %v5527, %v5519
    %v6216 = vpack.c.b16 %v5528, %v5520
    %v6217 = vpack.c.b16 %v5529, %v5521
    %v6218 = vpack.c.b16 %v5530, %v5522
    %v6219 = vpack.c.b16 %v5531, %v5523
    %v6220 = vpack.c.b16 %v5532, %v5524
    %v6221 = vpack.c.b16 %v5533, %v5525
    %v6222 = vpack.c.b16 %v5542, %v5534
    %v6223 = vpack.c.b16 %v5543, %v5535
    %v6224 = vpack.c.b16 %v5544, %v5536
    %v6225 = vpack.c.b16 %v5545, %v5537
    %v6226 = vpack.c.b16 %v5546, %v5538
    %v6227 = vpack.c.b16 %v5547, %v5539
    %v6228 = vpack.c.b16 %v5548, %v5540
    %v6229 = vpack.c.b16 %v5549, %v5541
    %v6230 = vpack.c.b16 %v5558, %v5550
    %v6231 = vpack.c.b16 %v5559, %v5551
    %v6232 = vpack.c.b16 %v5560, %v5552
    %v6233 = vpack.c.b16 %v5561, %v5553
    %v6234 = vpack.c.b16 %v5562, %v5554
    %v6235 = vpack.c.b16 %v5563, %v5555
    %v6236 = vpack.c.b16 %v5564, %v5556
    %v6237 = vpack.c.b16 %v5565, %v5557
    %v6238 = vpack.c.b16 %v5574, %v5566
    %v6239 = vpack.c.b16 %v5575, %v5567
    %v6240 = vpack.c.b16 %v5576, %v5568
    %v6241 = vpack.c.b16 %v5577, %v5569
    %v6242 = vpack.c.b16 %v5578, %v5570
    %v6243 = vpack.c.b16 %v5579, %v5571
    %v6244 = vpack.c.b16 %v5580, %v5572
    %v6245 = vpack.c.b16 %v5581, %v5573
    %v6246 = vpack.c.b16 %v5590, %v5582
    %v6247 = vpack.c.b16 %v5591, %v5583
    %v6248 = vpack.c.b16 %v5592, %v5584
    %v6249 = vpack.c.b16 %v5593, %v5585
    %v6250 = vpack.c.b16 %v5594, %v5586
    %v6251 = vpack.c.b16 %v5595, %v5587
    %v6252 = vpack.c.b16 %v5596, %v5588
    %v6253 = vpack.c.b16 %v5597, %v5589
    %v6254 = vpack.c.b16 %v5606, %v5598
    %v6255 = vpack.c.b16 %v5607, %v5599
    %v6256 = vpack.c.b16 %v5608, %v5600
    %v6257 = vpack.c.b16 %v5609, %v5601
    %v6258 = vpack.c.b16 %v5610, %v5602
    %v6259 = vpack.c.b16 %v5611, %v5603
    %v6260 = vpack.c.b16 %v5612, %v5604
    %v6261 = vpack.c.b16 %v5613, %v5605
    %v6262 = vpack.c.b16 %v5622, %v5614
    %v6263 = vpack.c.b16 %v5623, %v5615
    %v6264 = vpack.c.b16 %v5624, %v5616
    %v6265 = vpack.c.b16 %v5625, %v5617
    %v6266 = vpack.c.b16 %v5626, %v5618
    %v6267 = vpack.c.b16 %v5627, %v5619
    %v6268 = vpack.c.b16 %v5628, %v5620
    %v6269 = vpack.c.b16 %v5629, %v5621
    %v6270 = vpack.c.b16 %v5638, %v5630
    %v6271 = vpack.c.b16 %v5639, %v5631
    %v6272 = vpack.c.b16 %v5640, %v5632
    %v6273 = vpack.c.b16 %v5641, %v5633
    %v6274 = vpack.c.b16 %v5642, %v5634
    %v6275 = vpack.c.b16 %v5643, %v5635
    %v6276 = vpack.c.b16 %v5644, %v5636
    %v6277 = vpack.c.b16 %v5645, %v5637
    %v6278 = vpack.c.b16 %v5654, %v5646
    %v6279 = vpack.c.b16 %v5655, %v5647
    %v6280 = vpack.c.b16 %v5656, %v5648
    %v6281 = vpack.c.b16 %v5657, %v5649
    %v6282 = vpack.c.b16 %v5658, %v5650
    %v6283 = vpack.c.b16 %v5659, %v5651
    %v6284 = vpack.c.b16 %v5660, %v5652
    %v6285 = vpack.c.b16 %v5661, %v5653
    %v6286 = vpack.c.b16 %v5670, %v5662
    %v6287 = vpack.c.b16 %v5671, %v5663
    %v6288 = vpack.c.b16 %v5672, %v5664
    %v6289 = vpack.c.b16 %v5673, %v5665
    %v6290 = vpack.c.b16 %v5674, %v5666
    %v6291 = vpack.c.b16 %v5675, %v5667
    %v6292 = vpack.c.b16 %v5676, %v5668
    %v6293 = vpack.c.b16 %v5677, %v5669
    %v6294 = vpack.c.b16 %v5686, %v5678
    %v6295 = vpack.c.b16 %v5687, %v5679
    %v6296 = vpack.c.b16 %v5688, %v5680
    %v6297 = vpack.c.b16 %v5689, %v5681
    %v6298 = vpack.c.b16 %v5690, %v5682
    %v6299 = vpack.c.b16 %v5691, %v5683
    %v6300 = vpack.c.b16 %v5692, %v5684
    %v6301 = vpack.c.b16 %v5693, %v5685
    %v6302 = vpack.c.b16 %v5702, %v5694
    %v6303 = vpack.c.b16 %v5703, %v5695
    %v6304 = vpack.c.b16 %v5704, %v5696
    %v6305 = vpack.c.b16 %v5705, %v5697
    %v6306 = vpack.c.b16 %v5706, %v5698
    %v6307 = vpack.c.b16 %v5707, %v5699
    %v6308 = vpack.c.b16 %v5708, %v5700
    %v6309 = vpack.c.b16 %v5709, %v5701
    %v6310 = vpack.c.b16 %v5718, %v5710
    %v6311 = vpack.c.b16 %v5719, %v5711
    %v6312 = vpack.c.b16 %v5720, %v5712
    %v6313 = vpack.c.b16 %v5721, %v5713
    %v6314 = vpack.c.b16 %v5722, %v5714
    %v6315 = vpack.c.b16 %v5723, %v5715
    %v6316 = vpack.c.b16 %v5724, %v5716
    %v6317 = vpack.c.b16 %v5725, %v5717
    %v6318 = vpack.c.b16 %v5734, %v5726
    %v6319 = vpack.c.b16 %v5735, %v5727
    %v6320 = vpack.c.b16 %v5736, %v5728
    %v6321 = vpack.c.b16 %v5737, %v5729
    %v6322 = vpack.c.b16 %v5738, %v5730
    %v6323 = vpack.c.b16 %v5739, %v5731
    %v6324 = vpack.c.b16 %v5740, %v5732
    %v6325 = vpack.c.b16 %v5741, %v5733
    %v6326 = vpack.c.b16 %v5750, %v5742
    %v6327 = vpack.c.b16 %v5751, %v5743
    %v6328 = vpack.c.b16 %v5752, %v5744
    %v6329 = vpack.c.b16 %v5753, %v5745
    %v6330 = vpack.c.b16 %v5754, %v5746
    %v6331 = vpack.c.b16 %v5755, %v5747
    %v6332 = vpack.c.b16 %v5756, %v5748
    %v6333 = vpack.c.b16 %v5757, %v5749
    %v6334 = vpack.c.b16 %v5766, %v5758
    %v6335 = vpack.c.b16 %v5767, %v5759
    %v6336 = vpack.c.b16 %v5768, %v5760
    %v6337 = vpack.c.b16 %v5769, %v5761
    %v6338 = vpack.c.b16 %v5770, %v5762
    %v6339 = vpack.c.b16 %v5771, %v5763
    %v6340 = vpack.c.b16 %v5772, %v5764
    %v6341 = vpack.c.b16 %v5773, %v5765
    %v6342 = vpack.c.b16 %v5782, %v5774
    %v6343 = vpack.c.b16 %v5783, %v5775
    %v6344 = vpack.c.b16 %v5784, %v5776
    %v6345 = vpack.c.b16 %v5785, %v5777
    %v6346 = vpack.c.b16 %v5786, %v5778
    %v6347 = vpack.c.b16 %v5787, %v5779
    %v6348 = vpack.c.b16 %v5788, %v5780
    %v6349 = vpack.c.b16 %v5789, %v5781
    %v6350 = vpack.c.b16 %v5798, %v5790
    %v6351 = vpack.c.b16 %v5799, %v5791
    %v6352 = vpack.c.b16 %v5800, %v5792
    %v6353 = vpack.c.b16 %v5801, %v5793
    %v6354 = vpack.c.b16 %v5802, %v5794
    %v6355 = vpack.c.b16 %v5803, %v5795
    %v6356 = vpack.c.b16 %v5804, %v5796
    %v6357 = vpack.c.b16 %v5805, %v5797
    %v6358 = vpack.c.b16 %v5814, %v5806
    %v6359 = vpack.c.b16 %v5815, %v5807
    %v6360 = vpack.c.b16 %v5816, %v5808
    %v6361 = vpack.c.b16 %v5817, %v5809
    %v6362 = vpack.c.b16 %v5818, %v5810
    %v6363 = vpack.c.b16 %v5819, %v5811
    %v6364 = vpack.c.b16 %v5820, %v5812
    %v6365 = vpack.c.b16 %v5821, %v5813
    %v6366 = vpack.c.b16 %v5830, %v5822
    %v6367 = vpack.c.b16 %v5831, %v5823
    %v6368 = vpack.c.b16 %v5832, %v5824
    %v6369 = vpack.c.b16 %v5833, %v5825
    %v6370 = vpack.c.b16 %v5834, %v5826
    %v6371 = vpack.c.b16 %v5835, %v5827
    %v6372 = vpack.c.b16 %v5836, %v5828
    %v6373 = vpack.c.b16 %v5837, %v5829
    %v6374 = vpack.c.b16 %v5846, %v5838
    %v6375 = vpack.c.b16 %v5847, %v5839
    %v6376 = vpack.c.b16 %v5848, %v5840
    %v6377 = vpack.c.b16 %v5849, %v5841
    %v6378 = vpack.c.b16 %v5850, %v5842
    %v6379 = vpack.c.b16 %v5851, %v5843
    %v6380 = vpack.c.b16 %v5852, %v5844
    %v6381 = vpack.c.b16 %v5853, %v5845
    %v6382 = vpack.c.b16 %v5862, %v5854
    %v6383 = vpack.c.b16 %v5863, %v5855
    %v6384 = vpack.c.b16 %v5864, %v5856
    %v6385 = vpack.c.b16 %v5865, %v5857
    %v6386 = vpack.c.b16 %v5866, %v5858
    %v6387 = vpack.c.b16 %v5867, %v5859
    %v6388 = vpack.c.b16 %v5868, %v5860
    %v6389 = vpack.c.b16 %v5869, %v5861
    %v6390 = vpack.c.b16 %v5878, %v5870
    %v6391 = vpack.c.b16 %v5879, %v5871
    %v6392 = vpack.c.b16 %v5880, %v5872
    %v6393 = vpack.c.b16 %v5881, %v5873
    %v6394 = vpack.c.b16 %v5882, %v5874
    %v6395 = vpack.c.b16 %v5883, %v5875
    %v6396 = vpack.c.b16 %v5884, %v5876
    %v6397 = vpack.c.b16 %v5885, %v5877
    %6910 = vmatprep.subr.bf16.mxu0 %v5887
    %6911 = vmatpush1.bf16.msra.mxu0 %v5886
    %6912 = vmatprep.subr.bf16.mxu0 %v5895
    %6913 = vmatpush1.bf16.msra.mxu0 %v5894
    %6914 = vmatprep.subr.bf16.mxu0 %v5903
    %6915 = vmatpush1.bf16.msra.mxu0 %v5902
    %6916 = vmatprep.subr.bf16.mxu0 %v5911
    %6917 = vmatpush1.bf16.msra.mxu0 %v5910
    %6918 = vmatprep.subr.bf16.mxu0 %v5919
    %6919 = vmatpush1.bf16.msra.mxu0 %v5918
    %6920 = vmatprep.subr.bf16.mxu0 %v5927
    %6921 = vmatpush1.bf16.msra.mxu0 %v5926
    %6922 = vmatprep.subr.bf16.mxu0 %v5935
    %6923 = vmatpush1.bf16.msra.mxu0 %v5934
    %6924 = vmatprep.subr.bf16.mxu0 %v5943
    %6925 = vmatpush1.bf16.msra.mxu0 %v5942
    %6926 = vmatprep.subr.bf16.mxu0 %v5951
    %6927 = vmatpush1.bf16.msra.mxu0 %v5950
    %6928 = vmatprep.subr.bf16.mxu0 %v5959
    %6929 = vmatpush1.bf16.msra.mxu0 %v5958
    %6930 = vmatprep.subr.bf16.mxu0 %v5967
    %6931 = vmatpush1.bf16.msra.mxu0 %v5966
    %6932 = vmatprep.subr.bf16.mxu0 %v5975
    %6933 = vmatpush1.bf16.msra.mxu0 %v5974
    %6934 = vmatprep.subr.bf16.mxu0 %v5983
    %6935 = vmatpush1.bf16.msra.mxu0 %v5982
    %6936 = vmatprep.subr.bf16.mxu0 %v5991
    %6937 = vmatpush1.bf16.msra.mxu0 %v5990
    %6938 = vmatprep.subr.bf16.mxu0 %v5999
    %6939 = vmatpush1.bf16.msra.mxu0 %v5998
    %6940 = vmatprep.subr.bf16.mxu0 %v6007
    %6941 = vmatpush1.bf16.msra.mxu0 %v6006
    %6942 = vmatprep.mubr.bf16.mxu0 %v3831
    %6943 = vmatmul.mubr.bf16.gmra.mrb[0].mxu0 %v3830
    %v6944 = vpop.f32.mrb[0].mxu0
    %v6945 = vadd.f32 0.0, %v6944
    %v6946 = vpop.f32.mrb[0].mxu0
    %v6947 = vadd.f32 0.0, %v6946
    %v6948 = vpop.f32.mrb[0].mxu0
    %v6949 = vpop.f32.mrb[0].mxu0
    %6950 = vdwg.mxu0
    %6951 = vmatprep.subr.bf16.mxu0 %v6015
    %6952 = vmatpush1.bf16.msra.mxu0 %v6014
    %6953 = vmatprep.subr.bf16.mxu0 %v6023
    %6954 = vmatpush1.bf16.msra.mxu0 %v6022
    %6955 = vmatprep.subr.bf16.mxu0 %v6031
    %6956 = vmatpush1.bf16.msra.mxu0 %v6030
    %6957 = vmatprep.subr.bf16.mxu0 %v6039
    %6958 = vmatpush1.bf16.msra.mxu0 %v6038
    %6959 = vmatprep.subr.bf16.mxu0 %v6047
    %6960 = vmatpush1.bf16.msra.mxu0 %v6046
    %6961 = vmatprep.subr.bf16.mxu0 %v6055
    %6962 = vmatpush1.bf16.msra.mxu0 %v6054
    %6963 = vmatprep.subr.bf16.mxu0 %v6063
    %6964 = vmatpush1.bf16.msra.mxu0 %v6062
    %6965 = vmatprep.subr.bf16.mxu0 %v6071
    %6966 = vmatpush1.bf16.msra.mxu0 %v6070
    %6967 = vmatprep.subr.bf16.mxu0 %v6079
    %6968 = vmatpush1.bf16.msra.mxu0 %v6078
    %6969 = vmatprep.subr.bf16.mxu0 %v6087
    %6970 = vmatpush1.bf16.msra.mxu0 %v6086
    %6971 = vmatprep.subr.bf16.mxu0 %v6095
    %6972 = vmatpush1.bf16.msra.mxu0 %v6094
    %6973 = vmatprep.subr.bf16.mxu0 %v6103
    %6974 = vmatpush1.bf16.msra.mxu0 %v6102
    %6975 = vmatprep.subr.bf16.mxu0 %v6111
    %6976 = vmatpush1.bf16.msra.mxu0 %v6110
    %6977 = vmatprep.subr.bf16.mxu0 %v6119
    %6978 = vmatpush1.bf16.msra.mxu0 %v6118
    %6979 = vmatprep.subr.bf16.mxu0 %v6127
    %6980 = vmatpush1.bf16.msra.mxu0 %v6126
    %6981 = vmatprep.subr.bf16.mxu0 %v6135
    %6982 = vmatpush1.bf16.msra.mxu0 %v6134
    %6983 = vmatprep.mubr.bf16.mxu0 %v3833
    %6984 = vmatmul.mubr.bf16.gmra.mrb[0].mxu0 %v3832
    %v6985 = vpop.f32.mrb[0].mxu0
    %v6986 = vadd.f32 %v6945, %v6985
    %v6987 = vpop.f32.mrb[0].mxu0
    %v6988 = vadd.f32 %v6947, %v6987
    %v6989 = vpop.f32.mrb[0].mxu0
    %v6990 = vpop.f32.mrb[0].mxu0
    %6991 = vdwg.mxu0
    %6992 = vmatprep.subr.bf16.mxu0 %v6143
    %6993 = vmatpush1.bf16.msra.mxu0 %v6142
    %6994 = vmatprep.subr.bf16.mxu0 %v6151
    %6995 = vmatpush1.bf16.msra.mxu0 %v6150
    %6996 = vmatprep.subr.bf16.mxu0 %v6159
    %6997 = vmatpush1.bf16.msra.mxu0 %v6158
    %6998 = vmatprep.subr.bf16.mxu0 %v6167
    %6999 = vmatpush1.bf16.msra.mxu0 %v6166
    %7000 = vmatprep.subr.bf16.mxu0 %v6175
    %7001 = vmatpush1.bf16.msra.mxu0 %v6174
    %7002 = vmatprep.subr.bf16.mxu0 %v6183
    %7003 = vmatpush1.bf16.msra.mxu0 %v6182
    %7004 = vmatprep.subr.bf16.mxu0 %v6191
    %7005 = vmatpush1.bf16.msra.mxu0 %v6190
    %7006 = vmatprep.subr.bf16.mxu0 %v6199
    %7007 = vmatpush1.bf16.msra.mxu0 %v6198
    %7008 = vmatprep.subr.bf16.mxu0 %v6207
    %7009 = vmatpush1.bf16.msra.mxu0 %v6206
    %7010 = vmatprep.subr.bf16.mxu0 %v6215
    %7011 = vmatpush1.bf16.msra.mxu0 %v6214
    %7012 = vmatprep.subr.bf16.mxu0 %v6223
    %7013 = vmatpush1.bf16.msra.mxu0 %v6222
    %7014 = vmatprep.subr.bf16.mxu0 %v6231
    %7015 = vmatpush1.bf16.msra.mxu0 %v6230
    %7016 = vmatprep.subr.bf16.mxu0 %v6239
    %7017 = vmatpush1.bf16.msra.mxu0 %v6238
    %7018 = vmatprep.subr.bf16.mxu0 %v6247
    %7019 = vmatpush1.bf16.msra.mxu0 %v6246
    %7020 = vmatprep.subr.bf16.mxu0 %v6255
    %7021 = vmatpush1.bf16.msra.mxu0 %v6254
    %7022 = vmatprep.subr.bf16.mxu0 %v6263
    %7023 = vmatpush1.bf16.msra.mxu0 %v6262
    %7024 = vmatprep.mubr.bf16.mxu0 %v3835
    %7025 = vmatmul.mubr.bf16.gmra.mrb[0].mxu0 %v3834
    %v7026 = vpop.f32.mrb[0].mxu0
    %v7027 = vadd.f32 %v6986, %v7026
    %v7028 = vpop.f32.mrb[0].mxu0
    %v7029 = vadd.f32 %v6988, %v7028
    %v7030 = vpop.f32.mrb[0].mxu0
    %v7031 = vpop.f32.mrb[0].mxu0
    %7032 = vdwg.mxu0
    %7033 = vmatprep.subr.bf16.mxu0 %v6271
    %7034 = vmatpush1.bf16.msra.mxu0 %v6270
    %7035 = vmatprep.subr.bf16.mxu0 %v6279
    %7036 = vmatpush1.bf16.msra.mxu0 %v6278
    %7037 = vmatprep.subr.bf16.mxu0 %v6287
    %7038 = vmatpush1.bf16.msra.mxu0 %v6286
    %7039 = vmatprep.subr.bf16.mxu0 %v6295
    %7040 = vmatpush1.bf16.msra.mxu0 %v6294
    %7041 = vmatprep.subr.bf16.mxu0 %v6303
    %7042 = vmatpush1.bf16.msra.mxu0 %v6302
    %7043 = vmatprep.subr.bf16.mxu0 %v6311
    %7044 = vmatpush1.bf16.msra.mxu0 %v6310
    %7045 = vmatprep.subr.bf16.mxu0 %v6319
    %7046 = vmatpush1.bf16.msra.mxu0 %v6318
    %7047 = vmatprep.subr.bf16.mxu0 %v6327
    %7048 = vmatpush1.bf16.msra.mxu0 %v6326
    %7049 = vmatprep.subr.bf16.mxu0 %v6335
    %7050 = vmatpush1.bf16.msra.mxu0 %v6334
    %7051 = vmatprep.subr.bf16.mxu0 %v6343
    %7052 = vmatpush1.bf16.msra.mxu0 %v6342
    %7053 = vmatprep.subr.bf16.mxu0 %v6351
    %7054 = vmatpush1.bf16.msra.mxu0 %v6350
    %7055 = vmatprep.subr.bf16.mxu0 %v6359
    %7056 = vmatpush1.bf16.msra.mxu0 %v6358
    %7057 = vmatprep.subr.bf16.mxu0 %v6367
    %7058 = vmatpush1.bf16.msra.mxu0 %v6366
    %7059 = vmatprep.subr.bf16.mxu0 %v6375
    %7060 = vmatpush1.bf16.msra.mxu0 %v6374
    %7061 = vmatprep.subr.bf16.mxu0 %v6383
    %7062 = vmatpush1.bf16.msra.mxu0 %v6382
    %7063 = vmatprep.subr.bf16.mxu0 %v6391
    %7064 = vmatpush1.bf16.msra.mxu0 %v6390
    %7065 = vmatprep.mubr.bf16.mxu0 %v3837
    %7066 = vmatmul.mubr.bf16.gmra.mrb[0].mxu0 %v3836
    %v7067 = vpop.f32.mrb[0].mxu0
    %v7068 = vadd.f32 %v7027, %v7067
    %v7069 = vpop.f32.mrb[0].mxu0
    %v7070 = vadd.f32 %v7029, %v7069
    %v7071 = vpop.f32.mrb[0].mxu0
    %v7072 = vpop.f32.mrb[0].mxu0
    %7073 = vdwg.mxu0
    %7074 = vmatprep.subr.bf16.mxu0 %v5889
    %7075 = vmatpush1.bf16.msra.mxu0 %v5888
    %7076 = vmatprep.subr.bf16.mxu0 %v5897
    %7077 = vmatpush1.bf16.msra.mxu0 %v5896
    %7078 = vmatprep.subr.bf16.mxu0 %v5905
    %7079 = vmatpush1.bf16.msra.mxu0 %v5904
    %7080 = vmatprep.subr.bf16.mxu0 %v5913
    %7081 = vmatpush1.bf16.msra.mxu0 %v5912
    %7082 = vmatprep.subr.bf16.mxu0 %v5921
    %7083 = vmatpush1.bf16.msra.mxu0 %v5920
    %7084 = vmatprep.subr.bf16.mxu0 %v5929
    %7085 = vmatpush1.bf16.msra.mxu0 %v5928
    %7086 = vmatprep.subr.bf16.mxu0 %v5937
    %7087 = vmatpush1.bf16.msra.mxu0 %v5936
    %7088 = vmatprep.subr.bf16.mxu0 %v5945
    %7089 = vmatpush1.bf16.msra.mxu0 %v5944
    %7090 = vmatprep.subr.bf16.mxu0 %v5953
    %7091 = vmatpush1.bf16.msra.mxu0 %v5952
    %7092 = vmatprep.subr.bf16.mxu0 %v5961
    %7093 = vmatpush1.bf16.msra.mxu0 %v5960
    %7094 = vmatprep.subr.bf16.mxu0 %v5969
    %7095 = vmatpush1.bf16.msra.mxu0 %v5968
    %7096 = vmatprep.subr.bf16.mxu0 %v5977
    %7097 = vmatpush1.bf16.msra.mxu0 %v5976
    %7098 = vmatprep.subr.bf16.mxu0 %v5985
    %7099 = vmatpush1.bf16.msra.mxu0 %v5984
    %7100 = vmatprep.subr.bf16.mxu0 %v5993
    %7101 = vmatpush1.bf16.msra.mxu0 %v5992
    %7102 = vmatprep.subr.bf16.mxu0 %v6001
    %7103 = vmatpush1.bf16.msra.mxu0 %v6000
    %7104 = vmatprep.subr.bf16.mxu0 %v6009
    %7105 = vmatpush1.bf16.msra.mxu0 %v6008
    %7106 = vmatprep.mubr.bf16.mxu0 %v3831
    %7107 = vmatmul.mubr.bf16.gmra.mrb[0].mxu0 %v3830
    %v7108 = vpop.f32.mrb[0].mxu0
    %v7109 = vadd.f32 0.0, %v7108
    %v7110 = vpop.f32.mrb[0].mxu0
    %v7111 = vadd.f32 0.0, %v7110
    %v7112 = vpop.f32.mrb[0].mxu0
    %v7113 = vpop.f32.mrb[0].mxu0
    %7114 = vdwg.mxu0
    %7115 = vmatprep.subr.bf16.mxu0 %v6017
    %7116 = vmatpush1.bf16.msra.mxu0 %v6016
    %7117 = vmatprep.subr.bf16.mxu0 %v6025
    %7118 = vmatpush1.bf16.msra.mxu0 %v6024
    %7119 = vmatprep.subr.bf16.mxu0 %v6033
    %7120 = vmatpush1.bf16.msra.mxu0 %v6032
    %7121 = vmatprep.subr.bf16.mxu0 %v6041
    %7122 = vmatpush1.bf16.msra.mxu0 %v6040
    %7123 = vmatprep.subr.bf16.mxu0 %v6049
    %7124 = vmatpush1.bf16.msra.mxu0 %v6048
    %7125 = vmatprep.subr.bf16.mxu0 %v6057
    %7126 = vmatpush1.bf16.msra.mxu0 %v6056
    %7127 = vmatprep.subr.bf16.mxu0 %v6065
    %7128 = vmatpush1.bf16.msra.mxu0 %v6064
    %7129 = vmatprep.subr.bf16.mxu0 %v6073
    %7130 = vmatpush1.bf16.msra.mxu0 %v6072
    %7131 = vmatprep.subr.bf16.mxu0 %v6081
    %7132 = vmatpush1.bf16.msra.mxu0 %v6080
    %7133 = vmatprep.subr.bf16.mxu0 %v6089
    %7134 = vmatpush1.bf16.msra.mxu0 %v6088
    %7135 = vmatprep.subr.bf16.mxu0 %v6097
    %7136 = vmatpush1.bf16.msra.mxu0 %v6096
    %7137 = vmatprep.subr.bf16.mxu0 %v6105
    %7138 = vmatpush1.bf16.msra.mxu0 %v6104
    %7139 = vmatprep.subr.bf16.mxu0 %v6113
    %7140 = vmatpush1.bf16.msra.mxu0 %v6112
    %7141 = vmatprep.subr.bf16.mxu0 %v6121
    %7142 = vmatpush1.bf16.msra.mxu0 %v6120
    %7143 = vmatprep.subr.bf16.mxu0 %v6129
    %7144 = vmatpush1.bf16.msra.mxu0 %v6128
    %7145 = vmatprep.subr.bf16.mxu0 %v6137
    %7146 = vmatpush1.bf16.msra.mxu0 %v6136
    %7147 = vmatprep.mubr.bf16.mxu0 %v3833
    %7148 = vmatmul.mubr.bf16.gmra.mrb[0].mxu0 %v3832
    %v7149 = vpop.f32.mrb[0].mxu0
    %v7150 = vadd.f32 %v7109, %v7149
    %v7151 = vpop.f32.mrb[0].mxu0
    %v7152 = vadd.f32 %v7111, %v7151
    %v7153 = vpop.f32.mrb[0].mxu0
    %v7154 = vpop.f32.mrb[0].mxu0
    %7155 = vdwg.mxu0
    %7156 = vmatprep.subr.bf16.mxu0 %v6145
    %7157 = vmatpush1.bf16.msra.mxu0 %v6144
    %7158 = vmatprep.subr.bf16.mxu0 %v6153
    %7159 = vmatpush1.bf16.msra.mxu0 %v6152
    %7160 = vmatprep.subr.bf16.mxu0 %v6161
    %7161 = vmatpush1.bf16.msra.mxu0 %v6160
    %7162 = vmatprep.subr.bf16.mxu0 %v6169
    %7163 = vmatpush1.bf16.msra.mxu0 %v6168
    %7164 = vmatprep.subr.bf16.mxu0 %v6177
    %7165 = vmatpush1.bf16.msra.mxu0 %v6176
    %7166 = vmatprep.subr.bf16.mxu0 %v6185
    %7167 = vmatpush1.bf16.msra.mxu0 %v6184
    %7168 = vmatprep.subr.bf16.mxu0 %v6193
    %7169 = vmatpush1.bf16.msra.mxu0 %v6192
    %7170 = vmatprep.subr.bf16.mxu0 %v6201
    %7171 = vmatpush1.bf16.msra.mxu0 %v6200
    %7172 = vmatprep.subr.bf16.mxu0 %v6209
    %7173 = vmatpush1.bf16.msra.mxu0 %v6208
    %7174 = vmatprep.subr.bf16.mxu0 %v6217
    %7175 = vmatpush1.bf16.msra.mxu0 %v6216
    %7176 = vmatprep.subr.bf16.mxu0 %v6225
    %7177 = vmatpush1.bf16.msra.mxu0 %v6224
    %7178 = vmatprep.subr.bf16.mxu0 %v6233
    %7179 = vmatpush1.bf16.msra.mxu0 %v6232
    %7180 = vmatprep.subr.bf16.mxu0 %v6241
    %7181 = vmatpush1.bf16.msra.mxu0 %v6240
    %7182 = vmatprep.subr.bf16.mxu0 %v6249
    %7183 = vmatpush1.bf16.msra.mxu0 %v6248
    %7184 = vmatprep.subr.bf16.mxu0 %v6257
    %7185 = vmatpush1.bf16.msra.mxu0 %v6256
    %7186 = vmatprep.subr.bf16.mxu0 %v6265
    %7187 = vmatpush1.bf16.msra.mxu0 %v6264
    %7188 = vmatprep.mubr.bf16.mxu0 %v3835
    %7189 = vmatmul.mubr.bf16.gmra.mrb[0].mxu0 %v3834
    %v7190 = vpop.f32.mrb[0].mxu0
    %v7191 = vadd.f32 %v7150, %v7190
    %v7192 = vpop.f32.mrb[0].mxu0
    %v7193 = vadd.f32 %v7152, %v7192
    %v7194 = vpop.f32.mrb[0].mxu0
    %v7195 = vpop.f32.mrb[0].mxu0
    %7196 = vdwg.mxu0
    %7197 = vmatprep.subr.bf16.mxu0 %v6273
    %7198 = vmatpush1.bf16.msra.mxu0 %v6272
    %7199 = vmatprep.subr.bf16.mxu0 %v6281
    %7200 = vmatpush1.bf16.msra.mxu0 %v6280
    %7201 = vmatprep.subr.bf16.mxu0 %v6289
    %7202 = vmatpush1.bf16.msra.mxu0 %v6288
    %7203 = vmatprep.subr.bf16.mxu0 %v6297
    %7204 = vmatpush1.bf16.msra.mxu0 %v6296
    %7205 = vmatprep.subr.bf16.mxu0 %v6305
    %7206 = vmatpush1.bf16.msra.mxu0 %v6304
    %7207 = vmatprep.subr.bf16.mxu0 %v6313
    %7208 = vmatpush1.bf16.msra.mxu0 %v6312
    %7209 = vmatprep.subr.bf16.mxu0 %v6321
    %7210 = vmatpush1.bf16.msra.mxu0 %v6320
    %7211 = vmatprep.subr.bf16.mxu0 %v6329
    %7212 = vmatpush1.bf16.msra.mxu0 %v6328
    %7213 = vmatprep.subr.bf16.mxu0 %v6337
    %7214 = vmatpush1.bf16.msra.mxu0 %v6336
    %7215 = vmatprep.subr.bf16.mxu0 %v6345
    %7216 = vmatpush1.bf16.msra.mxu0 %v6344
    %7217 = vmatprep.subr.bf16.mxu0 %v6353
    %7218 = vmatpush1.bf16.msra.mxu0 %v6352
    %7219 = vmatprep.subr.bf16.mxu0 %v6361
    %7220 = vmatpush1.bf16.msra.mxu0 %v6360
    %7221 = vmatprep.subr.bf16.mxu0 %v6369
    %7222 = vmatpush1.bf16.msra.mxu0 %v6368
    %7223 = vmatprep.subr.bf16.mxu0 %v6377
    %7224 = vmatpush1.bf16.msra.mxu0 %v6376
    %7225 = vmatprep.subr.bf16.mxu0 %v6385
    %7226 = vmatpush1.bf16.msra.mxu0 %v6384
    %7227 = vmatprep.subr.bf16.mxu0 %v6393
    %7228 = vmatpush1.bf16.msra.mxu0 %v6392
    %7229 = vmatprep.mubr.bf16.mxu0 %v3837
    %7230 = vmatmul.mubr.bf16.gmra.mrb[0].mxu0 %v3836
    %v7231 = vpop.f32.mrb[0].mxu0
    %v7232 = vadd.f32 %v7191, %v7231
    %v7233 = vpop.f32.mrb[0].mxu0
    %v7234 = vadd.f32 %v7193, %v7233
    %v7235 = vpop.f32.mrb[0].mxu0
    %v7236 = vpop.f32.mrb[0].mxu0
    %7237 = vdwg.mxu0
    %7238 = vmatprep.subr.bf16.mxu0 %v5891
    %7239 = vmatpush1.bf16.msra.mxu0 %v5890
    %7240 = vmatprep.subr.bf16.mxu0 %v5899
    %7241 = vmatpush1.bf16.msra.mxu0 %v5898
    %7242 = vmatprep.subr.bf16.mxu0 %v5907
    %7243 = vmatpush1.bf16.msra.mxu0 %v5906
    %7244 = vmatprep.subr.bf16.mxu0 %v5915
    %7245 = vmatpush1.bf16.msra.mxu0 %v5914
    %7246 = vmatprep.subr.bf16.mxu0 %v5923
    %7247 = vmatpush1.bf16.msra.mxu0 %v5922
    %7248 = vmatprep.subr.bf16.mxu0 %v5931
    %7249 = vmatpush1.bf16.msra.mxu0 %v5930
    %7250 = vmatprep.subr.bf16.mxu0 %v5939
    %7251 = vmatpush1.bf16.msra.mxu0 %v5938
    %7252 = vmatprep.subr.bf16.mxu0 %v5947
    %7253 = vmatpush1.bf16.msra.mxu0 %v5946
    %7254 = vmatprep.subr.bf16.mxu0 %v5955
    %7255 = vmatpush1.bf16.msra.mxu0 %v5954
    %7256 = vmatprep.subr.bf16.mxu0 %v5963
    %7257 = vmatpush1.bf16.msra.mxu0 %v5962
    %7258 = vmatprep.subr.bf16.mxu0 %v5971
    %7259 = vmatpush1.bf16.msra.mxu0 %v5970
    %7260 = vmatprep.subr.bf16.mxu0 %v5979
    %7261 = vmatpush1.bf16.msra.mxu0 %v5978
    %7262 = vmatprep.subr.bf16.mxu0 %v5987
    %7263 = vmatpush1.bf16.msra.mxu0 %v5986
    %7264 = vmatprep.subr.bf16.mxu0 %v5995
    %7265 = vmatpush1.bf16.msra.mxu0 %v5994
    %7266 = vmatprep.subr.bf16.mxu0 %v6003
    %7267 = vmatpush1.bf16.msra.mxu0 %v6002
    %7268 = vmatprep.subr.bf16.mxu0 %v6011
    %7269 = vmatpush1.bf16.msra.mxu0 %v6010
    %7270 = vmatprep.mubr.bf16.mxu0 %v3831
    %7271 = vmatmul.mubr.bf16.gmra.mrb[0].mxu0 %v3830
    %v7272 = vpop.f32.mrb[0].mxu0
    %v7273 = vadd.f32 0.0, %v7272
    %v7274 = vpop.f32.mrb[0].mxu0
    %v7275 = vadd.f32 0.0, %v7274
    %v7276 = vpop.f32.mrb[0].mxu0
    %v7277 = vpop.f32.mrb[0].mxu0
    %7278 = vdwg.mxu0
    %7279 = vmatprep.subr.bf16.mxu0 %v6019
    %7280 = vmatpush1.bf16.msra.mxu0 %v6018
    %7281 = vmatprep.subr.bf16.mxu0 %v6027
    %7282 = vmatpush1.bf16.msra.mxu0 %v6026
    %7283 = vmatprep.subr.bf16.mxu0 %v6035
    %7284 = vmatpush1.bf16.msra.mxu0 %v6034
    %7285 = vmatprep.subr.bf16.mxu0 %v6043
    %7286 = vmatpush1.bf16.msra.mxu0 %v6042
    %7287 = vmatprep.subr.bf16.mxu0 %v6051
    %7288 = vmatpush1.bf16.msra.mxu0 %v6050
    %7289 = vmatprep.subr.bf16.mxu0 %v6059
    %7290 = vmatpush1.bf16.msra.mxu0 %v6058
    %7291 = vmatprep.subr.bf16.mxu0 %v6067
    %7292 = vmatpush1.bf16.msra.mxu0 %v6066
    %7293 = vmatprep.subr.bf16.mxu0 %v6075
    %7294 = vmatpush1.bf16.msra.mxu0 %v6074
    %7295 = vmatprep.subr.bf16.mxu0 %v6083
    %7296 = vmatpush1.bf16.msra.mxu0 %v6082
    %7297 = vmatprep.subr.bf16.mxu0 %v6091
    %7298 = vmatpush1.bf16.msra.mxu0 %v6090
    %7299 = vmatprep.subr.bf16.mxu0 %v6099
    %7300 = vmatpush1.bf16.msra.mxu0 %v6098
    %7301 = vmatprep.subr.bf16.mxu0 %v6107
    %7302 = vmatpush1.bf16.msra.mxu0 %v6106
    %7303 = vmatprep.subr.bf16.mxu0 %v6115
    %7304 = vmatpush1.bf16.msra.mxu0 %v6114
    %7305 = vmatprep.subr.bf16.mxu0 %v6123
    %7306 = vmatpush1.bf16.msra.mxu0 %v6122
    %7307 = vmatprep.subr.bf16.mxu0 %v6131
    %7308 = vmatpush1.bf16.msra.mxu0 %v6130
    %7309 = vmatprep.subr.bf16.mxu0 %v6139
    %7310 = vmatpush1.bf16.msra.mxu0 %v6138
    %7311 = vmatprep.mubr.bf16.mxu0 %v3833
    %7312 = vmatmul.mubr.bf16.gmra.mrb[0].mxu0 %v3832
    %v7313 = vpop.f32.mrb[0].mxu0
    %v7314 = vadd.f32 %v7273, %v7313
    %v7315 = vpop.f32.mrb[0].mxu0
    %v7316 = vadd.f32 %v7275, %v7315
    %v7317 = vpop.f32.mrb[0].mxu0
    %v7318 = vpop.f32.mrb[0].mxu0
    %7319 = vdwg.mxu0
    %7320 = vmatprep.subr.bf16.mxu0 %v6147
    %7321 = vmatpush1.bf16.msra.mxu0 %v6146
    %7322 = vmatprep.subr.bf16.mxu0 %v6155
    %7323 = vmatpush1.bf16.msra.mxu0 %v6154
    %7324 = vmatprep.subr.bf16.mxu0 %v6163
    %7325 = vmatpush1.bf16.msra.mxu0 %v6162
    %7326 = vmatprep.subr.bf16.mxu0 %v6171
    %7327 = vmatpush1.bf16.msra.mxu0 %v6170
    %7328 = vmatprep.subr.bf16.mxu0 %v6179
    %7329 = vmatpush1.bf16.msra.mxu0 %v6178
    %7330 = vmatprep.subr.bf16.mxu0 %v6187
    %7331 = vmatpush1.bf16.msra.mxu0 %v6186
    %7332 = vmatprep.subr.bf16.mxu0 %v6195
    %7333 = vmatpush1.bf16.msra.mxu0 %v6194
    %7334 = vmatprep.subr.bf16.mxu0 %v6203
    %7335 = vmatpush1.bf16.msra.mxu0 %v6202
    %7336 = vmatprep.subr.bf16.mxu0 %v6211
    %7337 = vmatpush1.bf16.msra.mxu0 %v6210
    %7338 = vmatprep.subr.bf16.mxu0 %v6219
    %7339 = vmatpush1.bf16.msra.mxu0 %v6218
    %7340 = vmatprep.subr.bf16.mxu0 %v6227
    %7341 = vmatpush1.bf16.msra.mxu0 %v6226
    %7342 = vmatprep.subr.bf16.mxu0 %v6235
    %7343 = vmatpush1.bf16.msra.mxu0 %v6234
    %7344 = vmatprep.subr.bf16.mxu0 %v6243
    %7345 = vmatpush1.bf16.msra.mxu0 %v6242
    %7346 = vmatprep.subr.bf16.mxu0 %v6251
    %7347 = vmatpush1.bf16.msra.mxu0 %v6250
    %7348 = vmatprep.subr.bf16.mxu0 %v6259
    %7349 = vmatpush1.bf16.msra.mxu0 %v6258
    %7350 = vmatprep.subr.bf16.mxu0 %v6267
    %7351 = vmatpush1.bf16.msra.mxu0 %v6266
    %7352 = vmatprep.mubr.bf16.mxu0 %v3835
    %7353 = vmatmul.mubr.bf16.gmra.mrb[0].mxu0 %v3834
    %v7354 = vpop.f32.mrb[0].mxu0
    %v7355 = vadd.f32 %v7314, %v7354
    %v7356 = vpop.f32.mrb[0].mxu0
    %v7357 = vadd.f32 %v7316, %v7356
    %v7358 = vpop.f32.mrb[0].mxu0
    %v7359 = vpop.f32.mrb[0].mxu0
    %7360 = vdwg.mxu0
    %7361 = vmatprep.subr.bf16.mxu0 %v6275
    %7362 = vmatpush1.bf16.msra.mxu0 %v6274
    %7363 = vmatprep.subr.bf16.mxu0 %v6283
    %7364 = vmatpush1.bf16.msra.mxu0 %v6282
    %7365 = vmatprep.subr.bf16.mxu0 %v6291
    %7366 = vmatpush1.bf16.msra.mxu0 %v6290
    %7367 = vmatprep.subr.bf16.mxu0 %v6299
    %7368 = vmatpush1.bf16.msra.mxu0 %v6298
    %7369 = vmatprep.subr.bf16.mxu0 %v6307
    %7370 = vmatpush1.bf16.msra.mxu0 %v6306
    %7371 = vmatprep.subr.bf16.mxu0 %v6315
    %7372 = vmatpush1.bf16.msra.mxu0 %v6314
    %7373 = vmatprep.subr.bf16.mxu0 %v6323
    %7374 = vmatpush1.bf16.msra.mxu0 %v6322
    %7375 = vmatprep.subr.bf16.mxu0 %v6331
    %7376 = vmatpush1.bf16.msra.mxu0 %v6330
    %7377 = vmatprep.subr.bf16.mxu0 %v6339
    %7378 = vmatpush1.bf16.msra.mxu0 %v6338
    %7379 = vmatprep.subr.bf16.mxu0 %v6347
    %7380 = vmatpush1.bf16.msra.mxu0 %v6346
    %7381 = vmatprep.subr.bf16.mxu0 %v6355
    %7382 = vmatpush1.bf16.msra.mxu0 %v6354
    %7383 = vmatprep.subr.bf16.mxu0 %v6363
    %7384 = vmatpush1.bf16.msra.mxu0 %v6362
    %7385 = vmatprep.subr.bf16.mxu0 %v6371
    %7386 = vmatpush1.bf16.msra.mxu0 %v6370
    %7387 = vmatprep.subr.bf16.mxu0 %v6379
    %7388 = vmatpush1.bf16.msra.mxu0 %v6378
    %7389 = vmatprep.subr.bf16.mxu0 %v6387
    %7390 = vmatpush1.bf16.msra.mxu0 %v6386
    %7391 = vmatprep.subr.bf16.mxu0 %v6395
    %7392 = vmatpush1.bf16.msra.mxu0 %v6394
    %7393 = vmatprep.mubr.bf16.mxu0 %v3837
    %7394 = vmatmul.mubr.bf16.gmra.mrb[0].mxu0 %v3836
    %v7395 = vpop.f32.mrb[0].mxu0
    %v7396 = vadd.f32 %v7355, %v7395
    %v7397 = vpop.f32.mrb[0].mxu0
    %v7398 = vadd.f32 %v7357, %v7397
    %v7399 = vpop.f32.mrb[0].mxu0
    %v7400 = vpop.f32.mrb[0].mxu0
    %7401 = vdwg.mxu0
    %7402 = vmatprep.subr.bf16.mxu0 %v5893
    %7403 = vmatpush1.bf16.msra.mxu0 %v5892
    %7404 = vmatprep.subr.bf16.mxu0 %v5901
    %7405 = vmatpush1.bf16.msra.mxu0 %v5900
    %7406 = vmatprep.subr.bf16.mxu0 %v5909
    %7407 = vmatpush1.bf16.msra.mxu0 %v5908
    %7408 = vmatprep.subr.bf16.mxu0 %v5917
    %7409 = vmatpush1.bf16.msra.mxu0 %v5916
    %7410 = vmatprep.subr.bf16.mxu0 %v5925
    %7411 = vmatpush1.bf16.msra.mxu0 %v5924
    %7412 = vmatprep.subr.bf16.mxu0 %v5933
    %7413 = vmatpush1.bf16.msra.mxu0 %v5932
    %7414 = vmatprep.subr.bf16.mxu0 %v5941
    %7415 = vmatpush1.bf16.msra.mxu0 %v5940
    %7416 = vmatprep.subr.bf16.mxu0 %v5949
    %7417 = vmatpush1.bf16.msra.mxu0 %v5948
    %7418 = vmatprep.subr.bf16.mxu0 %v5957
    %7419 = vmatpush1.bf16.msra.mxu0 %v5956
    %7420 = vmatprep.subr.bf16.mxu0 %v5965
    %7421 = vmatpush1.bf16.msra.mxu0 %v5964
    %7422 = vmatprep.subr.bf16.mxu0 %v5973
    %7423 = vmatpush1.bf16.msra.mxu0 %v5972
    %7424 = vmatprep.subr.bf16.mxu0 %v5981
    %7425 = vmatpush1.bf16.msra.mxu0 %v5980
    %7426 = vmatprep.subr.bf16.mxu0 %v5989
    %7427 = vmatpush1.bf16.msra.mxu0 %v5988
    %7428 = vmatprep.subr.bf16.mxu0 %v5997
    %7429 = vmatpush1.bf16.msra.mxu0 %v5996
    %7430 = vmatprep.subr.bf16.mxu0 %v6005
    %7431 = vmatpush1.bf16.msra.mxu0 %v6004
    %7432 = vmatprep.subr.bf16.mxu0 %v6013
    %7433 = vmatpush1.bf16.msra.mxu0 %v6012
    %7434 = vmatprep.mubr.bf16.mxu0 %v3831
    %7435 = vmatmul.mubr.bf16.gmra.mrb[0].mxu0 %v3830
    %v7436 = vpop.f32.mrb[0].mxu0
    %v7437 = vadd.f32 0.0, %v7436
    %v7438 = vpop.f32.mrb[0].mxu0
    %v7439 = vadd.f32 0.0, %v7438
    %v7440 = vpop.f32.mrb[0].mxu0
    %v7441 = vpop.f32.mrb[0].mxu0
    %7442 = vdwg.mxu0
    %7443 = vmatprep.subr.bf16.mxu0 %v6021
    %7444 = vmatpush1.bf16.msra.mxu0 %v6020
    %7445 = vmatprep.subr.bf16.mxu0 %v6029
    %7446 = vmatpush1.bf16.msra.mxu0 %v6028
    %7447 = vmatprep.subr.bf16.mxu0 %v6037
    %7448 = vmatpush1.bf16.msra.mxu0 %v6036
    %7449 = vmatprep.subr.bf16.mxu0 %v6045
    %7450 = vmatpush1.bf16.msra.mxu0 %v6044
    %7451 = vmatprep.subr.bf16.mxu0 %v6053
    %7452 = vmatpush1.bf16.msra.mxu0 %v6052
    %7453 = vmatprep.subr.bf16.mxu0 %v6061
    %7454 = vmatpush1.bf16.msra.mxu0 %v6060
    %7455 = vmatprep.subr.bf16.mxu0 %v6069
    %7456 = vmatpush1.bf16.msra.mxu0 %v6068
    %7457 = vmatprep.subr.bf16.mxu0 %v6077
    %7458 = vmatpush1.bf16.msra.mxu0 %v6076
    %7459 = vmatprep.subr.bf16.mxu0 %v6085
    %7460 = vmatpush1.bf16.msra.mxu0 %v6084
    %7461 = vmatprep.subr.bf16.mxu0 %v6093
    %7462 = vmatpush1.bf16.msra.mxu0 %v6092
    %7463 = vmatprep.subr.bf16.mxu0 %v6101
    %7464 = vmatpush1.bf16.msra.mxu0 %v6100
    %7465 = vmatprep.subr.bf16.mxu0 %v6109
    %7466 = vmatpush1.bf16.msra.mxu0 %v6108
    %7467 = vmatprep.subr.bf16.mxu0 %v6117
    %7468 = vmatpush1.bf16.msra.mxu0 %v6116
    %7469 = vmatprep.subr.bf16.mxu0 %v6125
    %7470 = vmatpush1.bf16.msra.mxu0 %v6124
    %7471 = vmatprep.subr.bf16.mxu0 %v6133
    %7472 = vmatpush1.bf16.msra.mxu0 %v6132
    %7473 = vmatprep.subr.bf16.mxu0 %v6141
    %7474 = vmatpush1.bf16.msra.mxu0 %v6140
    %7475 = vmatprep.mubr.bf16.mxu0 %v3833
    %7476 = vmatmul.mubr.bf16.gmra.mrb[0].mxu0 %v3832
    %v7477 = vpop.f32.mrb[0].mxu0
    %v7478 = vadd.f32 %v7437, %v7477
    %v7479 = vpop.f32.mrb[0].mxu0
    %v7480 = vadd.f32 %v7439, %v7479
    %v7481 = vpop.f32.mrb[0].mxu0
    %v7482 = vpop.f32.mrb[0].mxu0
    %7483 = vdwg.mxu0
    %7484 = vmatprep.subr.bf16.mxu0 %v6149
    %7485 = vmatpush1.bf16.msra.mxu0 %v6148
    %7486 = vmatprep.subr.bf16.mxu0 %v6157
    %7487 = vmatpush1.bf16.msra.mxu0 %v6156
    %7488 = vmatprep.subr.bf16.mxu0 %v6165
    %7489 = vmatpush1.bf16.msra.mxu0 %v6164
    %7490 = vmatprep.subr.bf16.mxu0 %v6173
    %7491 = vmatpush1.bf16.msra.mxu0 %v6172
    %7492 = vmatprep.subr.bf16.mxu0 %v6181
    %7493 = vmatpush1.bf16.msra.mxu0 %v6180
    %7494 = vmatprep.subr.bf16.mxu0 %v6189
    %7495 = vmatpush1.bf16.msra.mxu0 %v6188
    %7496 = vmatprep.subr.bf16.mxu0 %v6197
    %7497 = vmatpush1.bf16.msra.mxu0 %v6196
    %7498 = vmatprep.subr.bf16.mxu0 %v6205
    %7499 = vmatpush1.bf16.msra.mxu0 %v6204
    %7500 = vmatprep.subr.bf16.mxu0 %v6213
    %7501 = vmatpush1.bf16.msra.mxu0 %v6212
    %7502 = vmatprep.subr.bf16.mxu0 %v6221
    %7503 = vmatpush1.bf16.msra.mxu0 %v6220
    %7504 = vmatprep.subr.bf16.mxu0 %v6229
    %7505 = vmatpush1.bf16.msra.mxu0 %v6228
    %7506 = vmatprep.subr.bf16.mxu0 %v6237
    %7507 = vmatpush1.bf16.msra.mxu0 %v6236
    %7508 = vmatprep.subr.bf16.mxu0 %v6245
    %7509 = vmatpush1.bf16.msra.mxu0 %v6244
    %7510 = vmatprep.subr.bf16.mxu0 %v6253
    %7511 = vmatpush1.bf16.msra.mxu0 %v6252
    %7512 = vmatprep.subr.bf16.mxu0 %v6261
    %7513 = vmatpush1.bf16.msra.mxu0 %v6260
    %7514 = vmatprep.subr.bf16.mxu0 %v6269
    %7515 = vmatpush1.bf16.msra.mxu0 %v6268
    %7516 = vmatprep.mubr.bf16.mxu0 %v3835
    %7517 = vmatmul.mubr.bf16.gmra.mrb[0].mxu0 %v3834
    %v7518 = vpop.f32.mrb[0].mxu0
    %v7519 = vadd.f32 %v7478, %v7518
    %v7520 = vpop.f32.mrb[0].mxu0
    %v7521 = vadd.f32 %v7480, %v7520
    %v7522 = vpop.f32.mrb[0].mxu0
    %v7523 = vpop.f32.mrb[0].mxu0
    %7524 = vdwg.mxu0
    %7525 = vmatprep.subr.bf16.mxu0 %v6277
    %7526 = vmatpush1.bf16.msra.mxu0 %v6276
    %7527 = vmatprep.subr.bf16.mxu0 %v6285
    %7528 = vmatpush1.bf16.msra.mxu0 %v6284
    %7529 = vmatprep.subr.bf16.mxu0 %v6293
    %7530 = vmatpush1.bf16.msra.mxu0 %v6292
    %7531 = vmatprep.subr.bf16.mxu0 %v6301
    %7532 = vmatpush1.bf16.msra.mxu0 %v6300
    %7533 = vmatprep.subr.bf16.mxu0 %v6309
    %7534 = vmatpush1.bf16.msra.mxu0 %v6308
    %7535 = vmatprep.subr.bf16.mxu0 %v6317
    %7536 = vmatpush1.bf16.msra.mxu0 %v6316
    %7537 = vmatprep.subr.bf16.mxu0 %v6325
    %7538 = vmatpush1.bf16.msra.mxu0 %v6324
    %7539 = vmatprep.subr.bf16.mxu0 %v6333
    %7540 = vmatpush1.bf16.msra.mxu0 %v6332
    %7541 = vmatprep.subr.bf16.mxu0 %v6341
    %7542 = vmatpush1.bf16.msra.mxu0 %v6340
    %7543 = vmatprep.subr.bf16.mxu0 %v6349
    %7544 = vmatpush1.bf16.msra.mxu0 %v6348
    %7545 = vmatprep.subr.bf16.mxu0 %v6357
    %7546 = vmatpush1.bf16.msra.mxu0 %v6356
    %7547 = vmatprep.subr.bf16.mxu0 %v6365
    %7548 = vmatpush1.bf16.msra.mxu0 %v6364
    %7549 = vmatprep.subr.bf16.mxu0 %v6373
    %7550 = vmatpush1.bf16.msra.mxu0 %v6372
    %7551 = vmatprep.subr.bf16.mxu0 %v6381
    %7552 = vmatpush1.bf16.msra.mxu0 %v6380
    %7553 = vmatprep.subr.bf16.mxu0 %v6389
    %7554 = vmatpush1.bf16.msra.mxu0 %v6388
    %7555 = vmatprep.subr.bf16.mxu0 %v6397
    %7556 = vmatpush1.bf16.msra.mxu0 %v6396
    %7557 = vmatprep.mubr.bf16.mxu0 %v3837
    %7558 = vmatmul.mubr.bf16.gmra.mrb[0].mxu0 %v3836
    %v7559 = vpop.f32.mrb[0].mxu0
    %v7560 = vadd.f32 %v7519, %v7559
    %v7561 = vpop.f32.mrb[0].mxu0
    %v7562 = vadd.f32 %v7521, %v7561
    %v7563 = vpop.f32.mrb[0].mxu0
    %v7564 = vpop.f32.mrb[0].mxu0
    %7565 = vdwg.mxu0
    %7566 = vst [vmem:[#allocation8] sm:$0xff] %v7068
    %7567 = vst [vmem:[#allocation8 + $0x8] sm:$0xff] %v7070
    %7568 = vst [vmem:[#allocation8 + $0x10] sm:$0xff] %v7232
    %7569 = vst [vmem:[#allocation8 + $0x18] sm:$0xff] %v7234
    %7570 = vst [vmem:[#allocation8 + $0x20] sm:$0xff] %v7396
    %7571 = vst [vmem:[#allocation8 + $0x28] sm:$0xff] %v7398
    %7572 = vst [vmem:[#allocation8 + $0x30] sm:$0xff] %v7560
    %7573 = vst [vmem:[#allocation8 + $0x38] sm:$0xff] %v7562
    // Predicated region
    $region26: #{tpu_custom_call.1} parent=1 // pred_check
      _
    $region27: #{tpu_custom_call.1} parent=1 // pred_check_branch
      %7575 = sbr.rel (0) target = $region29
    $region28: #{tpu_custom_call.1} parent=1 // pred_region
      %s7577 = ssub.s32 1024, 1024
      %7578 = vsyncadd [#allocation4], %s7577
      %s7580 = sshll.u32 [#allocation8], 4
      %s7581 = int_to_ptr.vmem [resolvable:$true] %s7580
      %7583 = dma.vmem_to_hbm [thread:$0]  %s7581, 1024, %s3, [#allocation4]
    $region29: #{tpu_custom_call.1} parent=1 // pred_fallthru
      _
    // Predicated region
    $region30: #{tpu_custom_call.1} parent=1 // pred_check
      _
    $region31: #{tpu_custom_call.1} parent=1 // pred_check_branch
      %7585 = sbr.rel (0) target = $region33
    $region32: #{tpu_custom_call.1} parent=1 // pred_region
      %7586 = dma.done [#allocation4], 1024
    $region33: #{tpu_custom_call.1} parent=1 // pred_fallthru
      _
    %7587 = vsyncpa [#allocation3], 1
    %7588 = vsyncpa [#allocation6], 1
    %7589 = vsyncpa [#allocation4], 1

</llo_original>
